<compile_context>
chip_gen: v6e
topology: v6e:2x2x1
jax: 0.10.0
libtpu: 0.0.40
codegen_flags: <defaults>
</compile_context>

<pallas_src>
import functools

import jax
import jax.numpy as jnp
from jax import lax
from jax.experimental import pallas as pl
from jax.experimental.pallas import tpu as pltpu


_VMEM_LIMIT = 32 * 1024 * 1024   # >= v5e's 16 MiB default scoped VMEM; safe on v6e/v7x.


def _triple(v):
    if isinstance(v, (tuple, list)):
        assert len(v) == 3
        return tuple(int(x) for x in v)
    return (int(v),) * 3


# ----------------------------- Pallas kernels ------------------------------ #

def _conv_stats_kernel(kt, kh, kw, sh, sw, Ho, Wo, *refs):
    """One (n, do) output slab: 3-D conv via kt*kh*kw shifted-window MXU matmuls.

    refs = (x_tap_0, ..., x_tap_{kt-1}, w, out, sum, sumsq)
      x_tap_kd : (1, 1, Hp, Wp, Cin)   input depth slice  d_in = sd*do + kd
      w        : (kt, kh, kw, Cin, Cout)
      out      : (1, 1, Cout, Ho*Wo)   conv output, channel-major => lane-dense store
      sum/sq   : (1, 1, Cout, 1)       per-(n, do) partial BatchNorm statistics
    """
    x_refs = refs[:kt]
    w_ref, o_ref, sum_ref, sq_ref = refs[kt:]
    cin, cout = w_ref.shape[3], w_ref.shape[4]

    acc = jnp.zeros((cout, Ho * Wo), jnp.float32)
    for kd in range(kt):
        xv = x_refs[kd][0, 0]                               # (Hp, Wp, Cin)
        for ih in range(kh):
            for iw in range(kw):
                if sh == 1 and sw == 1:
                    xs = xv[ih:ih + Ho, iw:iw + Wo, :]
                else:                                       # strided spatial conv
                    xs = xv[ih:ih + sh * (Ho - 1) + 1:sh,
                            iw:iw + sw * (Wo - 1) + 1:sw, :]
                xs = xs.reshape(Ho * Wo, cin)               # collapses major dims only
                w_tap = w_ref[kd, ih, iw]                   # (Cin, Cout)
                # (Cin,Cout) x (Ho*Wo,Cin), contract Cin -> (Cout, Ho*Wo)
                acc = acc + lax.dot_general(
                    w_tap, xs,
                    dimension_numbers=(((0,), (1,)), ((), ())),
                    preferred_element_type=jnp.float32)

    o_ref[0, 0] = acc
    # Partial BN stats over this slab's Ho*Wo positions (no padded rows included).
    # NOTE: E[x^2] - E[x]^2 in f32 is fine at these magnitudes; a Welford-style
    # combine would be preferable for very large M / large activations.
    sum_ref[0, 0] = jnp.sum(acc, axis=1, keepdims=True)
    sq_ref[0, 0] = jnp.sum(acc * acc, axis=1, keepdims=True)


def _bn_relu_kernel(x_ref, s_ref, b_ref, o_ref):
    """Fused per-channel affine (folded BatchNorm) + ReLU on lane-dense blocks."""
    o_ref[...] = jnp.maximum(x_ref[...] * s_ref[...] + b_ref[...], 0.0)


# ------------------------------ Pallas wrappers ----------------------------- #

def _conv3d_with_stats(xp, w_k, Do, Ho, Wo, sd, sh, sw):
    """xp: (N, Dp, Hp, Wp, Cin) zero-padded channels-last; w_k: (kt, kh, kw, Cin, Cout)."""
    N, Dp, Hp, Wp, Cin = xp.shape
    kt, kh, kw, _, Cout = w_k.shape

    kernel = functools.partial(_conv_stats_kernel, kt, kh, kw, sh, sw, Ho, Wo)

    # One spec per temporal tap of the SAME input array: only ~kt/sd x of the input is
    # read from HBM (vs k^3 x for a materialized im2col), and no patch matrix is written.
    in_specs = [
        pl.BlockSpec((1, 1, Hp, Wp, Cin),
                     (lambda n, do, _kd=kd: (n, sd * do + _kd, 0, 0, 0)))
        for kd in range(kt)
    ]
    in_specs.append(
        pl.BlockSpec((kt, kh, kw, Cin, Cout), lambda n, do: (0, 0, 0, 0, 0)))

    y, psum, psq = pl.pallas_call(
        kernel,
        out_shape=(
            jax.ShapeDtypeStruct((N, Do, Cout, Ho * Wo), jnp.float32),
            jax.ShapeDtypeStruct((N, Do, Cout, 1), jnp.float32),
            jax.ShapeDtypeStruct((N, Do, Cout, 1), jnp.float32),
        ),
        grid=(N, Do),
        in_specs=in_specs,
        out_specs=(
            pl.BlockSpec((1, 1, Cout, Ho * Wo), lambda n, do: (n, do, 0, 0)),
            pl.BlockSpec((1, 1, Cout, 1), lambda n, do: (n, do, 0, 0)),
            pl.BlockSpec((1, 1, Cout, 1), lambda n, do: (n, do, 0, 0)),
        ),
        # No cross-step accumulators -> both grid axes can be "parallel" (v7x megacore).
        compiler_params=pltpu.CompilerParams(
            dimension_semantics=("parallel", "parallel"),
            vmem_limit_bytes=_VMEM_LIMIT),
    )(*([xp] * kt), w_k)
    return y, psum, psq


def _largest_group(total, bytes_per_item, budget=2 * 1024 * 1024):
    """Largest divisor of `total` whose block stays within a modest VMEM budget."""
    g = 1
    for cand in range(1, total + 1):
        if total % cand == 0 and cand * bytes_per_item <= budget:
            g = cand
    return g


def _bn_relu(y, scale, shift):
    """y: (G, Cout, L) f32 (L = Ho*Wo, lane-dense); scale/shift: (1, Cout, 1) f32."""
    G, Cout, L = y.shape
    g = _largest_group(G, Cout * L * 4)
    return pl.pallas_call(
        _bn_relu_kernel,
        out_shape=jax.ShapeDtypeStruct((G, Cout, L), jnp.float32),
        grid=(G // g,),
        in_specs=[
            pl.BlockSpec((g, Cout, L), lambda i: (i, 0, 0)),
            pl.BlockSpec((1, Cout, 1), lambda i: (0, 0, 0)),
            pl.BlockSpec((1, Cout, 1), lambda i: (0, 0, 0)),
        ],
        out_specs=pl.BlockSpec((g, Cout, L), lambda i: (i, 0, 0)),
        compiler_params=pltpu.CompilerParams(
            dimension_semantics=("parallel",),
            vmem_limit_bytes=_VMEM_LIMIT),
    )(y, scale, shift)


# --------------------------- module forward pass ---------------------------- #

def inception_base_conv3d_forward(x, params, kernel_size, stride, padding=0, eps=1e-5):
    """x: (N, Cin, D, H, W) f32 -> (N, Cout, Do, Ho, Wo) f32  (conv -> BN(train) -> ReLU)."""
    kt, kh, kw = _triple(kernel_size)
    sd, sh, sw = _triple(stride)
    pd, ph, pw = _triple(padding)
    N, Cin, D, H, W = x.shape
    w = params["weight"]                                   # (Cout, Cin, kt, kh, kw)
    Cout = w.shape[0]

    Do = (D + 2 * pd - kt) // sd + 1
    Ho = (H + 2 * ph - kh) // sh + 1
    Wo = (W + 2 * pw - kw) // sw + 1

    # Channels-last + zero-pad once (a single ~1x pass; no k^3 im2col blow-up in HBM).
    x_cl = jnp.transpose(x, (0, 2, 3, 4, 1))               # (N, D, H, W, Cin)
    xp = jnp.pad(x_cl, ((0, 0), (pd, pd), (ph, ph), (pw, pw), (0, 0)))
    # Weight -> (kt, kh, kw, Cin, Cout): each tap slice is a ready (Cin, Cout) MXU operand.
    # Kept in f32: with the module's 0.01 weight init BatchNorm divides by sigma ~= 0.1,
    # so single-pass bf16 rounding would be amplified ~10x at the normalized output.
    w_k = jnp.transpose(w, (2, 3, 4, 1, 0))

    y1, psum, psq = _conv3d_with_stats(xp, w_k, Do, Ho, Wo, sd, sh, sw)

    # Training-mode BatchNorm (batch statistics, biased variance) folded to an affine.
    m = float(N * Do * Ho * Wo)
    mean = jnp.sum(psum, axis=(0, 1)) / m                  # (Cout, 1)
    var = jnp.sum(psq, axis=(0, 1)) / m - mean * mean
    scale = params["gamma"].reshape(Cout, 1) * lax.rsqrt(var + eps)
    shift = params["beta"].reshape(Cout, 1) - mean * scale

    y2 = _bn_relu(y1.reshape(N * Do, Cout, Ho * Wo),
                  scale.reshape(1, Cout, 1), shift.reshape(1, Cout, 1))

    # Back to NCDHW: only the (Do, Cout) axes swap over contiguous Ho*Wo blocks.
    y2 = y2.reshape(N, Do, Cout, Ho, Wo)
    return jnp.transpose(y2, (0, 2, 1, 3, 4))


# ------------------------------- reference (JAX) ----------------------------- #

def _ref_forward(x, params, kernel_size, stride, padding=0, eps=1e-5):
    kt, kh, kw = _triple(kernel_size)
    sd, sh, sw = _triple(stride)
    pd, ph, pw = _triple(padding)
    y = lax.conv_general_dilated(
        x, params["weight"], window_strides=(sd, sh, sw),
        padding=((pd, pd), (ph, ph), (pw, pw)),
        dimension_numbers=("NCDHW", "OIDHW", "NCDHW"))
    mean = jnp.mean(y, axis=(0, 2, 3, 4), keepdims=True)
    var = jnp.var(y, axis=(0, 2, 3, 4), keepdims=True)     # biased, training-mode BN
    yn = (y - mean) / jnp.sqrt(var + eps)
    yn = yn * params["gamma"].reshape(1, -1, 1, 1, 1) + params["beta"].reshape(1, -1, 1, 1, 1)
    return jnp.maximum(yn, 0.0)


# ------------------------------------ main ----------------------------------- #

if __name__ == "__main__":
    # Small shapes consistent with the module: NCDHW input, in_planes=4, out_planes=8.
    N, Cin, Cout, D, H, W = 2, 4, 8, 8, 16, 16
    ksize, stride, padding = 3, 1, 1
    bn_eps = 1e-5                                          # nn.BatchNorm3d default

    key = jax.random.PRNGKey(0)
    kw_, kx = jax.random.split(key)
    params = {
        "weight": 0.01 * jax.random.normal(kw_, (Cout, Cin, ksize, ksize, ksize), jnp.float32),
        "gamma": jnp.ones((Cout,), jnp.float32),
        "beta": jnp.zeros((Cout,), jnp.float32),
    }
    x = jax.random.normal(kx, (N, Cin, D, H, W), jnp.float32)

    out = inception_base_conv3d_forward(x, params, ksize, stride, padding, bn_eps)
    out = jax.block_until_ready(out)

    ref = _ref_forward(x, params, ksize, stride, padding, bn_eps)
    assert out.shape == ref.shape, (out.shape, ref.shape)
    max_err = float(jnp.max(jnp.abs(out - ref)))
    assert jnp.allclose(out, ref, rtol=2e-3, atol=2e-3), max_err

    print("KERNEL_OK")
</pallas_src>

<mosaic_0001>
module attributes {stable_mosaic.version = 11 : i64} {
  func.func @_conv_stats_kernel(%arg0: i32, %arg1: i32, %arg2: memref<1x1x18x18x4xf32, #tpu.memory_space<vmem>>, %arg3: memref<1x1x18x18x4xf32, #tpu.memory_space<vmem>>, %arg4: memref<1x1x18x18x4xf32, #tpu.memory_space<vmem>>, %arg5: memref<3x3x3x4x8xf32, #tpu.memory_space<vmem>>, %arg6: memref<1x1x8x256xf32, #tpu.memory_space<vmem>>, %arg7: memref<1x1x8x1xf32, #tpu.memory_space<vmem>>, %arg8: memref<1x1x8x1xf32, #tpu.memory_space<vmem>>) attributes {dimension_semantics = [#tpu.dimension_semantics<parallel>, #tpu.dimension_semantics<parallel>], iteration_bounds = array<i64: 2, 8>, scalar_prefetch = 0 : i64, scratch_operands = 0 : i64, tpu.core_type = #tpu.core_type<tc>, window_params = [{transform_indices = @transform_0, window_bounds = array<i64: 1, 1, 18, 18, 4>}, {transform_indices = @transform_1, window_bounds = array<i64: 1, 1, 18, 18, 4>}, {transform_indices = @transform_2, window_bounds = array<i64: 1, 1, 18, 18, 4>}, {pipeline_mode = #tpu.pipeline_mode<synchronous>, transform_indices = @transform_3, window_bounds = array<i64: 3, 3, 3, 4, 8>}, {transform_indices = @transform_4, window_bounds = array<i64: 1, 1, 8, 256>}, {transform_indices = @transform_5, window_bounds = array<i64: 1, 1, 8, 1>}, {transform_indices = @transform_6, window_bounds = array<i64: 1, 1, 8, 1>}]} {
    %cst = arith.constant 0.000000e+00 : f32
    %0 = vector.broadcast %cst : f32 to vector<8x256xf32>
    %c0 = arith.constant 0 : index
    %c0_0 = arith.constant 0 : index
    %c0_1 = arith.constant 0 : index
    %c0_2 = arith.constant 0 : index
    %c0_3 = arith.constant 0 : index
    %1 = vector.load %arg2[%c0, %c0_0, %c0_1, %c0_2, %c0_3] : memref<1x1x18x18x4xf32, #tpu.memory_space<vmem>>, vector<1x1x18x18x4xf32>
    %2 = vector.shape_cast %1 : vector<1x1x18x18x4xf32> to vector<18x18x4xf32>
    %3 = vector.extract_strided_slice %2 {offsets = [0, 0, 0], sizes = [16, 16, 4], strides = [1, 1, 1]} : vector<18x18x4xf32> to vector<16x16x4xf32>
    %4 = vector.shape_cast %3 : vector<16x16x4xf32> to vector<256x4xf32>
    %c0_4 = arith.constant 0 : index
    %c0_5 = arith.constant 0 : index
    %c0_6 = arith.constant 0 : index
    %c0_7 = arith.constant 0 : index
    %c0_8 = arith.constant 0 : index
    %5 = vector.load %arg5[%c0_4, %c0_5, %c0_6, %c0_7, %c0_8] : memref<3x3x3x4x8xf32, #tpu.memory_space<vmem>>, vector<1x1x1x4x8xf32>
    %6 = vector.shape_cast %5 : vector<1x1x1x4x8xf32> to vector<4x8xf32>
    %cst_9 = arith.constant dense<0.000000e+00> : vector<8x256xf32>
    %7 = tpu.matmul %6, %4, %cst_9 {dimension_numbers = #tpu.dot_dimension_numbers<[0], [1], [1], [0], [0, 1, 1, 0], [], []>} : vector<4x8xf32>, vector<256x4xf32>, vector<8x256xf32> -> vector<8x256xf32>
    %8 = arith.addf %0, %7 : vector<8x256xf32>
    %9 = vector.extract_strided_slice %2 {offsets = [0, 1, 0], sizes = [16, 16, 4], strides = [1, 1, 1]} : vector<18x18x4xf32> to vector<16x16x4xf32>
    %10 = vector.shape_cast %9 : vector<16x16x4xf32> to vector<256x4xf32>
    %c0_10 = arith.constant 0 : index
    %c0_11 = arith.constant 0 : index
    %c1 = arith.constant 1 : index
    %c0_12 = arith.constant 0 : index
    %c0_13 = arith.constant 0 : index
    %11 = vector.load %arg5[%c0_10, %c0_11, %c1, %c0_12, %c0_13] : memref<3x3x3x4x8xf32, #tpu.memory_space<vmem>>, vector<1x1x1x4x8xf32>
    %12 = vector.shape_cast %11 : vector<1x1x1x4x8xf32> to vector<4x8xf32>
    %cst_14 = arith.constant dense<0.000000e+00> : vector<8x256xf32>
    %13 = tpu.matmul %12, %10, %cst_14 {dimension_numbers = #tpu.dot_dimension_numbers<[0], [1], [1], [0], [0, 1, 1, 0], [], []>} : vector<4x8xf32>, vector<256x4xf32>, vector<8x256xf32> -> vector<8x256xf32>
    %14 = arith.addf %8, %13 : vector<8x256xf32>
    %15 = vector.extract_strided_slice %2 {offsets = [0, 2, 0], sizes = [16, 16, 4], strides = [1, 1, 1]} : vector<18x18x4xf32> to vector<16x16x4xf32>
    %16 = vector.shape_cast %15 : vector<16x16x4xf32> to vector<256x4xf32>
    %c0_15 = arith.constant 0 : index
    %c0_16 = arith.constant 0 : index
    %c2 = arith.constant 2 : index
    %c0_17 = arith.constant 0 : index
    %c0_18 = arith.constant 0 : index
    %17 = vector.load %arg5[%c0_15, %c0_16, %c2, %c0_17, %c0_18] : memref<3x3x3x4x8xf32, #tpu.memory_space<vmem>>, vector<1x1x1x4x8xf32>
    %18 = vector.shape_cast %17 : vector<1x1x1x4x8xf32> to vector<4x8xf32>
    %cst_19 = arith.constant dense<0.000000e+00> : vector<8x256xf32>
    %19 = tpu.matmul %18, %16, %cst_19 {dimension_numbers = #tpu.dot_dimension_numbers<[0], [1], [1], [0], [0, 1, 1, 0], [], []>} : vector<4x8xf32>, vector<256x4xf32>, vector<8x256xf32> -> vector<8x256xf32>
    %20 = arith.addf %14, %19 : vector<8x256xf32>
    %21 = vector.extract_strided_slice %2 {offsets = [1, 0, 0], sizes = [16, 16, 4], strides = [1, 1, 1]} : vector<18x18x4xf32> to vector<16x16x4xf32>
    %22 = vector.shape_cast %21 : vector<16x16x4xf32> to vector<256x4xf32>
    %c0_20 = arith.constant 0 : index
    %c1_21 = arith.constant 1 : index
    %c0_22 = arith.constant 0 : index
    %c0_23 = arith.constant 0 : index
    %c0_24 = arith.constant 0 : index
    %23 = vector.load %arg5[%c0_20, %c1_21, %c0_22, %c0_23, %c0_24] : memref<3x3x3x4x8xf32, #tpu.memory_space<vmem>>, vector<1x1x1x4x8xf32>
    %24 = vector.shape_cast %23 : vector<1x1x1x4x8xf32> to vector<4x8xf32>
    %cst_25 = arith.constant dense<0.000000e+00> : vector<8x256xf32>
    %25 = tpu.matmul %24, %22, %cst_25 {dimension_numbers = #tpu.dot_dimension_numbers<[0], [1], [1], [0], [0, 1, 1, 0], [], []>} : vector<4x8xf32>, vector<256x4xf32>, vector<8x256xf32> -> vector<8x256xf32>
    %26 = arith.addf %20, %25 : vector<8x256xf32>
    %27 = vector.extract_strided_slice %2 {offsets = [1, 1, 0], sizes = [16, 16, 4], strides = [1, 1, 1]} : vector<18x18x4xf32> to vector<16x16x4xf32>
    %28 = vector.shape_cast %27 : vector<16x16x4xf32> to vector<256x4xf32>
    %c0_26 = arith.constant 0 : index
    %c1_27 = arith.constant 1 : index
    %c1_28 = arith.constant 1 : index
    %c0_29 = arith.constant 0 : index
    %c0_30 = arith.constant 0 : index
    %29 = vector.load %arg5[%c0_26, %c1_27, %c1_28, %c0_29, %c0_30] : memref<3x3x3x4x8xf32, #tpu.memory_space<vmem>>, vector<1x1x1x4x8xf32>
    %30 = vector.shape_cast %29 : vector<1x1x1x4x8xf32> to vector<4x8xf32>
    %cst_31 = arith.constant dense<0.000000e+00> : vector<8x256xf32>
    %31 = tpu.matmul %30, %28, %cst_31 {dimension_numbers = #tpu.dot_dimension_numbers<[0], [1], [1], [0], [0, 1, 1, 0], [], []>} : vector<4x8xf32>, vector<256x4xf32>, vector<8x256xf32> -> vector<8x256xf32>
    %32 = arith.addf %26, %31 : vector<8x256xf32>
    %33 = vector.extract_strided_slice %2 {offsets = [1, 2, 0], sizes = [16, 16, 4], strides = [1, 1, 1]} : vector<18x18x4xf32> to vector<16x16x4xf32>
    %34 = vector.shape_cast %33 : vector<16x16x4xf32> to vector<256x4xf32>
    %c0_32 = arith.constant 0 : index
    %c1_33 = arith.constant 1 : index
    %c2_34 = arith.constant 2 : index
    %c0_35 = arith.constant 0 : index
    %c0_36 = arith.constant 0 : index
    %35 = vector.load %arg5[%c0_32, %c1_33, %c2_34, %c0_35, %c0_36] : memref<3x3x3x4x8xf32, #tpu.memory_space<vmem>>, vector<1x1x1x4x8xf32>
    %36 = vector.shape_cast %35 : vector<1x1x1x4x8xf32> to vector<4x8xf32>
    %cst_37 = arith.constant dense<0.000000e+00> : vector<8x256xf32>
    %37 = tpu.matmul %36, %34, %cst_37 {dimension_numbers = #tpu.dot_dimension_numbers<[0], [1], [1], [0], [0, 1, 1, 0], [], []>} : vector<4x8xf32>, vector<256x4xf32>, vector<8x256xf32> -> vector<8x256xf32>
    %38 = arith.addf %32, %37 : vector<8x256xf32>
    %39 = vector.extract_strided_slice %2 {offsets = [2, 0, 0], sizes = [16, 16, 4], strides = [1, 1, 1]} : vector<18x18x4xf32> to vector<16x16x4xf32>
    %40 = vector.shape_cast %39 : vector<16x16x4xf32> to vector<256x4xf32>
    %c0_38 = arith.constant 0 : index
    %c2_39 = arith.constant 2 : index
    %c0_40 = arith.constant 0 : index
    %c0_41 = arith.constant 0 : index
    %c0_42 = arith.constant 0 : index
    %41 = vector.load %arg5[%c0_38, %c2_39, %c0_40, %c0_41, %c0_42] : memref<3x3x3x4x8xf32, #tpu.memory_space<vmem>>, vector<1x1x1x4x8xf32>
    %42 = vector.shape_cast %41 : vector<1x1x1x4x8xf32> to vector<4x8xf32>
    %cst_43 = arith.constant dense<0.000000e+00> : vector<8x256xf32>
    %43 = tpu.matmul %42, %40, %cst_43 {dimension_numbers = #tpu.dot_dimension_numbers<[0], [1], [1], [0], [0, 1, 1, 0], [], []>} : vector<4x8xf32>, vector<256x4xf32>, vector<8x256xf32> -> vector<8x256xf32>
    %44 = arith.addf %38, %43 : vector<8x256xf32>
    %45 = vector.extract_strided_slice %2 {offsets = [2, 1, 0], sizes = [16, 16, 4], strides = [1, 1, 1]} : vector<18x18x4xf32> to vector<16x16x4xf32>
    %46 = vector.shape_cast %45 : vector<16x16x4xf32> to vector<256x4xf32>
    %c0_44 = arith.constant 0 : index
    %c2_45 = arith.constant 2 : index
    %c1_46 = arith.constant 1 : index
    %c0_47 = arith.constant 0 : index
    %c0_48 = arith.constant 0 : index
    %47 = vector.load %arg5[%c0_44, %c2_45, %c1_46, %c0_47, %c0_48] : memref<3x3x3x4x8xf32, #tpu.memory_space<vmem>>, vector<1x1x1x4x8xf32>
    %48 = vector.shape_cast %47 : vector<1x1x1x4x8xf32> to vector<4x8xf32>
    %cst_49 = arith.constant dense<0.000000e+00> : vector<8x256xf32>
    %49 = tpu.matmul %48, %46, %cst_49 {dimension_numbers = #tpu.dot_dimension_numbers<[0], [1], [1], [0], [0, 1, 1, 0], [], []>} : vector<4x8xf32>, vector<256x4xf32>, vector<8x256xf32> -> vector<8x256xf32>
    %50 = arith.addf %44, %49 : vector<8x256xf32>
    %51 = vector.extract_strided_slice %2 {offsets = [2, 2, 0], sizes = [16, 16, 4], strides = [1, 1, 1]} : vector<18x18x4xf32> to vector<16x16x4xf32>
    %52 = vector.shape_cast %51 : vector<16x16x4xf32> to vector<256x4xf32>
    %c0_50 = arith.constant 0 : index
    %c2_51 = arith.constant 2 : index
    %c2_52 = arith.constant 2 : index
    %c0_53 = arith.constant 0 : index
    %c0_54 = arith.constant 0 : index
    %53 = vector.load %arg5[%c0_50, %c2_51, %c2_52, %c0_53, %c0_54] : memref<3x3x3x4x8xf32, #tpu.memory_space<vmem>>, vector<1x1x1x4x8xf32>
    %54 = vector.shape_cast %53 : vector<1x1x1x4x8xf32> to vector<4x8xf32>
    %cst_55 = arith.constant dense<0.000000e+00> : vector<8x256xf32>
    %55 = tpu.matmul %54, %52, %cst_55 {dimension_numbers = #tpu.dot_dimension_numbers<[0], [1], [1], [0], [0, 1, 1, 0], [], []>} : vector<4x8xf32>, vector<256x4xf32>, vector<8x256xf32> -> vector<8x256xf32>
    %56 = arith.addf %50, %55 : vector<8x256xf32>
    %c0_56 = arith.constant 0 : index
    %c0_57 = arith.constant 0 : index
    %c0_58 = arith.constant 0 : index
    %c0_59 = arith.constant 0 : index
    %c0_60 = arith.constant 0 : index
    %57 = vector.load %arg3[%c0_56, %c0_57, %c0_58, %c0_59, %c0_60] : memref<1x1x18x18x4xf32, #tpu.memory_space<vmem>>, vector<1x1x18x18x4xf32>
    %58 = vector.shape_cast %57 : vector<1x1x18x18x4xf32> to vector<18x18x4xf32>
    %59 = vector.extract_strided_slice %58 {offsets = [0, 0, 0], sizes = [16, 16, 4], strides = [1, 1, 1]} : vector<18x18x4xf32> to vector<16x16x4xf32>
    %60 = vector.shape_cast %59 : vector<16x16x4xf32> to vector<256x4xf32>
    %c1_61 = arith.constant 1 : index
    %c0_62 = arith.constant 0 : index
    %c0_63 = arith.constant 0 : index
    %c0_64 = arith.constant 0 : index
    %c0_65 = arith.constant 0 : index
    %61 = vector.load %arg5[%c1_61, %c0_62, %c0_63, %c0_64, %c0_65] : memref<3x3x3x4x8xf32, #tpu.memory_space<vmem>>, vector<1x1x1x4x8xf32>
    %62 = vector.shape_cast %61 : vector<1x1x1x4x8xf32> to vector<4x8xf32>
    %cst_66 = arith.constant dense<0.000000e+00> : vector<8x256xf32>
    %63 = tpu.matmul %62, %60, %cst_66 {dimension_numbers = #tpu.dot_dimension_numbers<[0], [1], [1], [0], [0, 1, 1, 0], [], []>} : vector<4x8xf32>, vector<256x4xf32>, vector<8x256xf32> -> vector<8x256xf32>
    %64 = arith.addf %56, %63 : vector<8x256xf32>
    %65 = vector.extract_strided_slice %58 {offsets = [0, 1, 0], sizes = [16, 16, 4], strides = [1, 1, 1]} : vector<18x18x4xf32> to vector<16x16x4xf32>
    %66 = vector.shape_cast %65 : vector<16x16x4xf32> to vector<256x4xf32>
    %c1_67 = arith.constant 1 : index
    %c0_68 = arith.constant 0 : index
    %c1_69 = arith.constant 1 : index
    %c0_70 = arith.constant 0 : index
    %c0_71 = arith.constant 0 : index
    %67 = vector.load %arg5[%c1_67, %c0_68, %c1_69, %c0_70, %c0_71] : memref<3x3x3x4x8xf32, #tpu.memory_space<vmem>>, vector<1x1x1x4x8xf32>
    %68 = vector.shape_cast %67 : vector<1x1x1x4x8xf32> to vector<4x8xf32>
    %cst_72 = arith.constant dense<0.000000e+00> : vector<8x256xf32>
    %69 = tpu.matmul %68, %66, %cst_72 {dimension_numbers = #tpu.dot_dimension_numbers<[0], [1], [1], [0], [0, 1, 1, 0], [], []>} : vector<4x8xf32>, vector<256x4xf32>, vector<8x256xf32> -> vector<8x256xf32>
    %70 = arith.addf %64, %69 : vector<8x256xf32>
    %71 = vector.extract_strided_slice %58 {offsets = [0, 2, 0], sizes = [16, 16, 4], strides = [1, 1, 1]} : vector<18x18x4xf32> to vector<16x16x4xf32>
    %72 = vector.shape_cast %71 : vector<16x16x4xf32> to vector<256x4xf32>
    %c1_73 = arith.constant 1 : index
    %c0_74 = arith.constant 0 : index
    %c2_75 = arith.constant 2 : index
    %c0_76 = arith.constant 0 : index
    %c0_77 = arith.constant 0 : index
    %73 = vector.load %arg5[%c1_73, %c0_74, %c2_75, %c0_76, %c0_77] : memref<3x3x3x4x8xf32, #tpu.memory_space<vmem>>, vector<1x1x1x4x8xf32>
    %74 = vector.shape_cast %73 : vector<1x1x1x4x8xf32> to vector<4x8xf32>
    %cst_78 = arith.constant dense<0.000000e+00> : vector<8x256xf32>
    %75 = tpu.matmul %74, %72, %cst_78 {dimension_numbers = #tpu.dot_dimension_numbers<[0], [1], [1], [0], [0, 1, 1, 0], [], []>} : vector<4x8xf32>, vector<256x4xf32>, vector<8x256xf32> -> vector<8x256xf32>
    %76 = arith.addf %70, %75 : vector<8x256xf32>
    %77 = vector.extract_strided_slice %58 {offsets = [1, 0, 0], sizes = [16, 16, 4], strides = [1, 1, 1]} : vector<18x18x4xf32> to vector<16x16x4xf32>
    %78 = vector.shape_cast %77 : vector<16x16x4xf32> to vector<256x4xf32>
    %c1_79 = arith.constant 1 : index
    %c1_80 = arith.constant 1 : index
    %c0_81 = arith.constant 0 : index
    %c0_82 = arith.constant 0 : index
    %c0_83 = arith.constant 0 : index
    %79 = vector.load %arg5[%c1_79, %c1_80, %c0_81, %c0_82, %c0_83] : memref<3x3x3x4x8xf32, #tpu.memory_space<vmem>>, vector<1x1x1x4x8xf32>
    %80 = vector.shape_cast %79 : vector<1x1x1x4x8xf32> to vector<4x8xf32>
    %cst_84 = arith.constant dense<0.000000e+00> : vector<8x256xf32>
    %81 = tpu.matmul %80, %78, %cst_84 {dimension_numbers = #tpu.dot_dimension_numbers<[0], [1], [1], [0], [0, 1, 1, 0], [], []>} : vector<4x8xf32>, vector<256x4xf32>, vector<8x256xf32> -> vector<8x256xf32>
    %82 = arith.addf %76, %81 : vector<8x256xf32>
    %83 = vector.extract_strided_slice %58 {offsets = [1, 1, 0], sizes = [16, 16, 4], strides = [1, 1, 1]} : vector<18x18x4xf32> to vector<16x16x4xf32>
    %84 = vector.shape_cast %83 : vector<16x16x4xf32> to vector<256x4xf32>
    %c1_85 = arith.constant 1 : index
    %c1_86 = arith.constant 1 : index
    %c1_87 = arith.constant 1 : index
    %c0_88 = arith.constant 0 : index
    %c0_89 = arith.constant 0 : index
    %85 = vector.load %arg5[%c1_85, %c1_86, %c1_87, %c0_88, %c0_89] : memref<3x3x3x4x8xf32, #tpu.memory_space<vmem>>, vector<1x1x1x4x8xf32>
    %86 = vector.shape_cast %85 : vector<1x1x1x4x8xf32> to vector<4x8xf32>
    %cst_90 = arith.constant dense<0.000000e+00> : vector<8x256xf32>
    %87 = tpu.matmul %86, %84, %cst_90 {dimension_numbers = #tpu.dot_dimension_numbers<[0], [1], [1], [0], [0, 1, 1, 0], [], []>} : vector<4x8xf32>, vector<256x4xf32>, vector<8x256xf32> -> vector<8x256xf32>
    %88 = arith.addf %82, %87 : vector<8x256xf32>
    %89 = vector.extract_strided_slice %58 {offsets = [1, 2, 0], sizes = [16, 16, 4], strides = [1, 1, 1]} : vector<18x18x4xf32> to vector<16x16x4xf32>
    %90 = vector.shape_cast %89 : vector<16x16x4xf32> to vector<256x4xf32>
    %c1_91 = arith.constant 1 : index
    %c1_92 = arith.constant 1 : index
    %c2_93 = arith.constant 2 : index
    %c0_94 = arith.constant 0 : index
    %c0_95 = arith.constant 0 : index
    %91 = vector.load %arg5[%c1_91, %c1_92, %c2_93, %c0_94, %c0_95] : memref<3x3x3x4x8xf32, #tpu.memory_space<vmem>>, vector<1x1x1x4x8xf32>
    %92 = vector.shape_cast %91 : vector<1x1x1x4x8xf32> to vector<4x8xf32>
    %cst_96 = arith.constant dense<0.000000e+00> : vector<8x256xf32>
    %93 = tpu.matmul %92, %90, %cst_96 {dimension_numbers = #tpu.dot_dimension_numbers<[0], [1], [1], [0], [0, 1, 1, 0], [], []>} : vector<4x8xf32>, vector<256x4xf32>, vector<8x256xf32> -> vector<8x256xf32>
    %94 = arith.addf %88, %93 : vector<8x256xf32>
    %95 = vector.extract_strided_slice %58 {offsets = [2, 0, 0], sizes = [16, 16, 4], strides = [1, 1, 1]} : vector<18x18x4xf32> to vector<16x16x4xf32>
    %96 = vector.shape_cast %95 : vector<16x16x4xf32> to vector<256x4xf32>
    %c1_97 = arith.constant 1 : index
    %c2_98 = arith.constant 2 : index
    %c0_99 = arith.constant 0 : index
    %c0_100 = arith.constant 0 : index
    %c0_101 = arith.constant 0 : index
    %97 = vector.load %arg5[%c1_97, %c2_98, %c0_99, %c0_100, %c0_101] : memref<3x3x3x4x8xf32, #tpu.memory_space<vmem>>, vector<1x1x1x4x8xf32>
    %98 = vector.shape_cast %97 : vector<1x1x1x4x8xf32> to vector<4x8xf32>
    %cst_102 = arith.constant dense<0.000000e+00> : vector<8x256xf32>
    %99 = tpu.matmul %98, %96, %cst_102 {dimension_numbers = #tpu.dot_dimension_numbers<[0], [1], [1], [0], [0, 1, 1, 0], [], []>} : vector<4x8xf32>, vector<256x4xf32>, vector<8x256xf32> -> vector<8x256xf32>
    %100 = arith.addf %94, %99 : vector<8x256xf32>
    %101 = vector.extract_strided_slice %58 {offsets = [2, 1, 0], sizes = [16, 16, 4], strides = [1, 1, 1]} : vector<18x18x4xf32> to vector<16x16x4xf32>
    %102 = vector.shape_cast %101 : vector<16x16x4xf32> to vector<256x4xf32>
    %c1_103 = arith.constant 1 : index
    %c2_104 = arith.constant 2 : index
    %c1_105 = arith.constant 1 : index
    %c0_106 = arith.constant 0 : index
    %c0_107 = arith.constant 0 : index
    %103 = vector.load %arg5[%c1_103, %c2_104, %c1_105, %c0_106, %c0_107] : memref<3x3x3x4x8xf32, #tpu.memory_space<vmem>>, vector<1x1x1x4x8xf32>
    %104 = vector.shape_cast %103 : vector<1x1x1x4x8xf32> to vector<4x8xf32>
    %cst_108 = arith.constant dense<0.000000e+00> : vector<8x256xf32>
    %105 = tpu.matmul %104, %102, %cst_108 {dimension_numbers = #tpu.dot_dimension_numbers<[0], [1], [1], [0], [0, 1, 1, 0], [], []>} : vector<4x8xf32>, vector<256x4xf32>, vector<8x256xf32> -> vector<8x256xf32>
    %106 = arith.addf %100, %105 : vector<8x256xf32>
    %107 = vector.extract_strided_slice %58 {offsets = [2, 2, 0], sizes = [16, 16, 4], strides = [1, 1, 1]} : vector<18x18x4xf32> to vector<16x16x4xf32>
    %108 = vector.shape_cast %107 : vector<16x16x4xf32> to vector<256x4xf32>
    %c1_109 = arith.constant 1 : index
    %c2_110 = arith.constant 2 : index
    %c2_111 = arith.constant 2 : index
    %c0_112 = arith.constant 0 : index
    %c0_113 = arith.constant 0 : index
    %109 = vector.load %arg5[%c1_109, %c2_110, %c2_111, %c0_112, %c0_113] : memref<3x3x3x4x8xf32, #tpu.memory_space<vmem>>, vector<1x1x1x4x8xf32>
    %110 = vector.shape_cast %109 : vector<1x1x1x4x8xf32> to vector<4x8xf32>
    %cst_114 = arith.constant dense<0.000000e+00> : vector<8x256xf32>
    %111 = tpu.matmul %110, %108, %cst_114 {dimension_numbers = #tpu.dot_dimension_numbers<[0], [1], [1], [0], [0, 1, 1, 0], [], []>} : vector<4x8xf32>, vector<256x4xf32>, vector<8x256xf32> -> vector<8x256xf32>
    %112 = arith.addf %106, %111 : vector<8x256xf32>
    %c0_115 = arith.constant 0 : index
    %c0_116 = arith.constant 0 : index
    %c0_117 = arith.constant 0 : index
    %c0_118 = arith.constant 0 : index
    %c0_119 = arith.constant 0 : index
    %113 = vector.load %arg4[%c0_115, %c0_116, %c0_117, %c0_118, %c0_119] : memref<1x1x18x18x4xf32, #tpu.memory_space<vmem>>, vector<1x1x18x18x4xf32>
    %114 = vector.shape_cast %113 : vector<1x1x18x18x4xf32> to vector<18x18x4xf32>
    %115 = vector.extract_strided_slice %114 {offsets = [0, 0, 0], sizes = [16, 16, 4], strides = [1, 1, 1]} : vector<18x18x4xf32> to vector<16x16x4xf32>
    %116 = vector.shape_cast %115 : vector<16x16x4xf32> to vector<256x4xf32>
    %c2_120 = arith.constant 2 : index
    %c0_121 = arith.constant 0 : index
    %c0_122 = arith.constant 0 : index
    %c0_123 = arith.constant 0 : index
    %c0_124 = arith.constant 0 : index
    %117 = vector.load %arg5[%c2_120, %c0_121, %c0_122, %c0_123, %c0_124] : memref<3x3x3x4x8xf32, #tpu.memory_space<vmem>>, vector<1x1x1x4x8xf32>
    %118 = vector.shape_cast %117 : vector<1x1x1x4x8xf32> to vector<4x8xf32>
    %cst_125 = arith.constant dense<0.000000e+00> : vector<8x256xf32>
    %119 = tpu.matmul %118, %116, %cst_125 {dimension_numbers = #tpu.dot_dimension_numbers<[0], [1], [1], [0], [0, 1, 1, 0], [], []>} : vector<4x8xf32>, vector<256x4xf32>, vector<8x256xf32> -> vector<8x256xf32>
    %120 = arith.addf %112, %119 : vector<8x256xf32>
    %121 = vector.extract_strided_slice %114 {offsets = [0, 1, 0], sizes = [16, 16, 4], strides = [1, 1, 1]} : vector<18x18x4xf32> to vector<16x16x4xf32>
    %122 = vector.shape_cast %121 : vector<16x16x4xf32> to vector<256x4xf32>
    %c2_126 = arith.constant 2 : index
    %c0_127 = arith.constant 0 : index
    %c1_128 = arith.constant 1 : index
    %c0_129 = arith.constant 0 : index
    %c0_130 = arith.constant 0 : index
    %123 = vector.load %arg5[%c2_126, %c0_127, %c1_128, %c0_129, %c0_130] : memref<3x3x3x4x8xf32, #tpu.memory_space<vmem>>, vector<1x1x1x4x8xf32>
    %124 = vector.shape_cast %123 : vector<1x1x1x4x8xf32> to vector<4x8xf32>
    %cst_131 = arith.constant dense<0.000000e+00> : vector<8x256xf32>
    %125 = tpu.matmul %124, %122, %cst_131 {dimension_numbers = #tpu.dot_dimension_numbers<[0], [1], [1], [0], [0, 1, 1, 0], [], []>} : vector<4x8xf32>, vector<256x4xf32>, vector<8x256xf32> -> vector<8x256xf32>
    %126 = arith.addf %120, %125 : vector<8x256xf32>
    %127 = vector.extract_strided_slice %114 {offsets = [0, 2, 0], sizes = [16, 16, 4], strides = [1, 1, 1]} : vector<18x18x4xf32> to vector<16x16x4xf32>
    %128 = vector.shape_cast %127 : vector<16x16x4xf32> to vector<256x4xf32>
    %c2_132 = arith.constant 2 : index
    %c0_133 = arith.constant 0 : index
    %c2_134 = arith.constant 2 : index
    %c0_135 = arith.constant 0 : index
    %c0_136 = arith.constant 0 : index
    %129 = vector.load %arg5[%c2_132, %c0_133, %c2_134, %c0_135, %c0_136] : memref<3x3x3x4x8xf32, #tpu.memory_space<vmem>>, vector<1x1x1x4x8xf32>
    %130 = vector.shape_cast %129 : vector<1x1x1x4x8xf32> to vector<4x8xf32>
    %cst_137 = arith.constant dense<0.000000e+00> : vector<8x256xf32>
    %131 = tpu.matmul %130, %128, %cst_137 {dimension_numbers = #tpu.dot_dimension_numbers<[0], [1], [1], [0], [0, 1, 1, 0], [], []>} : vector<4x8xf32>, vector<256x4xf32>, vector<8x256xf32> -> vector<8x256xf32>
    %132 = arith.addf %126, %131 : vector<8x256xf32>
    %133 = vector.extract_strided_slice %114 {offsets = [1, 0, 0], sizes = [16, 16, 4], strides = [1, 1, 1]} : vector<18x18x4xf32> to vector<16x16x4xf32>
    %134 = vector.shape_cast %133 : vector<16x16x4xf32> to vector<256x4xf32>
    %c2_138 = arith.constant 2 : index
    %c1_139 = arith.constant 1 : index
    %c0_140 = arith.constant 0 : index
    %c0_141 = arith.constant 0 : index
    %c0_142 = arith.constant 0 : index
    %135 = vector.load %arg5[%c2_138, %c1_139, %c0_140, %c0_141, %c0_142] : memref<3x3x3x4x8xf32, #tpu.memory_space<vmem>>, vector<1x1x1x4x8xf32>
    %136 = vector.shape_cast %135 : vector<1x1x1x4x8xf32> to vector<4x8xf32>
    %cst_143 = arith.constant dense<0.000000e+00> : vector<8x256xf32>
    %137 = tpu.matmul %136, %134, %cst_143 {dimension_numbers = #tpu.dot_dimension_numbers<[0], [1], [1], [0], [0, 1, 1, 0], [], []>} : vector<4x8xf32>, vector<256x4xf32>, vector<8x256xf32> -> vector<8x256xf32>
    %138 = arith.addf %132, %137 : vector<8x256xf32>
    %139 = vector.extract_strided_slice %114 {offsets = [1, 1, 0], sizes = [16, 16, 4], strides = [1, 1, 1]} : vector<18x18x4xf32> to vector<16x16x4xf32>
    %140 = vector.shape_cast %139 : vector<16x16x4xf32> to vector<256x4xf32>
    %c2_144 = arith.constant 2 : index
    %c1_145 = arith.constant 1 : index
    %c1_146 = arith.constant 1 : index
    %c0_147 = arith.constant 0 : index
    %c0_148 = arith.constant 0 : index
    %141 = vector.load %arg5[%c2_144, %c1_145, %c1_146, %c0_147, %c0_148] : memref<3x3x3x4x8xf32, #tpu.memory_space<vmem>>, vector<1x1x1x4x8xf32>
    %142 = vector.shape_cast %141 : vector<1x1x1x4x8xf32> to vector<4x8xf32>
    %cst_149 = arith.constant dense<0.000000e+00> : vector<8x256xf32>
    %143 = tpu.matmul %142, %140, %cst_149 {dimension_numbers = #tpu.dot_dimension_numbers<[0], [1], [1], [0], [0, 1, 1, 0], [], []>} : vector<4x8xf32>, vector<256x4xf32>, vector<8x256xf32> -> vector<8x256xf32>
    %144 = arith.addf %138, %143 : vector<8x256xf32>
    %145 = vector.extract_strided_slice %114 {offsets = [1, 2, 0], sizes = [16, 16, 4], strides = [1, 1, 1]} : vector<18x18x4xf32> to vector<16x16x4xf32>
    %146 = vector.shape_cast %145 : vector<16x16x4xf32> to vector<256x4xf32>
    %c2_150 = arith.constant 2 : index
    %c1_151 = arith.constant 1 : index
    %c2_152 = arith.constant 2 : index
    %c0_153 = arith.constant 0 : index
    %c0_154 = arith.constant 0 : index
    %147 = vector.load %arg5[%c2_150, %c1_151, %c2_152, %c0_153, %c0_154] : memref<3x3x3x4x8xf32, #tpu.memory_space<vmem>>, vector<1x1x1x4x8xf32>
    %148 = vector.shape_cast %147 : vector<1x1x1x4x8xf32> to vector<4x8xf32>
    %cst_155 = arith.constant dense<0.000000e+00> : vector<8x256xf32>
    %149 = tpu.matmul %148, %146, %cst_155 {dimension_numbers = #tpu.dot_dimension_numbers<[0], [1], [1], [0], [0, 1, 1, 0], [], []>} : vector<4x8xf32>, vector<256x4xf32>, vector<8x256xf32> -> vector<8x256xf32>
    %150 = arith.addf %144, %149 : vector<8x256xf32>
    %151 = vector.extract_strided_slice %114 {offsets = [2, 0, 0], sizes = [16, 16, 4], strides = [1, 1, 1]} : vector<18x18x4xf32> to vector<16x16x4xf32>
    %152 = vector.shape_cast %151 : vector<16x16x4xf32> to vector<256x4xf32>
    %c2_156 = arith.constant 2 : index
    %c2_157 = arith.constant 2 : index
    %c0_158 = arith.constant 0 : index
    %c0_159 = arith.constant 0 : index
    %c0_160 = arith.constant 0 : index
    %153 = vector.load %arg5[%c2_156, %c2_157, %c0_158, %c0_159, %c0_160] : memref<3x3x3x4x8xf32, #tpu.memory_space<vmem>>, vector<1x1x1x4x8xf32>
    %154 = vector.shape_cast %153 : vector<1x1x1x4x8xf32> to vector<4x8xf32>
    %cst_161 = arith.constant dense<0.000000e+00> : vector<8x256xf32>
    %155 = tpu.matmul %154, %152, %cst_161 {dimension_numbers = #tpu.dot_dimension_numbers<[0], [1], [1], [0], [0, 1, 1, 0], [], []>} : vector<4x8xf32>, vector<256x4xf32>, vector<8x256xf32> -> vector<8x256xf32>
    %156 = arith.addf %150, %155 : vector<8x256xf32>
    %157 = vector.extract_strided_slice %114 {offsets = [2, 1, 0], sizes = [16, 16, 4], strides = [1, 1, 1]} : vector<18x18x4xf32> to vector<16x16x4xf32>
    %158 = vector.shape_cast %157 : vector<16x16x4xf32> to vector<256x4xf32>
    %c2_162 = arith.constant 2 : index
    %c2_163 = arith.constant 2 : index
    %c1_164 = arith.constant 1 : index
    %c0_165 = arith.constant 0 : index
    %c0_166 = arith.constant 0 : index
    %159 = vector.load %arg5[%c2_162, %c2_163, %c1_164, %c0_165, %c0_166] : memref<3x3x3x4x8xf32, #tpu.memory_space<vmem>>, vector<1x1x1x4x8xf32>
    %160 = vector.shape_cast %159 : vector<1x1x1x4x8xf32> to vector<4x8xf32>
    %cst_167 = arith.constant dense<0.000000e+00> : vector<8x256xf32>
    %161 = tpu.matmul %160, %158, %cst_167 {dimension_numbers = #tpu.dot_dimension_numbers<[0], [1], [1], [0], [0, 1, 1, 0], [], []>} : vector<4x8xf32>, vector<256x4xf32>, vector<8x256xf32> -> vector<8x256xf32>
    %162 = arith.addf %156, %161 : vector<8x256xf32>
    %163 = vector.extract_strided_slice %114 {offsets = [2, 2, 0], sizes = [16, 16, 4], strides = [1, 1, 1]} : vector<18x18x4xf32> to vector<16x16x4xf32>
    %164 = vector.shape_cast %163 : vector<16x16x4xf32> to vector<256x4xf32>
    %c2_168 = arith.constant 2 : index
    %c2_169 = arith.constant 2 : index
    %c2_170 = arith.constant 2 : index
    %c0_171 = arith.constant 0 : index
    %c0_172 = arith.constant 0 : index
    %165 = vector.load %arg5[%c2_168, %c2_169, %c2_170, %c0_171, %c0_172] : memref<3x3x3x4x8xf32, #tpu.memory_space<vmem>>, vector<1x1x1x4x8xf32>
    %166 = vector.shape_cast %165 : vector<1x1x1x4x8xf32> to vector<4x8xf32>
    %cst_173 = arith.constant dense<0.000000e+00> : vector<8x256xf32>
    %167 = tpu.matmul %166, %164, %cst_173 {dimension_numbers = #tpu.dot_dimension_numbers<[0], [1], [1], [0], [0, 1, 1, 0], [], []>} : vector<4x8xf32>, vector<256x4xf32>, vector<8x256xf32> -> vector<8x256xf32>
    %168 = arith.addf %162, %167 : vector<8x256xf32>
    %c0_174 = arith.constant 0 : index
    %c0_175 = arith.constant 0 : index
    %c0_176 = arith.constant 0 : index
    %c0_177 = arith.constant 0 : index
    %169 = vector.load %arg6[%c0_174, %c0_175, %c0_176, %c0_177] : memref<1x1x8x256xf32, #tpu.memory_space<vmem>>, vector<1x1x8x256xf32>
    %170 = vector.shape_cast %169 : vector<1x1x8x256xf32> to vector<8x256xf32>
    %171 = vector.shape_cast %168 : vector<8x256xf32> to vector<1x1x8x256xf32>
    tpu.vector_store %arg6[%c0_174, %c0_175, %c0_176, %c0_177], %171 {strides = array<i32>} : memref<1x1x8x256xf32, #tpu.memory_space<vmem>>, vector<1x1x8x256xf32>,
    %cst_178 = arith.constant dense<0.000000e+00> : vector<8xf32>
    %172 = vector.multi_reduction <add>, %168, %cst_178 [1] : vector<8x256xf32> to vector<8xf32>
    %173 = vector.shape_cast %172 : vector<8xf32> to vector<8x1xf32>
    %c0_179 = arith.constant 0 : index
    %c0_180 = arith.constant 0 : index
    %c0_181 = arith.constant 0 : index
    %c0_182 = arith.constant 0 : index
    %174 = vector.load %arg7[%c0_179, %c0_180, %c0_181, %c0_182] : memref<1x1x8x1xf32, #tpu.memory_space<vmem>>, vector<1x1x8x1xf32>
    %175 = vector.shape_cast %174 : vector<1x1x8x1xf32> to vector<8x1xf32>
    %176 = vector.shape_cast %173 : vector<8x1xf32> to vector<1x1x8x1xf32>
    tpu.vector_store %arg7[%c0_179, %c0_180, %c0_181, %c0_182], %176 {strides = array<i32>} : memref<1x1x8x1xf32, #tpu.memory_space<vmem>>, vector<1x1x8x1xf32>,
    %177 = arith.mulf %168, %168 : vector<8x256xf32>
    %cst_183 = arith.constant dense<0.000000e+00> : vector<8xf32>
    %178 = vector.multi_reduction <add>, %177, %cst_183 [1] : vector<8x256xf32> to vector<8xf32>
    %179 = vector.shape_cast %178 : vector<8xf32> to vector<8x1xf32>
    %c0_184 = arith.constant 0 : index
    %c0_185 = arith.constant 0 : index
    %c0_186 = arith.constant 0 : index
    %c0_187 = arith.constant 0 : index
    %180 = vector.load %arg8[%c0_184, %c0_185, %c0_186, %c0_187] : memref<1x1x8x1xf32, #tpu.memory_space<vmem>>, vector<1x1x8x1xf32>
    %181 = vector.shape_cast %180 : vector<1x1x8x1xf32> to vector<8x1xf32>
    %182 = vector.shape_cast %179 : vector<8x1xf32> to vector<1x1x8x1xf32>
    tpu.vector_store %arg8[%c0_184, %c0_185, %c0_186, %c0_187], %182 {strides = array<i32>} : memref<1x1x8x1xf32, #tpu.memory_space<vmem>>, vector<1x1x8x1xf32>,
    return
  }
  func.func @transform_0(%arg0: i32, %arg1: i32) -> (i32, i32, i32, i32, i32) {
    %c1_i32 = arith.constant 1 : i32
    %0 = arith.muli %c1_i32, %arg1 : i32
    %c0_i32 = arith.constant 0 : i32
    %1 = arith.addi %0, %c0_i32 : i32
    %c0_i32_0 = arith.constant 0 : i32
    %c0_i32_1 = arith.constant 0 : i32
    %c0_i32_2 = arith.constant 0 : i32
    %c0_i32_3 = arith.constant 0 : i32
    return %arg0, %1, %c0_i32_0, %c0_i32_1, %c0_i32_2 : i32, i32, i32, i32, i32
  }
  func.func @transform_1(%arg0: i32, %arg1: i32) -> (i32, i32, i32, i32, i32) {
    %c1_i32 = arith.constant 1 : i32
    %0 = arith.muli %c1_i32, %arg1 : i32
    %c1_i32_0 = arith.constant 1 : i32
    %1 = arith.addi %0, %c1_i32_0 : i32
    %c0_i32 = arith.constant 0 : i32
    %c0_i32_1 = arith.constant 0 : i32
    %c0_i32_2 = arith.constant 0 : i32
    %c0_i32_3 = arith.constant 0 : i32
    return %arg0, %1, %c0_i32, %c0_i32_1, %c0_i32_2 : i32, i32, i32, i32, i32
  }
  func.func @transform_2(%arg0: i32, %arg1: i32) -> (i32, i32, i32, i32, i32) {
    %c1_i32 = arith.constant 1 : i32
    %0 = arith.muli %c1_i32, %arg1 : i32
    %c2_i32 = arith.constant 2 : i32
    %1 = arith.addi %0, %c2_i32 : i32
    %c0_i32 = arith.constant 0 : i32
    %c0_i32_0 = arith.constant 0 : i32
    %c0_i32_1 = arith.constant 0 : i32
    %c0_i32_2 = arith.constant 0 : i32
    return %arg0, %1, %c0_i32, %c0_i32_0, %c0_i32_1 : i32, i32, i32, i32, i32
  }
  func.func @transform_3(%arg0: i32, %arg1: i32) -> (i32, i32, i32, i32, i32) {
    %c0_i32 = arith.constant 0 : i32
    %c0_i32_0 = arith.constant 0 : i32
    %c0_i32_1 = arith.constant 0 : i32
    %c0_i32_2 = arith.constant 0 : i32
    %c0_i32_3 = arith.constant 0 : i32
    %c0_i32_4 = arith.constant 0 : i32
    return %c0_i32, %c0_i32_0, %c0_i32_1, %c0_i32_2, %c0_i32_3 : i32, i32, i32, i32, i32
  }
  func.func @transform_4(%arg0: i32, %arg1: i32) -> (i32, i32, i32, i32) {
    %c0_i32 = arith.constant 0 : i32
    %c0_i32_0 = arith.constant 0 : i32
    %c0_i32_1 = arith.constant 0 : i32
    return %arg0, %arg1, %c0_i32, %c0_i32_0 : i32, i32, i32, i32
  }
  func.func @transform_5(%arg0: i32, %arg1: i32) -> (i32, i32, i32, i32) {
    %c0_i32 = arith.constant 0 : i32
    %c0_i32_0 = arith.constant 0 : i32
    %c0_i32_1 = arith.constant 0 : i32
    return %arg0, %arg1, %c0_i32, %c0_i32_0 : i32, i32, i32, i32
  }
  func.func @transform_6(%arg0: i32, %arg1: i32) -> (i32, i32, i32, i32) {
    %c0_i32 = arith.constant 0 : i32
    %c0_i32_0 = arith.constant 0 : i32
    %c0_i32_1 = arith.constant 0 : i32
    return %arg0, %arg1, %c0_i32, %c0_i32_0 : i32, i32, i32, i32
  }
}

</mosaic_0001>

<llo_original>
// kernel: tpu_custom_call.1
$region0: #{tpu_custom_call.1}
  #allocation0 [shape = 'u32[]', space=smem, size = 0x4, offset = 0x4, fixed_abs, tag = 'smem constant byte address 0x4 - core index']
  #allocation1 [shape = 'u32[144,128]{1,0:T(1,128)}', space=vmem, size = 0x12000, scoped, tag = 'internal scratch']
  %s0 = inlined_call_operand.vmem [shape: f32[2,10,18,18,4], index: 0, kind: input, shape index: {}]
  %s1 = inlined_call_operand.vmem [shape: f32[2,10,18,18,4], index: 1, kind: input, shape index: {}]
  %s2 = inlined_call_operand.vmem [shape: f32[2,10,18,18,4], index: 2, kind: input, shape index: {}]
  %s3 = inlined_call_operand.vmem [shape: f32[3,3,3,4,8], index: 3, kind: input, shape index: {}]
  %s4 = inlined_call_operand.hbm [shape: f32[2,8,8,256], index: 4, kind: output, shape index: {0}]
  %s5 = inlined_call_operand.vmem [shape: f32[2,8,8,1], index: 5, kind: output, shape index: {1}]
  %s6 = inlined_call_operand.vmem [shape: f32[2,8,8,1], index: 6, kind: output, shape index: {2}]
  %7 = xla_tuple %s4, %s5, %s6
  %s8 = sld [smem:[#allocation0]]
  $region65: #{tpu_custom_call.1} parent=0
    _
  %s10 = ssub.s32 1, %s8
  %s11 = scalar_select 0, %s10, %s8
  $region1: #{tpu_custom_call.1} parent=0
    #allocation2 [shape = 'u8[16384]{0}', space=vmem, size = 0x4000, scoped, tag = 'output window, operand 0']
    #allocation3 [shape = 's32[2]{0}', space=sflag, size = 0x8, scoped, tag = 'scoped memory for tpu_custom_call.1']
    %12 = vsyncpa [#allocation3], 0
    %s13 = scalar_lea.sflag [#allocation3], 1
    %14 = vsyncpa %s13, 0
    loop: start=0, step=1, limit=18
    $region2: #{tpu_custom_call.1} parent=1 // loop_pre_header
      _
    $region3: #{tpu_custom_call.1} parent=1 // loop_header
      %s16 = sphi 0, %s20
      %p17 = scmp.ge.s32.totalorder %s16, 18
      %s23 = sphi 0, %s35
      %s24 = sphi 0, %s31
      %s25 = sphi 0, %s23
      %s26 = sphi 0, %s24
      %s27 = sphi 0, %s25
      %s28 = sphi 0, %s26
      %s40 = sphi 0, %s42
      %s43 = sphi 0, %s40
      %s44 = sphi 0, %s43
      %s60 = sphi 0, %s44
      %s70 = sphi 0, %s72
      %s73 = sphi 0, %s70
      %s74 = sphi 0, %s73
      %s90 = sphi 0, %s74
      %s100 = sphi 0, %s102
      %s103 = sphi 0, %s100
      %s104 = sphi 0, %s103
      %s120 = sphi 0, %s104
      %s124 = sphi 0, %s124
      %s126 = sphi 0, %s124
      %s127 = sphi 0, %s126
      %s141 = sphi 0, %s127
      %s149 = sphi 0, %s151
      %s152 = sphi 0, %s149
      %s153 = sphi 0, %s152
      %s169 = sphi 0, %s153
      %s177 = sphi 0, %s179
      %s180 = sphi 0, %s177
      %s181 = sphi 0, %s180
      %s197 = sphi 0, %s181
      %s205 = sphi 0, %s207
      %s208 = sphi 0, %s205
      %s209 = sphi 0, %s208
      %s225 = sphi 0, %s209
    $region4: #{tpu_custom_call.1} parent=1 // loop_header_branch
      %19 = sbr.rel (%p17) target = $region8
    $region5: #{tpu_custom_call.1} parent=1 // loop_body
      %s21 = ssub.s32 %s16, 1
      %s22 = ssub.s32 %s16, 2
      %s29 = sadd.s32 1, %s24
      %p30 = scmp.ge.s32.totalorder %s29, 8
      %s31 = scalar_select %p30, 0, %s29
      %s32 = sadd.s32 1, %s23
      %s33 = scalar_select %p30, %s32, %s23
      %p34 = scmp.ge.s32.totalorder %s33, 2
      %s35 = scalar_select %p34, 0, %s33
      %s36 = ssub.s32 %s23, %s35
      %s37 = ssub.s32 %s24, %s31
      %s38 = sor.u32 %s36, %s37
      %p39 = scmp.eq.s32.totalorder %s38, 0
      %s41 = sadd.s32 %s40, 1
      %s42 = scalar_select %p39, %s40, %s41
      %p45 = pneg %p39
      %p46 = scmp.eq.s32.totalorder %s16, 15
      %p47 = por %p45, %p46
      %p48 = scmp.ne.s32.totalorder %s40, %s43
      %p49 = scmp.eq.s32.totalorder %s16, 0
      %p50 = por %p48, %p49
      %p51 = scmp.ne.s32.totalorder %s40, %s43
      %p52 = scmp.eq.s32.totalorder %s21, 15
      %p53 = por %p51, %p52
      %p54 = scmp.ne.s32.totalorder %s43, %s44
      %p55 = scmp.eq.s32.totalorder %s21, 0
      %p56 = por %p54, %p55
      %p57 = scmp.ne.s32.totalorder %s43, %s44
      %p58 = scmp.eq.s32.totalorder %s22, 15
      %p59 = por %p57, %p58
      %p61 = scmp.ne.s32.totalorder %s44, %s60
      %p62 = scmp.eq.s32.totalorder %s22, 0
      %p63 = por %p61, %p62
      %s64 = sadd.s32 %s24, 1
      %s65 = sadd.s32 %s31, 1
      %s66 = ssub.s32 %s23, %s35
      %s67 = ssub.s32 %s64, %s65
      %s68 = sor.u32 %s66, %s67
      %p69 = scmp.eq.s32.totalorder %s68, 0
      %s71 = sadd.s32 %s70, 1
      %s72 = scalar_select %p69, %s70, %s71
      %p75 = pneg %p69
      %p76 = scmp.eq.s32.totalorder %s16, 15
      %p77 = por %p75, %p76
      %p78 = scmp.ne.s32.totalorder %s70, %s73
      %p79 = scmp.eq.s32.totalorder %s16, 0
      %p80 = por %p78, %p79
      %p81 = scmp.ne.s32.totalorder %s70, %s73
      %p82 = scmp.eq.s32.totalorder %s21, 15
      %p83 = por %p81, %p82
      %p84 = scmp.ne.s32.totalorder %s73, %s74
      %p85 = scmp.eq.s32.totalorder %s21, 0
      %p86 = por %p84, %p85
      %p87 = scmp.ne.s32.totalorder %s73, %s74
      %p88 = scmp.eq.s32.totalorder %s22, 15
      %p89 = por %p87, %p88
      %p91 = scmp.ne.s32.totalorder %s74, %s90
      %p92 = scmp.eq.s32.totalorder %s22, 0
      %p93 = por %p91, %p92
      %s94 = sadd.s32 %s24, 2
      %s95 = sadd.s32 %s31, 2
      %s96 = ssub.s32 %s23, %s35
      %s97 = ssub.s32 %s94, %s95
      %s98 = sor.u32 %s96, %s97
      %p99 = scmp.eq.s32.totalorder %s98, 0
      %s101 = sadd.s32 %s100, 1
      %s102 = scalar_select %p99, %s100, %s101
      %p105 = pneg %p99
      %p106 = scmp.eq.s32.totalorder %s16, 15
      %p107 = por %p105, %p106
      %p108 = scmp.ne.s32.totalorder %s100, %s103
      %p109 = scmp.eq.s32.totalorder %s16, 0
      %p110 = por %p108, %p109
      %p111 = scmp.ne.s32.totalorder %s100, %s103
      %p112 = scmp.eq.s32.totalorder %s21, 15
      %p113 = por %p111, %p112
      %p114 = scmp.ne.s32.totalorder %s103, %s104
      %p115 = scmp.eq.s32.totalorder %s21, 0
      %p116 = por %p114, %p115
      %p117 = scmp.ne.s32.totalorder %s103, %s104
      %p118 = scmp.eq.s32.totalorder %s22, 15
      %p119 = por %p117, %p118
      %p121 = scmp.ne.s32.totalorder %s104, %s120
      %p122 = scmp.eq.s32.totalorder %s22, 0
      %p123 = por %p121, %p122
      %s125 = sadd.s32 %s124, 1
      %p128 = scmp.eq.s32.totalorder %s16, 15
      %p129 = scmp.ne.s32.totalorder %s124, %s126
      %p130 = scmp.eq.s32.totalorder %s16, 0
      %p131 = por %p129, %p130
      %p132 = scmp.ne.s32.totalorder %s124, %s126
      %p133 = scmp.eq.s32.totalorder %s21, 15
      %p134 = por %p132, %p133
      %p135 = scmp.ne.s32.totalorder %s126, %s127
      %p136 = scmp.eq.s32.totalorder %s21, 0
      %p137 = por %p135, %p136
      %p138 = scmp.ne.s32.totalorder %s126, %s127
      %p139 = scmp.eq.s32.totalorder %s22, 15
      %p140 = por %p138, %p139
      %p142 = scmp.ne.s32.totalorder %s127, %s141
      %p143 = scmp.eq.s32.totalorder %s22, 0
      %p144 = por %p142, %p143
      %s145 = ssub.s32 %s23, %s35
      %s146 = ssub.s32 %s24, %s31
      %s147 = sor.u32 %s145, %s146
      %p148 = scmp.eq.s32.totalorder %s147, 0
      %s150 = sadd.s32 %s149, 1
      %s151 = scalar_select %p148, %s149, %s150
      %p154 = pneg %p148
      %p155 = scmp.eq.s32.totalorder %s16, 15
      %p156 = por %p154, %p155
      %p157 = scmp.ne.s32.totalorder %s149, %s152
      %p158 = scmp.eq.s32.totalorder %s16, 0
      %p159 = por %p157, %p158
      %p160 = scmp.ne.s32.totalorder %s149, %s152
      %p161 = scmp.eq.s32.totalorder %s21, 15
      %p162 = por %p160, %p161
      %p163 = scmp.ne.s32.totalorder %s152, %s153
      %p164 = scmp.eq.s32.totalorder %s21, 0
      %p165 = por %p163, %p164
      %p166 = scmp.ne.s32.totalorder %s152, %s153
      %p167 = scmp.eq.s32.totalorder %s22, 15
      %p168 = por %p166, %p167
      %p170 = scmp.ne.s32.totalorder %s153, %s169
      %p171 = scmp.eq.s32.totalorder %s22, 0
      %p172 = por %p170, %p171
      %s173 = ssub.s32 %s23, %s35
      %s174 = ssub.s32 %s24, %s31
      %s175 = sor.u32 %s173, %s174
      %p176 = scmp.eq.s32.totalorder %s175, 0
      %s178 = sadd.s32 %s177, 1
      %s179 = scalar_select %p176, %s177, %s178
      %p182 = pneg %p176
      %p183 = scmp.eq.s32.totalorder %s16, 15
      %p184 = por %p182, %p183
      %p185 = scmp.ne.s32.totalorder %s177, %s180
      %p186 = scmp.eq.s32.totalorder %s16, 0
      %p187 = por %p185, %p186
      %p188 = scmp.ne.s32.totalorder %s177, %s180
      %p189 = scmp.eq.s32.totalorder %s21, 15
      %p190 = por %p188, %p189
      %p191 = scmp.ne.s32.totalorder %s180, %s181
      %p192 = scmp.eq.s32.totalorder %s21, 0
      %p193 = por %p191, %p192
      %p194 = scmp.ne.s32.totalorder %s180, %s181
      %p195 = scmp.eq.s32.totalorder %s22, 15
      %p196 = por %p194, %p195
      %p198 = scmp.ne.s32.totalorder %s181, %s197
      %p199 = scmp.eq.s32.totalorder %s22, 0
      %p200 = por %p198, %p199
      %s201 = ssub.s32 %s23, %s35
      %s202 = ssub.s32 %s24, %s31
      %s203 = sor.u32 %s201, %s202
      %p204 = scmp.eq.s32.totalorder %s203, 0
      %s206 = sadd.s32 %s205, 1
      %s207 = scalar_select %p204, %s205, %s206
      %p210 = pneg %p204
      %p211 = scmp.eq.s32.totalorder %s16, 15
      %p212 = por %p210, %p211
      %p213 = scmp.ne.s32.totalorder %s205, %s208
      %p214 = scmp.eq.s32.totalorder %s16, 0
      %p215 = por %p213, %p214
      %p216 = scmp.ne.s32.totalorder %s205, %s208
      %p217 = scmp.eq.s32.totalorder %s21, 15
      %p218 = por %p216, %p217
      %p219 = scmp.ne.s32.totalorder %s208, %s209
      %p220 = scmp.eq.s32.totalorder %s21, 0
      %p221 = por %p219, %p220
      %p222 = scmp.ne.s32.totalorder %s208, %s209
      %p223 = scmp.eq.s32.totalorder %s22, 15
      %p224 = por %p222, %p223
      %p226 = scmp.ne.s32.totalorder %s209, %s225
      %p227 = scmp.eq.s32.totalorder %s22, 0
      %p228 = por %p226, %p227
      %p229 = scmp.le.s32.totalorder 1, %s16
      %p230 = scmp.lt.s32.totalorder %s16, 17
      %p231 = pnand %p229, %p230
      %p232 = pneg %p231
      // Predicated region
      $region9: #{tpu_custom_call.1} parent=5 // pred_check
        _
      $region10: #{tpu_custom_call.1} parent=5 // pred_check_branch
        %234 = sbr.rel (%p231) target = $region12
      $region11: #{tpu_custom_call.1} parent=5 // pred_region
        %s235 = ssub.s32 %s16, 1
        // Predicated region
        $region13: #{tpu_custom_call.1} parent=11 // pred_check
          %p236 = pneg %p137
        $region14: #{tpu_custom_call.1} parent=11 // pred_check_branch
          %238 = sbr.rel (%p236) target = $region16
        $region15: #{tpu_custom_call.1} parent=11 // pred_region
          _
        $region16: #{tpu_custom_call.1} parent=11 // pred_fallthru
          _
      $region12: #{tpu_custom_call.1} parent=5 // pred_fallthru
        _
      %p239 = scmp.lt.s32.totalorder %s16, 16
      // Predicated region
      $region17: #{tpu_custom_call.1} parent=5 // pred_check
        %p240 = pneg %p239
      $region18: #{tpu_custom_call.1} parent=5 // pred_check_branch
        %242 = sbr.rel (%p240) target = $region20
      $region19: #{tpu_custom_call.1} parent=5 // pred_region
        // Predicated region
        $region21: #{tpu_custom_call.1} parent=19 // pred_check
          %p243 = pneg %p50
        $region22: #{tpu_custom_call.1} parent=19 // pred_check_branch
          %245 = sbr.rel (%p243) target = $region24
        $region23: #{tpu_custom_call.1} parent=19 // pred_region
          %p246 = scmp.lt.s32.totalorder %s23, 1
          %s247 = scalar_select %p246, %s23, 1
          %p248 = scmp.lt.s32.totalorder %s24, 9
          %s249 = scalar_select %p248, %s24, 9
          %s250 = smul.addr %s249, 54
          %s251 = smul.addr %s247, 540
          %s252 = sadd.s32 %s250, %s251
          %s253 = smul.addr %s252, 8
          %s254 = scalar_lea.vmem %s0, %s253
        $region24: #{tpu_custom_call.1} parent=19 // pred_fallthru
          _
        // Predicated region
        $region25: #{tpu_custom_call.1} parent=19 // pred_check
          %p255 = pneg %p80
        $region26: #{tpu_custom_call.1} parent=19 // pred_check_branch
          %257 = sbr.rel (%p255) target = $region28
        $region27: #{tpu_custom_call.1} parent=19 // pred_region
          %s258 = sadd.s32 %s24, 1
          %p259 = scmp.lt.s32.totalorder %s23, 1
          %s260 = scalar_select %p259, %s23, 1
          %p261 = scmp.lt.s32.totalorder %s258, 9
          %s262 = scalar_select %p261, %s258, 9
          %s263 = smul.addr %s262, 54
          %s264 = smul.addr %s260, 540
          %s265 = sadd.s32 %s263, %s264
          %s266 = smul.addr %s265, 8
          %s267 = scalar_lea.vmem %s1, %s266
          %s268 = sadd.s32 %s24, 1
        $region28: #{tpu_custom_call.1} parent=19 // pred_fallthru
          _
        // Predicated region
        $region29: #{tpu_custom_call.1} parent=19 // pred_check
          %p269 = pneg %p110
        $region30: #{tpu_custom_call.1} parent=19 // pred_check_branch
          %271 = sbr.rel (%p269) target = $region32
        $region31: #{tpu_custom_call.1} parent=19 // pred_region
          %s272 = sadd.s32 %s24, 2
          %p273 = scmp.lt.s32.totalorder %s23, 1
          %s274 = scalar_select %p273, %s23, 1
          %p275 = scmp.lt.s32.totalorder %s272, 9
          %s276 = scalar_select %p275, %s272, 9
          %s277 = smul.addr %s276, 54
          %s278 = smul.addr %s274, 540
          %s279 = sadd.s32 %s277, %s278
          %s280 = smul.addr %s279, 8
          %s281 = scalar_lea.vmem %s2, %s280
          %s282 = sadd.s32 %s24, 2
        $region32: #{tpu_custom_call.1} parent=19 // pred_fallthru
          _
      $region20: #{tpu_custom_call.1} parent=5 // pred_fallthru
        _
      %p283 = scmp.le.s32.totalorder 1, %s16
      %p284 = scmp.lt.s32.totalorder %s16, 17
      %p285 = pnand %p283, %p284
      %p286 = pneg %p285
      // Predicated region
      $region33: #{tpu_custom_call.1} parent=5 // pred_check
        _
      $region34: #{tpu_custom_call.1} parent=5 // pred_check_branch
        %288 = sbr.rel (%p285) target = $region36
      $region35: #{tpu_custom_call.1} parent=5 // pred_region
        %s289 = ssub.s32 %s16, 1
        %p290 = scmp.lt.s32.totalorder %s25, 1
        %s291 = scalar_select %p290, %s25, 1
        %p292 = scmp.lt.s32.totalorder %s26, 9
        %s293 = scalar_select %p292, %s26, 9
        %s294 = smul.addr %s293, 54
        %s295 = smul.addr %s291, 540
        %s296 = sadd.s32 %s294, %s295
        %s297 = smul.addr %s296, 8
        %s298 = scalar_lea.vmem %s0, %s297
        %p299 = pneg %p56
        %p300 = pneg %p53
        %s301 = sadd.s32 %s26, 1
        %p302 = scmp.lt.s32.totalorder %s25, 1
        %s303 = scalar_select %p302, %s25, 1
        %p304 = scmp.lt.s32.totalorder %s301, 9
        %s305 = scalar_select %p304, %s301, 9
        %s306 = smul.addr %s305, 54
        %s307 = smul.addr %s303, 540
        %s308 = sadd.s32 %s306, %s307
        %s309 = smul.addr %s308, 8
        %s310 = scalar_lea.vmem %s1, %s309
        %p311 = pneg %p86
        %p312 = pneg %p83
        %s313 = sadd.s32 %s26, 2
        %p314 = scmp.lt.s32.totalorder %s25, 1
        %s315 = scalar_select %p314, %s25, 1
        %p316 = scmp.lt.s32.totalorder %s313, 9
        %s317 = scalar_select %p316, %s313, 9
        %s318 = smul.addr %s317, 54
        %s319 = smul.addr %s315, 540
        %s320 = sadd.s32 %s318, %s319
        %s321 = smul.addr %s320, 8
        %s322 = scalar_lea.vmem %s2, %s321
        %p323 = pneg %p116
        %p324 = pneg %p113
        %p325 = pneg %p137
        %p326 = pneg %p134
        %p327 = pneg %p165
        %p328 = pneg %p162
        %s329 = sand.u32 %s152, 1
        %s330 = scalar_lea.sflag [#allocation3], %s329
        %s331 = sand.u32 %s152, 1
        %s332 = smul.addr %s331, 16
        %s333 = scalar_lea.vmem [#allocation2], %s332
        %p334 = pneg %p193
        %p335 = pneg %p190
        %p336 = scmp.lt.s32.totalorder %s25, 1
        %s337 = scalar_select %p336, %s25, 1
        %p338 = scmp.lt.s32.totalorder %s26, 7
        %s339 = scalar_select %p338, %s26, 7
        %s340 = smul.addr %s337, 8
        %s341 = sadd.s32 %s339, %s340
        %s342 = smul.addr %s341, 8
        %s343 = scalar_lea.vmem %s5, %s342
        %p344 = pneg %p221
        %p345 = pneg %p218
        %p346 = scmp.lt.s32.totalorder %s25, 1
        %s347 = scalar_select %p346, %s25, 1
        %p348 = scmp.lt.s32.totalorder %s26, 7
        %s349 = scalar_select %p348, %s26, 7
        %s350 = smul.addr %s347, 8
        %s351 = sadd.s32 %s349, %s350
        %s352 = smul.addr %s351, 8
        %s353 = scalar_lea.vmem %s6, %s352
        %p354 = scmp.lt.s32.totalorder %s25, 1
        %s355 = scalar_select %p354, %s25, 1
        %p356 = scmp.lt.s32.totalorder %s26, 9
        %s357 = scalar_select %p356, %s26, 9
        %s358 = smul.addr %s357, 54
        %s359 = smul.addr %s355, 540
        %s360 = sadd.s32 %s358, %s359
        %s361 = smul.addr %s360, 8
        %s362 = scalar_lea.vmem %s0, %s361
        %s363 = sadd.s32 %s26, 1
        %p364 = scmp.lt.s32.totalorder %s25, 1
        %s365 = scalar_select %p364, %s25, 1
        %p366 = scmp.lt.s32.totalorder %s363, 9
        %s367 = scalar_select %p366, %s363, 9
        %s368 = smul.addr %s367, 54
        %s369 = smul.addr %s365, 540
        %s370 = sadd.s32 %s368, %s369
        %s371 = smul.addr %s370, 8
        %s372 = scalar_lea.vmem %s1, %s371
        %s373 = sadd.s32 %s26, 1
        %s374 = sadd.s32 %s26, 2
        %p375 = scmp.lt.s32.totalorder %s25, 1
        %s376 = scalar_select %p375, %s25, 1
        %p377 = scmp.lt.s32.totalorder %s374, 9
        %s378 = scalar_select %p377, %s374, 9
        %s379 = smul.addr %s378, 54
        %s380 = smul.addr %s376, 540
        %s381 = sadd.s32 %s379, %s380
        %s382 = smul.addr %s381, 8
        %s383 = scalar_lea.vmem %s2, %s382
        %s384 = sadd.s32 %s26, 2
        %p385 = scmp.lt.s32.totalorder %s25, 1
        %s386 = scalar_select %p385, %s25, 1
        %p387 = scmp.lt.s32.totalorder %s26, 7
        %s388 = scalar_select %p387, %s26, 7
        %s389 = smul.addr %s386, 8
        %s390 = sadd.s32 %s388, %s389
        %s391 = smul.addr %s390, 8
        %s392 = scalar_lea.vmem %s5, %s391
        %p393 = scmp.lt.s32.totalorder %s25, 1
        %s394 = scalar_select %p393, %s25, 1
        %p395 = scmp.lt.s32.totalorder %s26, 7
        %s396 = scalar_select %p395, %s26, 7
        %s397 = smul.addr %s394, 8
        %s398 = sadd.s32 %s396, %s397
        %s399 = smul.addr %s398, 8
        %s400 = scalar_lea.vmem %s6, %s399
        %v401 = vld [vmem:[%s362] sm:$0xff]
        %v402 = vld [vmem:[%s362 + $0x8] sm:$0xff]
        %v403 = vld [vmem:[%s362 + $0x10] sm:$0x3]
        %v404 = vld [vmem:[%s362 + $0x18] sm:$0xff]
        %v405 = vld [vmem:[%s362 + $0x20] sm:$0xff]
        %v406 = vld [vmem:[%s362 + $0x28] sm:$0x3]
        %v407 = vld [vmem:[%s362 + $0x30] sm:$0xff]
        %v408 = vld [vmem:[%s362 + $0x38] sm:$0xff]
        %v409 = vld [vmem:[%s362 + $0x40] sm:$0x3]
        %v410 = vld [vmem:[%s362 + $0x48] sm:$0xff]
        %v411 = vld [vmem:[%s362 + $0x50] sm:$0xff]
        %v412 = vld [vmem:[%s362 + $0x58] sm:$0x3]
        %v413 = vld [vmem:[%s362 + $0x60] sm:$0xff]
        %v414 = vld [vmem:[%s362 + $0x68] sm:$0xff]
        %v415 = vld [vmem:[%s362 + $0x70] sm:$0x3]
        %v416 = vld [vmem:[%s362 + $0x78] sm:$0xff]
        %v417 = vld [vmem:[%s362 + $0x80] sm:$0xff]
        %v418 = vld [vmem:[%s362 + $0x88] sm:$0x3]
        %v419 = vld [vmem:[%s362 + $0x90] sm:$0xff]
        %v420 = vld [vmem:[%s362 + $0x98] sm:$0xff]
        %v421 = vld [vmem:[%s362 + $0xa0] sm:$0x3]
        %v422 = vld [vmem:[%s362 + $0xa8] sm:$0xff]
        %v423 = vld [vmem:[%s362 + $0xb0] sm:$0xff]
        %v424 = vld [vmem:[%s362 + $0xb8] sm:$0x3]
        %v425 = vld [vmem:[%s362 + $0xc0] sm:$0xff]
        %v426 = vld [vmem:[%s362 + $0xc8] sm:$0xff]
        %v427 = vld [vmem:[%s362 + $0xd0] sm:$0x3]
        %v428 = vld [vmem:[%s362 + $0xd8] sm:$0xff]
        %v429 = vld [vmem:[%s362 + $0xe0] sm:$0xff]
        %v430 = vld [vmem:[%s362 + $0xe8] sm:$0x3]
        %v431 = vld [vmem:[%s362 + $0xf0] sm:$0xff]
        %v432 = vld [vmem:[%s362 + $0xf8] sm:$0xff]
        %v433 = vld [vmem:[%s362 + $0x100] sm:$0x3]
        %v434 = vld [vmem:[%s362 + $0x108] sm:$0xff]
        %v435 = vld [vmem:[%s362 + $0x110] sm:$0xff]
        %v436 = vld [vmem:[%s362 + $0x118] sm:$0x3]
        %v437 = vld [vmem:[%s362 + $0x120] sm:$0xff]
        %v438 = vld [vmem:[%s362 + $0x128] sm:$0xff]
        %v439 = vld [vmem:[%s362 + $0x130] sm:$0x3]
        %v440 = vld [vmem:[%s362 + $0x138] sm:$0xff]
        %v441 = vld [vmem:[%s362 + $0x140] sm:$0xff]
        %v442 = vld [vmem:[%s362 + $0x148] sm:$0x3]
        %v443 = vld [vmem:[%s362 + $0x150] sm:$0xff]
        %v444 = vld [vmem:[%s362 + $0x158] sm:$0xff]
        %v445 = vld [vmem:[%s362 + $0x160] sm:$0x3]
        %v446 = vld [vmem:[%s362 + $0x168] sm:$0xff]
        %v447 = vld [vmem:[%s362 + $0x170] sm:$0xff]
        %v448 = vld [vmem:[%s362 + $0x178] sm:$0x3]
        %v449 = vld [vmem:[%s362 + $0x180] sm:$0xff]
        %v450 = vld [vmem:[%s362 + $0x188] sm:$0xff]
        %v451 = vld [vmem:[%s362 + $0x190] sm:$0x3]
        %v452 = vld [vmem:[%s362 + $0x198] sm:$0xff]
        %v453 = vld [vmem:[%s362 + $0x1a0] sm:$0xff]
        %v454 = vld [vmem:[%s362 + $0x1a8] sm:$0x3]
        %v455 = vld [vmem:[%s3] sm:$0xf]
        %vm504 = vcmask 1046528
        %v505 = vrot.slane %v401, 1
        %v506 = vrot.slane %v402, 1
        %v507 = vsel %vm504, %v505, %v506
        %v508 = vrot.slane %v403, 1
        %v509 = vsel %vm504, %v506, %v508
        %v510 = vrot.slane %v404, 1
        %v511 = vrot.slane %v405, 1
        %v512 = vsel %vm504, %v510, %v511
        %v513 = vrot.slane %v406, 1
        %v514 = vsel %vm504, %v511, %v513
        %v515 = vrot.slane %v407, 1
        %v516 = vrot.slane %v408, 1
        %v517 = vsel %vm504, %v515, %v516
        %v518 = vrot.slane %v409, 1
        %v519 = vsel %vm504, %v516, %v518
        %v520 = vrot.slane %v410, 1
        %v521 = vrot.slane %v411, 1
        %v522 = vsel %vm504, %v520, %v521
        %v523 = vrot.slane %v412, 1
        %v524 = vsel %vm504, %v521, %v523
        %v525 = vrot.slane %v413, 1
        %v526 = vrot.slane %v414, 1
        %v527 = vsel %vm504, %v525, %v526
        %v528 = vrot.slane %v415, 1
        %v529 = vsel %vm504, %v526, %v528
        %v530 = vrot.slane %v416, 1
        %v531 = vrot.slane %v417, 1
        %v532 = vsel %vm504, %v530, %v531
        %v533 = vrot.slane %v418, 1
        %v534 = vsel %vm504, %v531, %v533
        %v535 = vrot.slane %v419, 1
        %v536 = vrot.slane %v420, 1
        %v537 = vsel %vm504, %v535, %v536
        %v538 = vrot.slane %v421, 1
        %v539 = vsel %vm504, %v536, %v538
        %v540 = vrot.slane %v422, 1
        %v541 = vrot.slane %v423, 1
        %v542 = vsel %vm504, %v540, %v541
        %v543 = vrot.slane %v424, 1
        %v544 = vsel %vm504, %v541, %v543
        %v545 = vrot.slane %v425, 1
        %v546 = vrot.slane %v426, 1
        %v547 = vsel %vm504, %v545, %v546
        %v548 = vrot.slane %v427, 1
        %v549 = vsel %vm504, %v546, %v548
        %v550 = vrot.slane %v428, 1
        %v551 = vrot.slane %v429, 1
        %v552 = vsel %vm504, %v550, %v551
        %v553 = vrot.slane %v430, 1
        %v554 = vsel %vm504, %v551, %v553
        %v555 = vrot.slane %v431, 1
        %v556 = vrot.slane %v432, 1
        %v557 = vsel %vm504, %v555, %v556
        %v558 = vrot.slane %v433, 1
        %v559 = vsel %vm504, %v556, %v558
        %v560 = vrot.slane %v434, 1
        %v561 = vrot.slane %v435, 1
        %v562 = vsel %vm504, %v560, %v561
        %v563 = vrot.slane %v436, 1
        %v564 = vsel %vm504, %v561, %v563
        %v565 = vrot.slane %v437, 1
        %v566 = vrot.slane %v438, 1
        %v567 = vsel %vm504, %v565, %v566
        %v568 = vrot.slane %v439, 1
        %v569 = vsel %vm504, %v566, %v568
        %v570 = vrot.slane %v440, 1
        %v571 = vrot.slane %v441, 1
        %v572 = vsel %vm504, %v570, %v571
        %v573 = vrot.slane %v442, 1
        %v574 = vsel %vm504, %v571, %v573
        %v575 = vrot.slane %v443, 1
        %v576 = vrot.slane %v444, 1
        %v577 = vsel %vm504, %v575, %v576
        %v578 = vrot.slane %v445, 1
        %v579 = vsel %vm504, %v576, %v578
        %v580 = vrot.slane %v446, 1
        %v581 = vrot.slane %v447, 1
        %v582 = vsel %vm504, %v580, %v581
        %v583 = vrot.slane %v448, 1
        %v584 = vsel %vm504, %v581, %v583
        %s585 = scalar_lea.vmem %s3, 4
        %v586 = vld [vmem:[%s585] sm:$0xf]
        %587 = vxpose.xlu0.b32.start [1/16] %v586, 128
        %588 = vxpose.xlu0.b32.cont [2/16] 0.0, 128
        %589 = vxpose.xlu0.b32.cont [3/16] 0.0, 128
        %590 = vxpose.xlu0.b32.cont [4/16] 0.0, 128
        %591 = vxpose.xlu0.b32.cont [5/16] 0.0, 128
        %592 = vxpose.xlu0.b32.cont [6/16] 0.0, 128
        %593 = vxpose.xlu0.b32.cont [7/16] 0.0, 128
        %594 = vxpose.xlu0.b32.cont [8/16] 0.0, 128
        %595 = vxpose.xlu0.b32.cont [9/16] 0.0, 128
        %596 = vxpose.xlu0.b32.cont [10/16] 0.0, 128
        %597 = vxpose.xlu0.b32.cont [11/16] 0.0, 128
        %598 = vxpose.xlu0.b32.cont [12/16] 0.0, 128
        %599 = vxpose.xlu0.b32.cont [13/16] 0.0, 128
        %600 = vxpose.xlu0.b32.cont [14/16] 0.0, 128
        %601 = vxpose.xlu0.b32.cont [15/16] 0.0, 128
        %602 = vxpose.xlu0.b32.end [16/16] 0.0, 128
        %v603 = vpop.trf.xlu0
        %v604 = vpop.trf.xlu0
        %v605 = vpop.trf.xlu0
        %v606 = vpop.trf.xlu0
        %v607 = vpop.trf.xlu0
        %v608 = vpop.trf.xlu0
        %v609 = vpop.trf.xlu0
        %v610 = vpop.trf.xlu0
        %v611 = vpop.trf.xlu0
        %v612 = vpop.trf.xlu0
        %v613 = vpop.trf.xlu0
        %v614 = vpop.trf.xlu0
        %v615 = vpop.trf.xlu0
        %v616 = vpop.trf.xlu0
        %v617 = vpop.trf.xlu0
        %v618 = vpop.trf.xlu0
        %vm619 = vcmask 31744
        %v621 = vsel %vm619, %v603, 0
        %v623 = vsel %vm619, %v507, 0
        %v625 = vsel %vm619, %v509, 0
        %v627 = vsel %vm619, %v512, 0
        %v629 = vsel %vm619, %v514, 0
        %v631 = vsel %vm619, %v517, 0
        %v633 = vsel %vm619, %v519, 0
        %v635 = vsel %vm619, %v522, 0
        %v637 = vsel %vm619, %v524, 0
        %v639 = vsel %vm619, %v527, 0
        %v641 = vsel %vm619, %v529, 0
        %v643 = vsel %vm619, %v532, 0
        %v645 = vsel %vm619, %v534, 0
        %v647 = vsel %vm619, %v537, 0
        %v649 = vsel %vm619, %v539, 0
        %v651 = vsel %vm619, %v542, 0
        %v653 = vsel %vm619, %v544, 0
        %v655 = vsel %vm619, %v547, 0
        %v657 = vsel %vm619, %v549, 0
        %v659 = vsel %vm619, %v552, 0
        %v661 = vsel %vm619, %v554, 0
        %v663 = vsel %vm619, %v557, 0
        %v665 = vsel %vm619, %v559, 0
        %v667 = vsel %vm619, %v562, 0
        %v669 = vsel %vm619, %v564, 0
        %v671 = vsel %vm619, %v567, 0
        %v673 = vsel %vm619, %v569, 0
        %v675 = vsel %vm619, %v572, 0
        %v677 = vsel %vm619, %v574, 0
        %v679 = vsel %vm619, %v577, 0
        %v681 = vsel %vm619, %v579, 0
        %v683 = vsel %vm619, %v582, 0
        %v685 = vsel %vm619, %v584, 0
        %687 = vmatprep.subr.mxu0 0.0
        %688 = vmatpush1.xpose.msra.mxu0 %v653
        %689 = vmatprep.subr.mxu0 0.0
        %690 = vmatpush1.xpose.msra.mxu0 %v651
        %691 = vmatprep.subr.mxu0 0.0
        %692 = vmatpush1.xpose.msra.mxu0 %v649
        %693 = vmatprep.subr.mxu0 0.0
        %694 = vmatpush1.xpose.msra.mxu0 %v647
        %695 = vmatprep.subr.mxu0 0.0
        %696 = vmatpush1.xpose.msra.mxu0 %v645
        %697 = vmatprep.subr.mxu0 0.0
        %698 = vmatpush1.xpose.msra.mxu0 %v643
        %699 = vmatprep.subr.mxu0 0.0
        %700 = vmatpush1.xpose.msra.mxu0 %v641
        %701 = vmatprep.subr.mxu0 0.0
        %702 = vmatpush1.xpose.msra.mxu0 %v639
        %703 = vmatprep.subr.mxu0 0.0
        %704 = vmatpush1.xpose.msra.mxu0 %v637
        %705 = vmatprep.subr.mxu0 0.0
        %706 = vmatpush1.xpose.msra.mxu0 %v635
        %707 = vmatprep.subr.mxu0 0.0
        %708 = vmatpush1.xpose.msra.mxu0 %v633
        %709 = vmatprep.subr.mxu0 0.0
        %710 = vmatpush1.xpose.msra.mxu0 %v631
        %711 = vmatprep.subr.mxu0 0.0
        %712 = vmatpush1.xpose.msra.mxu0 %v629
        %713 = vmatprep.subr.mxu0 0.0
        %714 = vmatpush1.xpose.msra.mxu0 %v627
        %715 = vmatprep.subr.mxu0 0.0
        %716 = vmatpush1.xpose.msra.mxu0 %v625
        %717 = vmatprep.subr.mxu0 0.0
        %718 = vmatpush1.xpose.msra.mxu0 %v623
        %719 = vmatprep.subr.mxu0 0.0
        %720 = vmatpush2.xpose.msra.mxu0 %v685
        %721 = vmatprep.subr.mxu0 0.0
        %722 = vmatpush2.xpose.msra.mxu0 %v683
        %723 = vmatprep.subr.mxu0 0.0
        %724 = vmatpush2.xpose.msra.mxu0 %v681
        %725 = vmatprep.subr.mxu0 0.0
        %726 = vmatpush2.xpose.msra.mxu0 %v679
        %727 = vmatprep.subr.mxu0 0.0
        %728 = vmatpush2.xpose.msra.mxu0 %v677
        %729 = vmatprep.subr.mxu0 0.0
        %730 = vmatpush2.xpose.msra.mxu0 %v675
        %731 = vmatprep.subr.mxu0 0.0
        %732 = vmatpush2.xpose.msra.mxu0 %v673
        %733 = vmatprep.subr.mxu0 0.0
        %734 = vmatpush2.xpose.msra.mxu0 %v671
        %735 = vmatprep.subr.mxu0 0.0
        %736 = vmatpush2.xpose.msra.mxu0 %v669
        %737 = vmatprep.subr.mxu0 0.0
        %738 = vmatpush2.xpose.msra.mxu0 %v667
        %739 = vmatprep.subr.mxu0 0.0
        %740 = vmatpush2.xpose.msra.mxu0 %v665
        %741 = vmatprep.subr.mxu0 0.0
        %742 = vmatpush2.xpose.msra.mxu0 %v663
        %743 = vmatprep.subr.mxu0 0.0
        %744 = vmatpush2.xpose.msra.mxu0 %v661
        %745 = vmatprep.subr.mxu0 0.0
        %746 = vmatpush2.xpose.msra.mxu0 %v659
        %747 = vmatprep.subr.mxu0 0.0
        %748 = vmatpush2.xpose.msra.mxu0 %v657
        %749 = vmatprep.subr.mxu0 0.0
        %750 = vmatpush2.xpose.msra.mxu0 %v655
        %751 = vmatprep.mubr.f32.mxu0 0.0
        %752 = vmatmul.mubr.f32.gmra.mxu0 %v621
        %v753 = vpop.f32.mrf.mxu0
        %v754 = vadd.f32 0.0, %v753
        %v755 = vpop.f32.mrf.mxu0
        %v756 = vadd.f32 0.0, %v755
        %757 = vdwg.mxu0
        %758 = vxpose.xlu0.b32.start [1/16] %v455, 128
        %759 = vxpose.xlu0.b32.cont [2/16] 0.0, 128
        %760 = vxpose.xlu0.b32.cont [3/16] 0.0, 128
        %761 = vxpose.xlu0.b32.cont [4/16] 0.0, 128
        %762 = vxpose.xlu0.b32.cont [5/16] 0.0, 128
        %763 = vxpose.xlu0.b32.cont [6/16] 0.0, 128
        %764 = vxpose.xlu0.b32.cont [7/16] 0.0, 128
        %765 = vxpose.xlu0.b32.cont [8/16] 0.0, 128
        %766 = vxpose.xlu0.b32.cont [9/16] 0.0, 128
        %767 = vxpose.xlu0.b32.cont [10/16] 0.0, 128
        %768 = vxpose.xlu0.b32.cont [11/16] 0.0, 128
        %769 = vxpose.xlu0.b32.cont [12/16] 0.0, 128
        %770 = vxpose.xlu0.b32.cont [13/16] 0.0, 128
        %771 = vxpose.xlu0.b32.cont [14/16] 0.0, 128
        %772 = vxpose.xlu0.b32.cont [15/16] 0.0, 128
        %773 = vxpose.xlu0.b32.end [16/16] 0.0, 128
        %v774 = vpop.trf.xlu0
        %v775 = vpop.trf.xlu0
        %v776 = vpop.trf.xlu0
        %v777 = vpop.trf.xlu0
        %v778 = vpop.trf.xlu0
        %v779 = vpop.trf.xlu0
        %v780 = vpop.trf.xlu0
        %v781 = vpop.trf.xlu0
        %v782 = vpop.trf.xlu0
        %v783 = vpop.trf.xlu0
        %v784 = vpop.trf.xlu0
        %v785 = vpop.trf.xlu0
        %v786 = vpop.trf.xlu0
        %v787 = vpop.trf.xlu0
        %v788 = vpop.trf.xlu0
        %v789 = vpop.trf.xlu0
        %v791 = vsel %vm619, %v774, 0
        %v793 = vsel %vm619, %v401, 0
        %v795 = vsel %vm619, %v402, 0
        %v797 = vsel %vm619, %v404, 0
        %v799 = vsel %vm619, %v405, 0
        %v801 = vsel %vm619, %v407, 0
        %v803 = vsel %vm619, %v408, 0
        %v805 = vsel %vm619, %v410, 0
        %v807 = vsel %vm619, %v411, 0
        %v809 = vsel %vm619, %v413, 0
        %v811 = vsel %vm619, %v414, 0
        %v813 = vsel %vm619, %v416, 0
        %v815 = vsel %vm619, %v417, 0
        %v817 = vsel %vm619, %v419, 0
        %v819 = vsel %vm619, %v420, 0
        %v821 = vsel %vm619, %v422, 0
        %v823 = vsel %vm619, %v423, 0
        %v825 = vsel %vm619, %v425, 0
        %v827 = vsel %vm619, %v426, 0
        %v829 = vsel %vm619, %v428, 0
        %v831 = vsel %vm619, %v429, 0
        %v833 = vsel %vm619, %v431, 0
        %v835 = vsel %vm619, %v432, 0
        %v837 = vsel %vm619, %v434, 0
        %v839 = vsel %vm619, %v435, 0
        %v841 = vsel %vm619, %v437, 0
        %v843 = vsel %vm619, %v438, 0
        %v845 = vsel %vm619, %v440, 0
        %v847 = vsel %vm619, %v441, 0
        %v849 = vsel %vm619, %v443, 0
        %v851 = vsel %vm619, %v444, 0
        %v853 = vsel %vm619, %v446, 0
        %v855 = vsel %vm619, %v447, 0
        %857 = vmatprep.subr.mxu0 0.0
        %858 = vmatpush1.xpose.msra.mxu0 %v823
        %859 = vmatprep.subr.mxu0 0.0
        %860 = vmatpush1.xpose.msra.mxu0 %v821
        %861 = vmatprep.subr.mxu0 0.0
        %862 = vmatpush1.xpose.msra.mxu0 %v819
        %863 = vmatprep.subr.mxu0 0.0
        %864 = vmatpush1.xpose.msra.mxu0 %v817
        %865 = vmatprep.subr.mxu0 0.0
        %866 = vmatpush1.xpose.msra.mxu0 %v815
        %867 = vmatprep.subr.mxu0 0.0
        %868 = vmatpush1.xpose.msra.mxu0 %v813
        %869 = vmatprep.subr.mxu0 0.0
        %870 = vmatpush1.xpose.msra.mxu0 %v811
        %871 = vmatprep.subr.mxu0 0.0
        %872 = vmatpush1.xpose.msra.mxu0 %v809
        %873 = vmatprep.subr.mxu0 0.0
        %874 = vmatpush1.xpose.msra.mxu0 %v807
        %875 = vmatprep.subr.mxu0 0.0
        %876 = vmatpush1.xpose.msra.mxu0 %v805
        %877 = vmatprep.subr.mxu0 0.0
        %878 = vmatpush1.xpose.msra.mxu0 %v803
        %879 = vmatprep.subr.mxu0 0.0
        %880 = vmatpush1.xpose.msra.mxu0 %v801
        %881 = vmatprep.subr.mxu0 0.0
        %882 = vmatpush1.xpose.msra.mxu0 %v799
        %883 = vmatprep.subr.mxu0 0.0
        %884 = vmatpush1.xpose.msra.mxu0 %v797
        %885 = vmatprep.subr.mxu0 0.0
        %886 = vmatpush1.xpose.msra.mxu0 %v795
        %887 = vmatprep.subr.mxu0 0.0
        %888 = vmatpush1.xpose.msra.mxu0 %v793
        %889 = vmatprep.subr.mxu0 0.0
        %890 = vmatpush2.xpose.msra.mxu0 %v855
        %891 = vmatprep.subr.mxu0 0.0
        %892 = vmatpush2.xpose.msra.mxu0 %v853
        %893 = vmatprep.subr.mxu0 0.0
        %894 = vmatpush2.xpose.msra.mxu0 %v851
        %895 = vmatprep.subr.mxu0 0.0
        %896 = vmatpush2.xpose.msra.mxu0 %v849
        %897 = vmatprep.subr.mxu0 0.0
        %898 = vmatpush2.xpose.msra.mxu0 %v847
        %899 = vmatprep.subr.mxu0 0.0
        %900 = vmatpush2.xpose.msra.mxu0 %v845
        %901 = vmatprep.subr.mxu0 0.0
        %902 = vmatpush2.xpose.msra.mxu0 %v843
        %903 = vmatprep.subr.mxu0 0.0
        %904 = vmatpush2.xpose.msra.mxu0 %v841
        %905 = vmatprep.subr.mxu0 0.0
        %906 = vmatpush2.xpose.msra.mxu0 %v839
        %907 = vmatprep.subr.mxu0 0.0
        %908 = vmatpush2.xpose.msra.mxu0 %v837
        %909 = vmatprep.subr.mxu0 0.0
        %910 = vmatpush2.xpose.msra.mxu0 %v835
        %911 = vmatprep.subr.mxu0 0.0
        %912 = vmatpush2.xpose.msra.mxu0 %v833
        %913 = vmatprep.subr.mxu0 0.0
        %914 = vmatpush2.xpose.msra.mxu0 %v831
        %915 = vmatprep.subr.mxu0 0.0
        %916 = vmatpush2.xpose.msra.mxu0 %v829
        %917 = vmatprep.subr.mxu0 0.0
        %918 = vmatpush2.xpose.msra.mxu0 %v827
        %919 = vmatprep.subr.mxu0 0.0
        %920 = vmatpush2.xpose.msra.mxu0 %v825
        %921 = vmatprep.mubr.f32.mxu0 0.0
        %922 = vmatmul.mubr.f32.gmra.mxu0 %v791
        %v923 = vpop.f32.mrf.mxu0
        %v924 = vadd.f32 %v754, %v923
        %v925 = vpop.f32.mrf.mxu0
        %v926 = vadd.f32 %v756, %v925
        %927 = vdwg.mxu0
        %vm928 = vcmask 1045504
        %v929 = vrot.slane %v401, 2
        %v930 = vrot.slane %v402, 2
        %v931 = vsel %vm928, %v929, %v930
        %v932 = vrot.slane %v403, 2
        %v933 = vsel %vm928, %v930, %v932
        %v934 = vrot.slane %v404, 2
        %v935 = vrot.slane %v405, 2
        %v936 = vsel %vm928, %v934, %v935
        %v937 = vrot.slane %v406, 2
        %v938 = vsel %vm928, %v935, %v937
        %v939 = vrot.slane %v407, 2
        %v940 = vrot.slane %v408, 2
        %v941 = vsel %vm928, %v939, %v940
        %v942 = vrot.slane %v409, 2
        %v943 = vsel %vm928, %v940, %v942
        %v944 = vrot.slane %v410, 2
        %v945 = vrot.slane %v411, 2
        %v946 = vsel %vm928, %v944, %v945
        %v947 = vrot.slane %v412, 2
        %v948 = vsel %vm928, %v945, %v947
        %v949 = vrot.slane %v413, 2
        %v950 = vrot.slane %v414, 2
        %v951 = vsel %vm928, %v949, %v950
        %v952 = vrot.slane %v415, 2
        %v953 = vsel %vm928, %v950, %v952
        %v954 = vrot.slane %v416, 2
        %v955 = vrot.slane %v417, 2
        %v956 = vsel %vm928, %v954, %v955
        %v957 = vrot.slane %v418, 2
        %v958 = vsel %vm928, %v955, %v957
        %v959 = vrot.slane %v419, 2
        %v960 = vrot.slane %v420, 2
        %v961 = vsel %vm928, %v959, %v960
        %v962 = vrot.slane %v421, 2
        %v963 = vsel %vm928, %v960, %v962
        %v964 = vrot.slane %v422, 2
        %v965 = vrot.slane %v423, 2
        %v966 = vsel %vm928, %v964, %v965
        %v967 = vrot.slane %v424, 2
        %v968 = vsel %vm928, %v965, %v967
        %v969 = vrot.slane %v425, 2
        %v970 = vrot.slane %v426, 2
        %v971 = vsel %vm928, %v969, %v970
        %v972 = vrot.slane %v427, 2
        %v973 = vsel %vm928, %v970, %v972
        %v974 = vrot.slane %v428, 2
        %v975 = vrot.slane %v429, 2
        %v976 = vsel %vm928, %v974, %v975
        %v977 = vrot.slane %v430, 2
        %v978 = vsel %vm928, %v975, %v977
        %v979 = vrot.slane %v431, 2
        %v980 = vrot.slane %v432, 2
        %v981 = vsel %vm928, %v979, %v980
        %v982 = vrot.slane %v433, 2
        %v983 = vsel %vm928, %v980, %v982
        %v984 = vrot.slane %v434, 2
        %v985 = vrot.slane %v435, 2
        %v986 = vsel %vm928, %v984, %v985
        %v987 = vrot.slane %v436, 2
        %v988 = vsel %vm928, %v985, %v987
        %v989 = vrot.slane %v437, 2
        %v990 = vrot.slane %v438, 2
        %v991 = vsel %vm928, %v989, %v990
        %v992 = vrot.slane %v439, 2
        %v993 = vsel %vm928, %v990, %v992
        %v994 = vrot.slane %v440, 2
        %v995 = vrot.slane %v441, 2
        %v996 = vsel %vm928, %v994, %v995
        %v997 = vrot.slane %v442, 2
        %v998 = vsel %vm928, %v995, %v997
        %v999 = vrot.slane %v443, 2
        %v1000 = vrot.slane %v444, 2
        %v1001 = vsel %vm928, %v999, %v1000
        %v1002 = vrot.slane %v445, 2
        %v1003 = vsel %vm928, %v1000, %v1002
        %v1004 = vrot.slane %v446, 2
        %v1005 = vrot.slane %v447, 2
        %v1006 = vsel %vm928, %v1004, %v1005
        %v1007 = vrot.slane %v448, 2
        %v1008 = vsel %vm928, %v1005, %v1007
        %s1009 = scalar_lea.vmem %s3, 8
        %v1010 = vld [vmem:[%s1009] sm:$0xf]
        %1011 = vxpose.xlu0.b32.start [1/16] %v1010, 128
        %1012 = vxpose.xlu0.b32.cont [2/16] 0.0, 128
        %1013 = vxpose.xlu0.b32.cont [3/16] 0.0, 128
        %1014 = vxpose.xlu0.b32.cont [4/16] 0.0, 128
        %1015 = vxpose.xlu0.b32.cont [5/16] 0.0, 128
        %1016 = vxpose.xlu0.b32.cont [6/16] 0.0, 128
        %1017 = vxpose.xlu0.b32.cont [7/16] 0.0, 128
        %1018 = vxpose.xlu0.b32.cont [8/16] 0.0, 128
        %1019 = vxpose.xlu0.b32.cont [9/16] 0.0, 128
        %1020 = vxpose.xlu0.b32.cont [10/16] 0.0, 128
        %1021 = vxpose.xlu0.b32.cont [11/16] 0.0, 128
        %1022 = vxpose.xlu0.b32.cont [12/16] 0.0, 128
        %1023 = vxpose.xlu0.b32.cont [13/16] 0.0, 128
        %1024 = vxpose.xlu0.b32.cont [14/16] 0.0, 128
        %1025 = vxpose.xlu0.b32.cont [15/16] 0.0, 128
        %1026 = vxpose.xlu0.b32.end [16/16] 0.0, 128
        %v1027 = vpop.trf.xlu0
        %v1028 = vpop.trf.xlu0
        %v1029 = vpop.trf.xlu0
        %v1030 = vpop.trf.xlu0
        %v1031 = vpop.trf.xlu0
        %v1032 = vpop.trf.xlu0
        %v1033 = vpop.trf.xlu0
        %v1034 = vpop.trf.xlu0
        %v1035 = vpop.trf.xlu0
        %v1036 = vpop.trf.xlu0
        %v1037 = vpop.trf.xlu0
        %v1038 = vpop.trf.xlu0
        %v1039 = vpop.trf.xlu0
        %v1040 = vpop.trf.xlu0
        %v1041 = vpop.trf.xlu0
        %v1042 = vpop.trf.xlu0
        %v1044 = vsel %vm619, %v1027, 0
        %v1046 = vsel %vm619, %v931, 0
        %v1048 = vsel %vm619, %v933, 0
        %v1050 = vsel %vm619, %v936, 0
        %v1052 = vsel %vm619, %v938, 0
        %v1054 = vsel %vm619, %v941, 0
        %v1056 = vsel %vm619, %v943, 0
        %v1058 = vsel %vm619, %v946, 0
        %v1060 = vsel %vm619, %v948, 0
        %v1062 = vsel %vm619, %v951, 0
        %v1064 = vsel %vm619, %v953, 0
        %v1066 = vsel %vm619, %v956, 0
        %v1068 = vsel %vm619, %v958, 0
        %v1070 = vsel %vm619, %v961, 0
        %v1072 = vsel %vm619, %v963, 0
        %v1074 = vsel %vm619, %v966, 0
        %v1076 = vsel %vm619, %v968, 0
        %v1078 = vsel %vm619, %v971, 0
        %v1080 = vsel %vm619, %v973, 0
        %v1082 = vsel %vm619, %v976, 0
        %v1084 = vsel %vm619, %v978, 0
        %v1086 = vsel %vm619, %v981, 0
        %v1088 = vsel %vm619, %v983, 0
        %v1090 = vsel %vm619, %v986, 0
        %v1092 = vsel %vm619, %v988, 0
        %v1094 = vsel %vm619, %v991, 0
        %v1096 = vsel %vm619, %v993, 0
        %v1098 = vsel %vm619, %v996, 0
        %v1100 = vsel %vm619, %v998, 0
        %v1102 = vsel %vm619, %v1001, 0
        %v1104 = vsel %vm619, %v1003, 0
        %v1106 = vsel %vm619, %v1006, 0
        %v1108 = vsel %vm619, %v1008, 0
        %1110 = vmatprep.subr.mxu0 0.0
        %1111 = vmatpush1.xpose.msra.mxu0 %v1076
        %1112 = vmatprep.subr.mxu0 0.0
        %1113 = vmatpush1.xpose.msra.mxu0 %v1074
        %1114 = vmatprep.subr.mxu0 0.0
        %1115 = vmatpush1.xpose.msra.mxu0 %v1072
        %1116 = vmatprep.subr.mxu0 0.0
        %1117 = vmatpush1.xpose.msra.mxu0 %v1070
        %1118 = vmatprep.subr.mxu0 0.0
        %1119 = vmatpush1.xpose.msra.mxu0 %v1068
        %1120 = vmatprep.subr.mxu0 0.0
        %1121 = vmatpush1.xpose.msra.mxu0 %v1066
        %1122 = vmatprep.subr.mxu0 0.0
        %1123 = vmatpush1.xpose.msra.mxu0 %v1064
        %1124 = vmatprep.subr.mxu0 0.0
        %1125 = vmatpush1.xpose.msra.mxu0 %v1062
        %1126 = vmatprep.subr.mxu0 0.0
        %1127 = vmatpush1.xpose.msra.mxu0 %v1060
        %1128 = vmatprep.subr.mxu0 0.0
        %1129 = vmatpush1.xpose.msra.mxu0 %v1058
        %1130 = vmatprep.subr.mxu0 0.0
        %1131 = vmatpush1.xpose.msra.mxu0 %v1056
        %1132 = vmatprep.subr.mxu0 0.0
        %1133 = vmatpush1.xpose.msra.mxu0 %v1054
        %1134 = vmatprep.subr.mxu0 0.0
        %1135 = vmatpush1.xpose.msra.mxu0 %v1052
        %1136 = vmatprep.subr.mxu0 0.0
        %1137 = vmatpush1.xpose.msra.mxu0 %v1050
        %1138 = vmatprep.subr.mxu0 0.0
        %1139 = vmatpush1.xpose.msra.mxu0 %v1048
        %1140 = vmatprep.subr.mxu0 0.0
        %1141 = vmatpush1.xpose.msra.mxu0 %v1046
        %1142 = vmatprep.subr.mxu0 0.0
        %1143 = vmatpush2.xpose.msra.mxu0 %v1108
        %1144 = vmatprep.subr.mxu0 0.0
        %1145 = vmatpush2.xpose.msra.mxu0 %v1106
        %1146 = vmatprep.subr.mxu0 0.0
        %1147 = vmatpush2.xpose.msra.mxu0 %v1104
        %1148 = vmatprep.subr.mxu0 0.0
        %1149 = vmatpush2.xpose.msra.mxu0 %v1102
        %1150 = vmatprep.subr.mxu0 0.0
        %1151 = vmatpush2.xpose.msra.mxu0 %v1100
        %1152 = vmatprep.subr.mxu0 0.0
        %1153 = vmatpush2.xpose.msra.mxu0 %v1098
        %1154 = vmatprep.subr.mxu0 0.0
        %1155 = vmatpush2.xpose.msra.mxu0 %v1096
        %1156 = vmatprep.subr.mxu0 0.0
        %1157 = vmatpush2.xpose.msra.mxu0 %v1094
        %1158 = vmatprep.subr.mxu0 0.0
        %1159 = vmatpush2.xpose.msra.mxu0 %v1092
        %1160 = vmatprep.subr.mxu0 0.0
        %1161 = vmatpush2.xpose.msra.mxu0 %v1090
        %1162 = vmatprep.subr.mxu0 0.0
        %1163 = vmatpush2.xpose.msra.mxu0 %v1088
        %1164 = vmatprep.subr.mxu0 0.0
        %1165 = vmatpush2.xpose.msra.mxu0 %v1086
        %1166 = vmatprep.subr.mxu0 0.0
        %1167 = vmatpush2.xpose.msra.mxu0 %v1084
        %1168 = vmatprep.subr.mxu0 0.0
        %1169 = vmatpush2.xpose.msra.mxu0 %v1082
        %1170 = vmatprep.subr.mxu0 0.0
        %1171 = vmatpush2.xpose.msra.mxu0 %v1080
        %1172 = vmatprep.subr.mxu0 0.0
        %1173 = vmatpush2.xpose.msra.mxu0 %v1078
        %1174 = vmatprep.mubr.f32.mxu0 0.0
        %1175 = vmatmul.mubr.f32.gmra.mxu0 %v1044
        %v1176 = vpop.f32.mrf.mxu0
        %v1177 = vadd.f32 0.0, %v1176
        %v1178 = vpop.f32.mrf.mxu0
        %v1179 = vadd.f32 0.0, %v1178
        %1180 = vdwg.mxu0
        %v1181 = vadd.f32 %v924, %v1177
        %v1182 = vadd.f32 %v926, %v1179
        %s1183 = scalar_lea.vmem %s3, 12
        %v1184 = vld [vmem:[%s1183] sm:$0xf]
        %1185 = vxpose.xlu0.b32.start [1/16] %v1184, 128
        %1186 = vxpose.xlu0.b32.cont [2/16] 0.0, 128
        %1187 = vxpose.xlu0.b32.cont [3/16] 0.0, 128
        %1188 = vxpose.xlu0.b32.cont [4/16] 0.0, 128
        %1189 = vxpose.xlu0.b32.cont [5/16] 0.0, 128
        %1190 = vxpose.xlu0.b32.cont [6/16] 0.0, 128
        %1191 = vxpose.xlu0.b32.cont [7/16] 0.0, 128
        %1192 = vxpose.xlu0.b32.cont [8/16] 0.0, 128
        %1193 = vxpose.xlu0.b32.cont [9/16] 0.0, 128
        %1194 = vxpose.xlu0.b32.cont [10/16] 0.0, 128
        %1195 = vxpose.xlu0.b32.cont [11/16] 0.0, 128
        %1196 = vxpose.xlu0.b32.cont [12/16] 0.0, 128
        %1197 = vxpose.xlu0.b32.cont [13/16] 0.0, 128
        %1198 = vxpose.xlu0.b32.cont [14/16] 0.0, 128
        %1199 = vxpose.xlu0.b32.cont [15/16] 0.0, 128
        %1200 = vxpose.xlu0.b32.end [16/16] 0.0, 128
        %v1201 = vpop.trf.xlu0
        %v1202 = vpop.trf.xlu0
        %v1203 = vpop.trf.xlu0
        %v1204 = vpop.trf.xlu0
        %v1205 = vpop.trf.xlu0
        %v1206 = vpop.trf.xlu0
        %v1207 = vpop.trf.xlu0
        %v1208 = vpop.trf.xlu0
        %v1209 = vpop.trf.xlu0
        %v1210 = vpop.trf.xlu0
        %v1211 = vpop.trf.xlu0
        %v1212 = vpop.trf.xlu0
        %v1213 = vpop.trf.xlu0
        %v1214 = vpop.trf.xlu0
        %v1215 = vpop.trf.xlu0
        %v1216 = vpop.trf.xlu0
        %v1218 = vsel %vm619, %v1201, 0
        %v1221 = vsel %vm619, %v449, 0
        %v1224 = vsel %vm619, %v450, 0
        %1226 = vmatprep.subr.mxu0 0.0
        %1227 = vmatpush1.xpose.msra.mxu0 %v827
        %1228 = vmatprep.subr.mxu0 0.0
        %1229 = vmatpush1.xpose.msra.mxu0 %v825
        %1230 = vmatprep.subr.mxu0 0.0
        %1231 = vmatpush1.xpose.msra.mxu0 %v823
        %1232 = vmatprep.subr.mxu0 0.0
        %1233 = vmatpush1.xpose.msra.mxu0 %v821
        %1234 = vmatprep.subr.mxu0 0.0
        %1235 = vmatpush1.xpose.msra.mxu0 %v819
        %1236 = vmatprep.subr.mxu0 0.0
        %1237 = vmatpush1.xpose.msra.mxu0 %v817
        %1238 = vmatprep.subr.mxu0 0.0
        %1239 = vmatpush1.xpose.msra.mxu0 %v815
        %1240 = vmatprep.subr.mxu0 0.0
        %1241 = vmatpush1.xpose.msra.mxu0 %v813
        %1242 = vmatprep.subr.mxu0 0.0
        %1243 = vmatpush1.xpose.msra.mxu0 %v811
        %1244 = vmatprep.subr.mxu0 0.0
        %1245 = vmatpush1.xpose.msra.mxu0 %v809
        %1246 = vmatprep.subr.mxu0 0.0
        %1247 = vmatpush1.xpose.msra.mxu0 %v807
        %1248 = vmatprep.subr.mxu0 0.0
        %1249 = vmatpush1.xpose.msra.mxu0 %v805
        %1250 = vmatprep.subr.mxu0 0.0
        %1251 = vmatpush1.xpose.msra.mxu0 %v803
        %1252 = vmatprep.subr.mxu0 0.0
        %1253 = vmatpush1.xpose.msra.mxu0 %v801
        %1254 = vmatprep.subr.mxu0 0.0
        %1255 = vmatpush1.xpose.msra.mxu0 %v799
        %1256 = vmatprep.subr.mxu0 0.0
        %1257 = vmatpush1.xpose.msra.mxu0 %v797
        %1258 = vmatprep.subr.mxu0 0.0
        %1259 = vmatpush2.xpose.msra.mxu0 %v1224
        %1260 = vmatprep.subr.mxu0 0.0
        %1261 = vmatpush2.xpose.msra.mxu0 %v1221
        %1262 = vmatprep.subr.mxu0 0.0
        %1263 = vmatpush2.xpose.msra.mxu0 %v855
        %1264 = vmatprep.subr.mxu0 0.0
        %1265 = vmatpush2.xpose.msra.mxu0 %v853
        %1266 = vmatprep.subr.mxu0 0.0
        %1267 = vmatpush2.xpose.msra.mxu0 %v851
        %1268 = vmatprep.subr.mxu0 0.0
        %1269 = vmatpush2.xpose.msra.mxu0 %v849
        %1270 = vmatprep.subr.mxu0 0.0
        %1271 = vmatpush2.xpose.msra.mxu0 %v847
        %1272 = vmatprep.subr.mxu0 0.0
        %1273 = vmatpush2.xpose.msra.mxu0 %v845
        %1274 = vmatprep.subr.mxu0 0.0
        %1275 = vmatpush2.xpose.msra.mxu0 %v843
        %1276 = vmatprep.subr.mxu0 0.0
        %1277 = vmatpush2.xpose.msra.mxu0 %v841
        %1278 = vmatprep.subr.mxu0 0.0
        %1279 = vmatpush2.xpose.msra.mxu0 %v839
        %1280 = vmatprep.subr.mxu0 0.0
        %1281 = vmatpush2.xpose.msra.mxu0 %v837
        %1282 = vmatprep.subr.mxu0 0.0
        %1283 = vmatpush2.xpose.msra.mxu0 %v835
        %1284 = vmatprep.subr.mxu0 0.0
        %1285 = vmatpush2.xpose.msra.mxu0 %v833
        %1286 = vmatprep.subr.mxu0 0.0
        %1287 = vmatpush2.xpose.msra.mxu0 %v831
        %1288 = vmatprep.subr.mxu0 0.0
        %1289 = vmatpush2.xpose.msra.mxu0 %v829
        %1290 = vmatprep.mubr.f32.mxu0 0.0
        %1291 = vmatmul.mubr.f32.gmra.mxu0 %v1218
        %v1292 = vpop.f32.mrf.mxu0
        %v1293 = vadd.f32 0.0, %v1292
        %v1294 = vpop.f32.mrf.mxu0
        %v1295 = vadd.f32 0.0, %v1294
        %1296 = vdwg.mxu0
        %v1297 = vadd.f32 %v1181, %v1293
        %v1298 = vadd.f32 %v1182, %v1295
        %v1300 = vrot.slane %v449, 1
        %v1301 = vrot.slane %v450, 1
        %v1302 = vsel %vm504, %v1300, %v1301
        %v1303 = vrot.slane %v451, 1
        %v1304 = vsel %vm504, %v1301, %v1303
        %s1305 = scalar_lea.vmem %s3, 16
        %v1306 = vld [vmem:[%s1305] sm:$0xf]
        %1307 = vxpose.xlu0.b32.start [1/16] %v1306, 128
        %1308 = vxpose.xlu0.b32.cont [2/16] 0.0, 128
        %1309 = vxpose.xlu0.b32.cont [3/16] 0.0, 128
        %1310 = vxpose.xlu0.b32.cont [4/16] 0.0, 128
        %1311 = vxpose.xlu0.b32.cont [5/16] 0.0, 128
        %1312 = vxpose.xlu0.b32.cont [6/16] 0.0, 128
        %1313 = vxpose.xlu0.b32.cont [7/16] 0.0, 128
        %1314 = vxpose.xlu0.b32.cont [8/16] 0.0, 128
        %1315 = vxpose.xlu0.b32.cont [9/16] 0.0, 128
        %1316 = vxpose.xlu0.b32.cont [10/16] 0.0, 128
        %1317 = vxpose.xlu0.b32.cont [11/16] 0.0, 128
        %1318 = vxpose.xlu0.b32.cont [12/16] 0.0, 128
        %1319 = vxpose.xlu0.b32.cont [13/16] 0.0, 128
        %1320 = vxpose.xlu0.b32.cont [14/16] 0.0, 128
        %1321 = vxpose.xlu0.b32.cont [15/16] 0.0, 128
        %1322 = vxpose.xlu0.b32.end [16/16] 0.0, 128
        %v1323 = vpop.trf.xlu0
        %v1324 = vpop.trf.xlu0
        %v1325 = vpop.trf.xlu0
        %v1326 = vpop.trf.xlu0
        %v1327 = vpop.trf.xlu0
        %v1328 = vpop.trf.xlu0
        %v1329 = vpop.trf.xlu0
        %v1330 = vpop.trf.xlu0
        %v1331 = vpop.trf.xlu0
        %v1332 = vpop.trf.xlu0
        %v1333 = vpop.trf.xlu0
        %v1334 = vpop.trf.xlu0
        %v1335 = vpop.trf.xlu0
        %v1336 = vpop.trf.xlu0
        %v1337 = vpop.trf.xlu0
        %v1338 = vpop.trf.xlu0
        %v1340 = vsel %vm619, %v1323, 0
        %v1342 = vsel %vm619, %v1302, 0
        %v1344 = vsel %vm619, %v1304, 0
        %1346 = vmatprep.subr.mxu0 0.0
        %1347 = vmatpush1.xpose.msra.mxu0 %v657
        %1348 = vmatprep.subr.mxu0 0.0
        %1349 = vmatpush1.xpose.msra.mxu0 %v655
        %1350 = vmatprep.subr.mxu0 0.0
        %1351 = vmatpush1.xpose.msra.mxu0 %v653
        %1352 = vmatprep.subr.mxu0 0.0
        %1353 = vmatpush1.xpose.msra.mxu0 %v651
        %1354 = vmatprep.subr.mxu0 0.0
        %1355 = vmatpush1.xpose.msra.mxu0 %v649
        %1356 = vmatprep.subr.mxu0 0.0
        %1357 = vmatpush1.xpose.msra.mxu0 %v647
        %1358 = vmatprep.subr.mxu0 0.0
        %1359 = vmatpush1.xpose.msra.mxu0 %v645
        %1360 = vmatprep.subr.mxu0 0.0
        %1361 = vmatpush1.xpose.msra.mxu0 %v643
        %1362 = vmatprep.subr.mxu0 0.0
        %1363 = vmatpush1.xpose.msra.mxu0 %v641
        %1364 = vmatprep.subr.mxu0 0.0
        %1365 = vmatpush1.xpose.msra.mxu0 %v639
        %1366 = vmatprep.subr.mxu0 0.0
        %1367 = vmatpush1.xpose.msra.mxu0 %v637
        %1368 = vmatprep.subr.mxu0 0.0
        %1369 = vmatpush1.xpose.msra.mxu0 %v635
        %1370 = vmatprep.subr.mxu0 0.0
        %1371 = vmatpush1.xpose.msra.mxu0 %v633
        %1372 = vmatprep.subr.mxu0 0.0
        %1373 = vmatpush1.xpose.msra.mxu0 %v631
        %1374 = vmatprep.subr.mxu0 0.0
        %1375 = vmatpush1.xpose.msra.mxu0 %v629
        %1376 = vmatprep.subr.mxu0 0.0
        %1377 = vmatpush1.xpose.msra.mxu0 %v627
        %1378 = vmatprep.subr.mxu0 0.0
        %1379 = vmatpush2.xpose.msra.mxu0 %v1344
        %1380 = vmatprep.subr.mxu0 0.0
        %1381 = vmatpush2.xpose.msra.mxu0 %v1342
        %1382 = vmatprep.subr.mxu0 0.0
        %1383 = vmatpush2.xpose.msra.mxu0 %v685
        %1384 = vmatprep.subr.mxu0 0.0
        %1385 = vmatpush2.xpose.msra.mxu0 %v683
        %1386 = vmatprep.subr.mxu0 0.0
        %1387 = vmatpush2.xpose.msra.mxu0 %v681
        %1388 = vmatprep.subr.mxu0 0.0
        %1389 = vmatpush2.xpose.msra.mxu0 %v679
        %1390 = vmatprep.subr.mxu0 0.0
        %1391 = vmatpush2.xpose.msra.mxu0 %v677
        %1392 = vmatprep.subr.mxu0 0.0
        %1393 = vmatpush2.xpose.msra.mxu0 %v675
        %1394 = vmatprep.subr.mxu0 0.0
        %1395 = vmatpush2.xpose.msra.mxu0 %v673
        %1396 = vmatprep.subr.mxu0 0.0
        %1397 = vmatpush2.xpose.msra.mxu0 %v671
        %1398 = vmatprep.subr.mxu0 0.0
        %1399 = vmatpush2.xpose.msra.mxu0 %v669
        %1400 = vmatprep.subr.mxu0 0.0
        %1401 = vmatpush2.xpose.msra.mxu0 %v667
        %1402 = vmatprep.subr.mxu0 0.0
        %1403 = vmatpush2.xpose.msra.mxu0 %v665
        %1404 = vmatprep.subr.mxu0 0.0
        %1405 = vmatpush2.xpose.msra.mxu0 %v663
        %1406 = vmatprep.subr.mxu0 0.0
        %1407 = vmatpush2.xpose.msra.mxu0 %v661
        %1408 = vmatprep.subr.mxu0 0.0
        %1409 = vmatpush2.xpose.msra.mxu0 %v659
        %1410 = vmatprep.mubr.f32.mxu0 0.0
        %1411 = vmatmul.mubr.f32.gmra.mxu0 %v1340
        %v1412 = vpop.f32.mrf.mxu0
        %v1413 = vadd.f32 0.0, %v1412
        %v1414 = vpop.f32.mrf.mxu0
        %v1415 = vadd.f32 0.0, %v1414
        %1416 = vdwg.mxu0
        %v1417 = vadd.f32 %v1297, %v1413
        %v1418 = vadd.f32 %v1298, %v1415
        %v1419 = vrot.slane %v449, 2
        %v1420 = vrot.slane %v450, 2
        %v1421 = vsel %vm928, %v1419, %v1420
        %v1422 = vrot.slane %v451, 2
        %v1423 = vsel %vm928, %v1420, %v1422
        %s1424 = scalar_lea.vmem %s3, 20
        %v1425 = vld [vmem:[%s1424] sm:$0xf]
        %1426 = vxpose.xlu0.b32.start [1/16] %v1425, 128
        %1427 = vxpose.xlu0.b32.cont [2/16] 0.0, 128
        %1428 = vxpose.xlu0.b32.cont [3/16] 0.0, 128
        %1429 = vxpose.xlu0.b32.cont [4/16] 0.0, 128
        %1430 = vxpose.xlu0.b32.cont [5/16] 0.0, 128
        %1431 = vxpose.xlu0.b32.cont [6/16] 0.0, 128
        %1432 = vxpose.xlu0.b32.cont [7/16] 0.0, 128
        %1433 = vxpose.xlu0.b32.cont [8/16] 0.0, 128
        %1434 = vxpose.xlu0.b32.cont [9/16] 0.0, 128
        %1435 = vxpose.xlu0.b32.cont [10/16] 0.0, 128
        %1436 = vxpose.xlu0.b32.cont [11/16] 0.0, 128
        %1437 = vxpose.xlu0.b32.cont [12/16] 0.0, 128
        %1438 = vxpose.xlu0.b32.cont [13/16] 0.0, 128
        %1439 = vxpose.xlu0.b32.cont [14/16] 0.0, 128
        %1440 = vxpose.xlu0.b32.cont [15/16] 0.0, 128
        %1441 = vxpose.xlu0.b32.end [16/16] 0.0, 128
        %v1442 = vpop.trf.xlu0
        %v1443 = vpop.trf.xlu0
        %v1444 = vpop.trf.xlu0
        %v1445 = vpop.trf.xlu0
        %v1446 = vpop.trf.xlu0
        %v1447 = vpop.trf.xlu0
        %v1448 = vpop.trf.xlu0
        %v1449 = vpop.trf.xlu0
        %v1450 = vpop.trf.xlu0
        %v1451 = vpop.trf.xlu0
        %v1452 = vpop.trf.xlu0
        %v1453 = vpop.trf.xlu0
        %v1454 = vpop.trf.xlu0
        %v1455 = vpop.trf.xlu0
        %v1456 = vpop.trf.xlu0
        %v1457 = vpop.trf.xlu0
        %v1459 = vsel %vm619, %v1442, 0
        %v1461 = vsel %vm619, %v1421, 0
        %v1463 = vsel %vm619, %v1423, 0
        %1465 = vmatprep.subr.mxu0 0.0
        %1466 = vmatpush1.xpose.msra.mxu0 %v1080
        %1467 = vmatprep.subr.mxu0 0.0
        %1468 = vmatpush1.xpose.msra.mxu0 %v1078
        %1469 = vmatprep.subr.mxu0 0.0
        %1470 = vmatpush1.xpose.msra.mxu0 %v1076
        %1471 = vmatprep.subr.mxu0 0.0
        %1472 = vmatpush1.xpose.msra.mxu0 %v1074
        %1473 = vmatprep.subr.mxu0 0.0
        %1474 = vmatpush1.xpose.msra.mxu0 %v1072
        %1475 = vmatprep.subr.mxu0 0.0
        %1476 = vmatpush1.xpose.msra.mxu0 %v1070
        %1477 = vmatprep.subr.mxu0 0.0
        %1478 = vmatpush1.xpose.msra.mxu0 %v1068
        %1479 = vmatprep.subr.mxu0 0.0
        %1480 = vmatpush1.xpose.msra.mxu0 %v1066
        %1481 = vmatprep.subr.mxu0 0.0
        %1482 = vmatpush1.xpose.msra.mxu0 %v1064
        %1483 = vmatprep.subr.mxu0 0.0
        %1484 = vmatpush1.xpose.msra.mxu0 %v1062
        %1485 = vmatprep.subr.mxu0 0.0
        %1486 = vmatpush1.xpose.msra.mxu0 %v1060
        %1487 = vmatprep.subr.mxu0 0.0
        %1488 = vmatpush1.xpose.msra.mxu0 %v1058
        %1489 = vmatprep.subr.mxu0 0.0
        %1490 = vmatpush1.xpose.msra.mxu0 %v1056
        %1491 = vmatprep.subr.mxu0 0.0
        %1492 = vmatpush1.xpose.msra.mxu0 %v1054
        %1493 = vmatprep.subr.mxu0 0.0
        %1494 = vmatpush1.xpose.msra.mxu0 %v1052
        %1495 = vmatprep.subr.mxu0 0.0
        %1496 = vmatpush1.xpose.msra.mxu0 %v1050
        %1497 = vmatprep.subr.mxu0 0.0
        %1498 = vmatpush2.xpose.msra.mxu0 %v1463
        %1499 = vmatprep.subr.mxu0 0.0
        %1500 = vmatpush2.xpose.msra.mxu0 %v1461
        %1501 = vmatprep.subr.mxu0 0.0
        %1502 = vmatpush2.xpose.msra.mxu0 %v1108
        %1503 = vmatprep.subr.mxu0 0.0
        %1504 = vmatpush2.xpose.msra.mxu0 %v1106
        %1505 = vmatprep.subr.mxu0 0.0
        %1506 = vmatpush2.xpose.msra.mxu0 %v1104
        %1507 = vmatprep.subr.mxu0 0.0
        %1508 = vmatpush2.xpose.msra.mxu0 %v1102
        %1509 = vmatprep.subr.mxu0 0.0
        %1510 = vmatpush2.xpose.msra.mxu0 %v1100
        %1511 = vmatprep.subr.mxu0 0.0
        %1512 = vmatpush2.xpose.msra.mxu0 %v1098
        %1513 = vmatprep.subr.mxu0 0.0
        %1514 = vmatpush2.xpose.msra.mxu0 %v1096
        %1515 = vmatprep.subr.mxu0 0.0
        %1516 = vmatpush2.xpose.msra.mxu0 %v1094
        %1517 = vmatprep.subr.mxu0 0.0
        %1518 = vmatpush2.xpose.msra.mxu0 %v1092
        %1519 = vmatprep.subr.mxu0 0.0
        %1520 = vmatpush2.xpose.msra.mxu0 %v1090
        %1521 = vmatprep.subr.mxu0 0.0
        %1522 = vmatpush2.xpose.msra.mxu0 %v1088
        %1523 = vmatprep.subr.mxu0 0.0
        %1524 = vmatpush2.xpose.msra.mxu0 %v1086
        %1525 = vmatprep.subr.mxu0 0.0
        %1526 = vmatpush2.xpose.msra.mxu0 %v1084
        %1527 = vmatprep.subr.mxu0 0.0
        %1528 = vmatpush2.xpose.msra.mxu0 %v1082
        %1529 = vmatprep.mubr.f32.mxu0 0.0
        %1530 = vmatmul.mubr.f32.gmra.mxu0 %v1459
        %v1531 = vpop.f32.mrf.mxu0
        %v1532 = vadd.f32 0.0, %v1531
        %v1533 = vpop.f32.mrf.mxu0
        %v1534 = vadd.f32 0.0, %v1533
        %1535 = vdwg.mxu0
        %v1536 = vadd.f32 %v1417, %v1532
        %v1537 = vadd.f32 %v1418, %v1534
        %s1538 = scalar_lea.vmem %s3, 24
        %v1539 = vld [vmem:[%s1538] sm:$0xf]
        %1540 = vxpose.xlu0.b32.start [1/16] %v1539, 128
        %1541 = vxpose.xlu0.b32.cont [2/16] 0.0, 128
        %1542 = vxpose.xlu0.b32.cont [3/16] 0.0, 128
        %1543 = vxpose.xlu0.b32.cont [4/16] 0.0, 128
        %1544 = vxpose.xlu0.b32.cont [5/16] 0.0, 128
        %1545 = vxpose.xlu0.b32.cont [6/16] 0.0, 128
        %1546 = vxpose.xlu0.b32.cont [7/16] 0.0, 128
        %1547 = vxpose.xlu0.b32.cont [8/16] 0.0, 128
        %1548 = vxpose.xlu0.b32.cont [9/16] 0.0, 128
        %1549 = vxpose.xlu0.b32.cont [10/16] 0.0, 128
        %1550 = vxpose.xlu0.b32.cont [11/16] 0.0, 128
        %1551 = vxpose.xlu0.b32.cont [12/16] 0.0, 128
        %1552 = vxpose.xlu0.b32.cont [13/16] 0.0, 128
        %1553 = vxpose.xlu0.b32.cont [14/16] 0.0, 128
        %1554 = vxpose.xlu0.b32.cont [15/16] 0.0, 128
        %1555 = vxpose.xlu0.b32.end [16/16] 0.0, 128
        %v1556 = vpop.trf.xlu0
        %v1557 = vpop.trf.xlu0
        %v1558 = vpop.trf.xlu0
        %v1559 = vpop.trf.xlu0
        %v1560 = vpop.trf.xlu0
        %v1561 = vpop.trf.xlu0
        %v1562 = vpop.trf.xlu0
        %v1563 = vpop.trf.xlu0
        %v1564 = vpop.trf.xlu0
        %v1565 = vpop.trf.xlu0
        %v1566 = vpop.trf.xlu0
        %v1567 = vpop.trf.xlu0
        %v1568 = vpop.trf.xlu0
        %v1569 = vpop.trf.xlu0
        %v1570 = vpop.trf.xlu0
        %v1571 = vpop.trf.xlu0
        %v1573 = vsel %vm619, %v1556, 0
        %v1576 = vsel %vm619, %v452, 0
        %v1579 = vsel %vm619, %v453, 0
        %1581 = vmatprep.subr.mxu0 0.0
        %1582 = vmatpush1.xpose.msra.mxu0 %v831
        %1583 = vmatprep.subr.mxu0 0.0
        %1584 = vmatpush1.xpose.msra.mxu0 %v829
        %1585 = vmatprep.subr.mxu0 0.0
        %1586 = vmatpush1.xpose.msra.mxu0 %v827
        %1587 = vmatprep.subr.mxu0 0.0
        %1588 = vmatpush1.xpose.msra.mxu0 %v825
        %1589 = vmatprep.subr.mxu0 0.0
        %1590 = vmatpush1.xpose.msra.mxu0 %v823
        %1591 = vmatprep.subr.mxu0 0.0
        %1592 = vmatpush1.xpose.msra.mxu0 %v821
        %1593 = vmatprep.subr.mxu0 0.0
        %1594 = vmatpush1.xpose.msra.mxu0 %v819
        %1595 = vmatprep.subr.mxu0 0.0
        %1596 = vmatpush1.xpose.msra.mxu0 %v817
        %1597 = vmatprep.subr.mxu0 0.0
        %1598 = vmatpush1.xpose.msra.mxu0 %v815
        %1599 = vmatprep.subr.mxu0 0.0
        %1600 = vmatpush1.xpose.msra.mxu0 %v813
        %1601 = vmatprep.subr.mxu0 0.0
        %1602 = vmatpush1.xpose.msra.mxu0 %v811
        %1603 = vmatprep.subr.mxu0 0.0
        %1604 = vmatpush1.xpose.msra.mxu0 %v809
        %1605 = vmatprep.subr.mxu0 0.0
        %1606 = vmatpush1.xpose.msra.mxu0 %v807
        %1607 = vmatprep.subr.mxu0 0.0
        %1608 = vmatpush1.xpose.msra.mxu0 %v805
        %1609 = vmatprep.subr.mxu0 0.0
        %1610 = vmatpush1.xpose.msra.mxu0 %v803
        %1611 = vmatprep.subr.mxu0 0.0
        %1612 = vmatpush1.xpose.msra.mxu0 %v801
        %1613 = vmatprep.subr.mxu0 0.0
        %1614 = vmatpush2.xpose.msra.mxu0 %v1579
        %1615 = vmatprep.subr.mxu0 0.0
        %1616 = vmatpush2.xpose.msra.mxu0 %v1576
        %1617 = vmatprep.subr.mxu0 0.0
        %1618 = vmatpush2.xpose.msra.mxu0 %v1224
        %1619 = vmatprep.subr.mxu0 0.0
        %1620 = vmatpush2.xpose.msra.mxu0 %v1221
        %1621 = vmatprep.subr.mxu0 0.0
        %1622 = vmatpush2.xpose.msra.mxu0 %v855
        %1623 = vmatprep.subr.mxu0 0.0
        %1624 = vmatpush2.xpose.msra.mxu0 %v853
        %1625 = vmatprep.subr.mxu0 0.0
        %1626 = vmatpush2.xpose.msra.mxu0 %v851
        %1627 = vmatprep.subr.mxu0 0.0
        %1628 = vmatpush2.xpose.msra.mxu0 %v849
        %1629 = vmatprep.subr.mxu0 0.0
        %1630 = vmatpush2.xpose.msra.mxu0 %v847
        %1631 = vmatprep.subr.mxu0 0.0
        %1632 = vmatpush2.xpose.msra.mxu0 %v845
        %1633 = vmatprep.subr.mxu0 0.0
        %1634 = vmatpush2.xpose.msra.mxu0 %v843
        %1635 = vmatprep.subr.mxu0 0.0
        %1636 = vmatpush2.xpose.msra.mxu0 %v841
        %1637 = vmatprep.subr.mxu0 0.0
        %1638 = vmatpush2.xpose.msra.mxu0 %v839
        %1639 = vmatprep.subr.mxu0 0.0
        %1640 = vmatpush2.xpose.msra.mxu0 %v837
        %1641 = vmatprep.subr.mxu0 0.0
        %1642 = vmatpush2.xpose.msra.mxu0 %v835
        %1643 = vmatprep.subr.mxu0 0.0
        %1644 = vmatpush2.xpose.msra.mxu0 %v833
        %1645 = vmatprep.mubr.f32.mxu0 0.0
        %1646 = vmatmul.mubr.f32.gmra.mxu0 %v1573
        %v1647 = vpop.f32.mrf.mxu0
        %v1648 = vadd.f32 0.0, %v1647
        %v1649 = vpop.f32.mrf.mxu0
        %v1650 = vadd.f32 0.0, %v1649
        %1651 = vdwg.mxu0
        %v1652 = vadd.f32 %v1536, %v1648
        %v1653 = vadd.f32 %v1537, %v1650
        %v1655 = vrot.slane %v452, 1
        %v1656 = vrot.slane %v453, 1
        %v1657 = vsel %vm504, %v1655, %v1656
        %v1658 = vrot.slane %v454, 1
        %v1659 = vsel %vm504, %v1656, %v1658
        %s1660 = scalar_lea.vmem %s3, 28
        %v1661 = vld [vmem:[%s1660] sm:$0xf]
        %1662 = vxpose.xlu0.b32.start [1/16] %v1661, 128
        %1663 = vxpose.xlu0.b32.cont [2/16] 0.0, 128
        %1664 = vxpose.xlu0.b32.cont [3/16] 0.0, 128
        %1665 = vxpose.xlu0.b32.cont [4/16] 0.0, 128
        %1666 = vxpose.xlu0.b32.cont [5/16] 0.0, 128
        %1667 = vxpose.xlu0.b32.cont [6/16] 0.0, 128
        %1668 = vxpose.xlu0.b32.cont [7/16] 0.0, 128
        %1669 = vxpose.xlu0.b32.cont [8/16] 0.0, 128
        %1670 = vxpose.xlu0.b32.cont [9/16] 0.0, 128
        %1671 = vxpose.xlu0.b32.cont [10/16] 0.0, 128
        %1672 = vxpose.xlu0.b32.cont [11/16] 0.0, 128
        %1673 = vxpose.xlu0.b32.cont [12/16] 0.0, 128
        %1674 = vxpose.xlu0.b32.cont [13/16] 0.0, 128
        %1675 = vxpose.xlu0.b32.cont [14/16] 0.0, 128
        %1676 = vxpose.xlu0.b32.cont [15/16] 0.0, 128
        %1677 = vxpose.xlu0.b32.end [16/16] 0.0, 128
        %v1678 = vpop.trf.xlu0
        %v1679 = vpop.trf.xlu0
        %v1680 = vpop.trf.xlu0
        %v1681 = vpop.trf.xlu0
        %v1682 = vpop.trf.xlu0
        %v1683 = vpop.trf.xlu0
        %v1684 = vpop.trf.xlu0
        %v1685 = vpop.trf.xlu0
        %v1686 = vpop.trf.xlu0
        %v1687 = vpop.trf.xlu0
        %v1688 = vpop.trf.xlu0
        %v1689 = vpop.trf.xlu0
        %v1690 = vpop.trf.xlu0
        %v1691 = vpop.trf.xlu0
        %v1692 = vpop.trf.xlu0
        %v1693 = vpop.trf.xlu0
        %v1695 = vsel %vm619, %v1678, 0
        %v1697 = vsel %vm619, %v1657, 0
        %v1699 = vsel %vm619, %v1659, 0
        %1701 = vmatprep.subr.mxu0 0.0
        %1702 = vmatpush1.xpose.msra.mxu0 %v661
        %1703 = vmatprep.subr.mxu0 0.0
        %1704 = vmatpush1.xpose.msra.mxu0 %v659
        %1705 = vmatprep.subr.mxu0 0.0
        %1706 = vmatpush1.xpose.msra.mxu0 %v657
        %1707 = vmatprep.subr.mxu0 0.0
        %1708 = vmatpush1.xpose.msra.mxu0 %v655
        %1709 = vmatprep.subr.mxu0 0.0
        %1710 = vmatpush1.xpose.msra.mxu0 %v653
        %1711 = vmatprep.subr.mxu0 0.0
        %1712 = vmatpush1.xpose.msra.mxu0 %v651
        %1713 = vmatprep.subr.mxu0 0.0
        %1714 = vmatpush1.xpose.msra.mxu0 %v649
        %1715 = vmatprep.subr.mxu0 0.0
        %1716 = vmatpush1.xpose.msra.mxu0 %v647
        %1717 = vmatprep.subr.mxu0 0.0
        %1718 = vmatpush1.xpose.msra.mxu0 %v645
        %1719 = vmatprep.subr.mxu0 0.0
        %1720 = vmatpush1.xpose.msra.mxu0 %v643
        %1721 = vmatprep.subr.mxu0 0.0
        %1722 = vmatpush1.xpose.msra.mxu0 %v641
        %1723 = vmatprep.subr.mxu0 0.0
        %1724 = vmatpush1.xpose.msra.mxu0 %v639
        %1725 = vmatprep.subr.mxu0 0.0
        %1726 = vmatpush1.xpose.msra.mxu0 %v637
        %1727 = vmatprep.subr.mxu0 0.0
        %1728 = vmatpush1.xpose.msra.mxu0 %v635
        %1729 = vmatprep.subr.mxu0 0.0
        %1730 = vmatpush1.xpose.msra.mxu0 %v633
        %1731 = vmatprep.subr.mxu0 0.0
        %1732 = vmatpush1.xpose.msra.mxu0 %v631
        %1733 = vmatprep.subr.mxu0 0.0
        %1734 = vmatpush2.xpose.msra.mxu0 %v1699
        %1735 = vmatprep.subr.mxu0 0.0
        %1736 = vmatpush2.xpose.msra.mxu0 %v1697
        %1737 = vmatprep.subr.mxu0 0.0
        %1738 = vmatpush2.xpose.msra.mxu0 %v1344
        %1739 = vmatprep.subr.mxu0 0.0
        %1740 = vmatpush2.xpose.msra.mxu0 %v1342
        %1741 = vmatprep.subr.mxu0 0.0
        %1742 = vmatpush2.xpose.msra.mxu0 %v685
        %1743 = vmatprep.subr.mxu0 0.0
        %1744 = vmatpush2.xpose.msra.mxu0 %v683
        %1745 = vmatprep.subr.mxu0 0.0
        %1746 = vmatpush2.xpose.msra.mxu0 %v681
        %1747 = vmatprep.subr.mxu0 0.0
        %1748 = vmatpush2.xpose.msra.mxu0 %v679
        %1749 = vmatprep.subr.mxu0 0.0
        %1750 = vmatpush2.xpose.msra.mxu0 %v677
        %1751 = vmatprep.subr.mxu0 0.0
        %1752 = vmatpush2.xpose.msra.mxu0 %v675
        %1753 = vmatprep.subr.mxu0 0.0
        %1754 = vmatpush2.xpose.msra.mxu0 %v673
        %1755 = vmatprep.subr.mxu0 0.0
        %1756 = vmatpush2.xpose.msra.mxu0 %v671
        %1757 = vmatprep.subr.mxu0 0.0
        %1758 = vmatpush2.xpose.msra.mxu0 %v669
        %1759 = vmatprep.subr.mxu0 0.0
        %1760 = vmatpush2.xpose.msra.mxu0 %v667
        %1761 = vmatprep.subr.mxu0 0.0
        %1762 = vmatpush2.xpose.msra.mxu0 %v665
        %1763 = vmatprep.subr.mxu0 0.0
        %1764 = vmatpush2.xpose.msra.mxu0 %v663
        %1765 = vmatprep.mubr.f32.mxu0 0.0
        %1766 = vmatmul.mubr.f32.gmra.mxu0 %v1695
        %v1767 = vpop.f32.mrf.mxu0
        %v1768 = vadd.f32 0.0, %v1767
        %v1769 = vpop.f32.mrf.mxu0
        %v1770 = vadd.f32 0.0, %v1769
        %1771 = vdwg.mxu0
        %v1772 = vadd.f32 %v1652, %v1768
        %v1773 = vadd.f32 %v1653, %v1770
        %v1774 = vrot.slane %v452, 2
        %v1775 = vrot.slane %v453, 2
        %v1776 = vsel %vm928, %v1774, %v1775
        %v1777 = vrot.slane %v454, 2
        %v1778 = vsel %vm928, %v1775, %v1777
        %s1779 = scalar_lea.vmem %s3, 32
        %v1780 = vld [vmem:[%s1779] sm:$0xf]
        %1781 = vxpose.xlu0.b32.start [1/16] %v1780, 128
        %1782 = vxpose.xlu0.b32.cont [2/16] 0.0, 128
        %1783 = vxpose.xlu0.b32.cont [3/16] 0.0, 128
        %1784 = vxpose.xlu0.b32.cont [4/16] 0.0, 128
        %1785 = vxpose.xlu0.b32.cont [5/16] 0.0, 128
        %1786 = vxpose.xlu0.b32.cont [6/16] 0.0, 128
        %1787 = vxpose.xlu0.b32.cont [7/16] 0.0, 128
        %1788 = vxpose.xlu0.b32.cont [8/16] 0.0, 128
        %1789 = vxpose.xlu0.b32.cont [9/16] 0.0, 128
        %1790 = vxpose.xlu0.b32.cont [10/16] 0.0, 128
        %1791 = vxpose.xlu0.b32.cont [11/16] 0.0, 128
        %1792 = vxpose.xlu0.b32.cont [12/16] 0.0, 128
        %1793 = vxpose.xlu0.b32.cont [13/16] 0.0, 128
        %1794 = vxpose.xlu0.b32.cont [14/16] 0.0, 128
        %1795 = vxpose.xlu0.b32.cont [15/16] 0.0, 128
        %1796 = vxpose.xlu0.b32.end [16/16] 0.0, 128
        %v1797 = vpop.trf.xlu0
        %v1798 = vpop.trf.xlu0
        %v1799 = vpop.trf.xlu0
        %v1800 = vpop.trf.xlu0
        %v1801 = vpop.trf.xlu0
        %v1802 = vpop.trf.xlu0
        %v1803 = vpop.trf.xlu0
        %v1804 = vpop.trf.xlu0
        %v1805 = vpop.trf.xlu0
        %v1806 = vpop.trf.xlu0
        %v1807 = vpop.trf.xlu0
        %v1808 = vpop.trf.xlu0
        %v1809 = vpop.trf.xlu0
        %v1810 = vpop.trf.xlu0
        %v1811 = vpop.trf.xlu0
        %v1812 = vpop.trf.xlu0
        %v1814 = vsel %vm619, %v1797, 0
        %v1816 = vsel %vm619, %v1776, 0
        %v1818 = vsel %vm619, %v1778, 0
        %1820 = vmatprep.subr.mxu0 0.0
        %1821 = vmatpush1.xpose.msra.mxu0 %v1084
        %1822 = vmatprep.subr.mxu0 0.0
        %1823 = vmatpush1.xpose.msra.mxu0 %v1082
        %1824 = vmatprep.subr.mxu0 0.0
        %1825 = vmatpush1.xpose.msra.mxu0 %v1080
        %1826 = vmatprep.subr.mxu0 0.0
        %1827 = vmatpush1.xpose.msra.mxu0 %v1078
        %1828 = vmatprep.subr.mxu0 0.0
        %1829 = vmatpush1.xpose.msra.mxu0 %v1076
        %1830 = vmatprep.subr.mxu0 0.0
        %1831 = vmatpush1.xpose.msra.mxu0 %v1074
        %1832 = vmatprep.subr.mxu0 0.0
        %1833 = vmatpush1.xpose.msra.mxu0 %v1072
        %1834 = vmatprep.subr.mxu0 0.0
        %1835 = vmatpush1.xpose.msra.mxu0 %v1070
        %1836 = vmatprep.subr.mxu0 0.0
        %1837 = vmatpush1.xpose.msra.mxu0 %v1068
        %1838 = vmatprep.subr.mxu0 0.0
        %1839 = vmatpush1.xpose.msra.mxu0 %v1066
        %1840 = vmatprep.subr.mxu0 0.0
        %1841 = vmatpush1.xpose.msra.mxu0 %v1064
        %1842 = vmatprep.subr.mxu0 0.0
        %1843 = vmatpush1.xpose.msra.mxu0 %v1062
        %1844 = vmatprep.subr.mxu0 0.0
        %1845 = vmatpush1.xpose.msra.mxu0 %v1060
        %1846 = vmatprep.subr.mxu0 0.0
        %1847 = vmatpush1.xpose.msra.mxu0 %v1058
        %1848 = vmatprep.subr.mxu0 0.0
        %1849 = vmatpush1.xpose.msra.mxu0 %v1056
        %1850 = vmatprep.subr.mxu0 0.0
        %1851 = vmatpush1.xpose.msra.mxu0 %v1054
        %1852 = vmatprep.subr.mxu0 0.0
        %1853 = vmatpush2.xpose.msra.mxu0 %v1818
        %1854 = vmatprep.subr.mxu0 0.0
        %1855 = vmatpush2.xpose.msra.mxu0 %v1816
        %1856 = vmatprep.subr.mxu0 0.0
        %1857 = vmatpush2.xpose.msra.mxu0 %v1463
        %1858 = vmatprep.subr.mxu0 0.0
        %1859 = vmatpush2.xpose.msra.mxu0 %v1461
        %1860 = vmatprep.subr.mxu0 0.0
        %1861 = vmatpush2.xpose.msra.mxu0 %v1108
        %1862 = vmatprep.subr.mxu0 0.0
        %1863 = vmatpush2.xpose.msra.mxu0 %v1106
        %1864 = vmatprep.subr.mxu0 0.0
        %1865 = vmatpush2.xpose.msra.mxu0 %v1104
        %1866 = vmatprep.subr.mxu0 0.0
        %1867 = vmatpush2.xpose.msra.mxu0 %v1102
        %1868 = vmatprep.subr.mxu0 0.0
        %1869 = vmatpush2.xpose.msra.mxu0 %v1100
        %1870 = vmatprep.subr.mxu0 0.0
        %1871 = vmatpush2.xpose.msra.mxu0 %v1098
        %1872 = vmatprep.subr.mxu0 0.0
        %1873 = vmatpush2.xpose.msra.mxu0 %v1096
        %1874 = vmatprep.subr.mxu0 0.0
        %1875 = vmatpush2.xpose.msra.mxu0 %v1094
        %1876 = vmatprep.subr.mxu0 0.0
        %1877 = vmatpush2.xpose.msra.mxu0 %v1092
        %1878 = vmatprep.subr.mxu0 0.0
        %1879 = vmatpush2.xpose.msra.mxu0 %v1090
        %1880 = vmatprep.subr.mxu0 0.0
        %1881 = vmatpush2.xpose.msra.mxu0 %v1088
        %1882 = vmatprep.subr.mxu0 0.0
        %1883 = vmatpush2.xpose.msra.mxu0 %v1086
        %1884 = vmatprep.mubr.f32.mxu0 0.0
        %1885 = vmatmul.mubr.f32.gmra.mxu0 %v1814
        %v1886 = vpop.f32.mrf.mxu0
        %v1887 = vadd.f32 0.0, %v1886
        %v1888 = vpop.f32.mrf.mxu0
        %v1889 = vadd.f32 0.0, %v1888
        %1890 = vdwg.mxu0
        %v1891 = vadd.f32 %v1772, %v1887
        %v1892 = vadd.f32 %v1773, %v1889
        %v1893 = vld [vmem:[%s372] sm:$0xff]
        %v1894 = vld [vmem:[%s372 + $0x8] sm:$0xff]
        %v1895 = vld [vmem:[%s372 + $0x10] sm:$0x3]
        %v1896 = vld [vmem:[%s372 + $0x18] sm:$0xff]
        %v1897 = vld [vmem:[%s372 + $0x20] sm:$0xff]
        %v1898 = vld [vmem:[%s372 + $0x28] sm:$0x3]
        %v1899 = vld [vmem:[%s372 + $0x30] sm:$0xff]
        %v1900 = vld [vmem:[%s372 + $0x38] sm:$0xff]
        %v1901 = vld [vmem:[%s372 + $0x40] sm:$0x3]
        %v1902 = vld [vmem:[%s372 + $0x48] sm:$0xff]
        %v1903 = vld [vmem:[%s372 + $0x50] sm:$0xff]
        %v1904 = vld [vmem:[%s372 + $0x58] sm:$0x3]
        %v1905 = vld [vmem:[%s372 + $0x60] sm:$0xff]
        %v1906 = vld [vmem:[%s372 + $0x68] sm:$0xff]
        %v1907 = vld [vmem:[%s372 + $0x70] sm:$0x3]
        %v1908 = vld [vmem:[%s372 + $0x78] sm:$0xff]
        %v1909 = vld [vmem:[%s372 + $0x80] sm:$0xff]
        %v1910 = vld [vmem:[%s372 + $0x88] sm:$0x3]
        %v1911 = vld [vmem:[%s372 + $0x90] sm:$0xff]
        %v1912 = vld [vmem:[%s372 + $0x98] sm:$0xff]
        %v1913 = vld [vmem:[%s372 + $0xa0] sm:$0x3]
        %v1914 = vld [vmem:[%s372 + $0xa8] sm:$0xff]
        %v1915 = vld [vmem:[%s372 + $0xb0] sm:$0xff]
        %v1916 = vld [vmem:[%s372 + $0xb8] sm:$0x3]
        %v1917 = vld [vmem:[%s372 + $0xc0] sm:$0xff]
        %v1918 = vld [vmem:[%s372 + $0xc8] sm:$0xff]
        %v1919 = vld [vmem:[%s372 + $0xd0] sm:$0x3]
        %v1920 = vld [vmem:[%s372 + $0xd8] sm:$0xff]
        %v1921 = vld [vmem:[%s372 + $0xe0] sm:$0xff]
        %v1922 = vld [vmem:[%s372 + $0xe8] sm:$0x3]
        %v1923 = vld [vmem:[%s372 + $0xf0] sm:$0xff]
        %v1924 = vld [vmem:[%s372 + $0xf8] sm:$0xff]
        %v1925 = vld [vmem:[%s372 + $0x100] sm:$0x3]
        %v1926 = vld [vmem:[%s372 + $0x108] sm:$0xff]
        %v1927 = vld [vmem:[%s372 + $0x110] sm:$0xff]
        %v1928 = vld [vmem:[%s372 + $0x118] sm:$0x3]
        %v1929 = vld [vmem:[%s372 + $0x120] sm:$0xff]
        %v1930 = vld [vmem:[%s372 + $0x128] sm:$0xff]
        %v1931 = vld [vmem:[%s372 + $0x130] sm:$0x3]
        %v1932 = vld [vmem:[%s372 + $0x138] sm:$0xff]
        %v1933 = vld [vmem:[%s372 + $0x140] sm:$0xff]
        %v1934 = vld [vmem:[%s372 + $0x148] sm:$0x3]
        %v1935 = vld [vmem:[%s372 + $0x150] sm:$0xff]
        %v1936 = vld [vmem:[%s372 + $0x158] sm:$0xff]
        %v1937 = vld [vmem:[%s372 + $0x160] sm:$0x3]
        %v1938 = vld [vmem:[%s372 + $0x168] sm:$0xff]
        %v1939 = vld [vmem:[%s372 + $0x170] sm:$0xff]
        %v1940 = vld [vmem:[%s372 + $0x178] sm:$0x3]
        %v1941 = vld [vmem:[%s372 + $0x180] sm:$0xff]
        %v1942 = vld [vmem:[%s372 + $0x188] sm:$0xff]
        %v1943 = vld [vmem:[%s372 + $0x190] sm:$0x3]
        %v1944 = vld [vmem:[%s372 + $0x198] sm:$0xff]
        %v1945 = vld [vmem:[%s372 + $0x1a0] sm:$0xff]
        %v1946 = vld [vmem:[%s372 + $0x1a8] sm:$0x3]
        %s1947 = scalar_lea.vmem %s3, 36
        %v1948 = vld [vmem:[%s1947] sm:$0xf]
        %1949 = vxpose.xlu0.b32.start [1/16] %v1948, 128
        %1950 = vxpose.xlu0.b32.cont [2/16] 0.0, 128
        %1951 = vxpose.xlu0.b32.cont [3/16] 0.0, 128
        %1952 = vxpose.xlu0.b32.cont [4/16] 0.0, 128
        %1953 = vxpose.xlu0.b32.cont [5/16] 0.0, 128
        %1954 = vxpose.xlu0.b32.cont [6/16] 0.0, 128
        %1955 = vxpose.xlu0.b32.cont [7/16] 0.0, 128
        %1956 = vxpose.xlu0.b32.cont [8/16] 0.0, 128
        %1957 = vxpose.xlu0.b32.cont [9/16] 0.0, 128
        %1958 = vxpose.xlu0.b32.cont [10/16] 0.0, 128
        %1959 = vxpose.xlu0.b32.cont [11/16] 0.0, 128
        %1960 = vxpose.xlu0.b32.cont [12/16] 0.0, 128
        %1961 = vxpose.xlu0.b32.cont [13/16] 0.0, 128
        %1962 = vxpose.xlu0.b32.cont [14/16] 0.0, 128
        %1963 = vxpose.xlu0.b32.cont [15/16] 0.0, 128
        %1964 = vxpose.xlu0.b32.end [16/16] 0.0, 128
        %v1965 = vpop.trf.xlu0
        %v1966 = vpop.trf.xlu0
        %v1967 = vpop.trf.xlu0
        %v1968 = vpop.trf.xlu0
        %v1969 = vpop.trf.xlu0
        %v1970 = vpop.trf.xlu0
        %v1971 = vpop.trf.xlu0
        %v1972 = vpop.trf.xlu0
        %v1973 = vpop.trf.xlu0
        %v1974 = vpop.trf.xlu0
        %v1975 = vpop.trf.xlu0
        %v1976 = vpop.trf.xlu0
        %v1977 = vpop.trf.xlu0
        %v1978 = vpop.trf.xlu0
        %v1979 = vpop.trf.xlu0
        %v1980 = vpop.trf.xlu0
        %v1982 = vsel %vm619, %v1965, 0
        %v1985 = vsel %vm619, %v1893, 0
        %v1988 = vsel %vm619, %v1894, 0
        %v1991 = vsel %vm619, %v1896, 0
        %v1994 = vsel %vm619, %v1897, 0
        %v1997 = vsel %vm619, %v1899, 0
        %v2000 = vsel %vm619, %v1900, 0
        %v2003 = vsel %vm619, %v1902, 0
        %v2006 = vsel %vm619, %v1903, 0
        %v2009 = vsel %vm619, %v1905, 0
        %v2012 = vsel %vm619, %v1906, 0
        %v2015 = vsel %vm619, %v1908, 0
        %v2018 = vsel %vm619, %v1909, 0
        %v2021 = vsel %vm619, %v1911, 0
        %v2024 = vsel %vm619, %v1912, 0
        %v2027 = vsel %vm619, %v1914, 0
        %v2030 = vsel %vm619, %v1915, 0
        %v2033 = vsel %vm619, %v1917, 0
        %v2036 = vsel %vm619, %v1918, 0
        %v2039 = vsel %vm619, %v1920, 0
        %v2042 = vsel %vm619, %v1921, 0
        %v2045 = vsel %vm619, %v1923, 0
        %v2048 = vsel %vm619, %v1924, 0
        %v2051 = vsel %vm619, %v1926, 0
        %v2054 = vsel %vm619, %v1927, 0
        %v2057 = vsel %vm619, %v1929, 0
        %v2060 = vsel %vm619, %v1930, 0
        %v2063 = vsel %vm619, %v1932, 0
        %v2066 = vsel %vm619, %v1933, 0
        %v2069 = vsel %vm619, %v1935, 0
        %v2072 = vsel %vm619, %v1936, 0
        %v2075 = vsel %vm619, %v1938, 0
        %v2078 = vsel %vm619, %v1939, 0
        %2080 = vmatprep.subr.mxu0 0.0
        %2081 = vmatpush1.xpose.msra.mxu0 %v2030
        %2082 = vmatprep.subr.mxu0 0.0
        %2083 = vmatpush1.xpose.msra.mxu0 %v2027
        %2084 = vmatprep.subr.mxu0 0.0
        %2085 = vmatpush1.xpose.msra.mxu0 %v2024
        %2086 = vmatprep.subr.mxu0 0.0
        %2087 = vmatpush1.xpose.msra.mxu0 %v2021
        %2088 = vmatprep.subr.mxu0 0.0
        %2089 = vmatpush1.xpose.msra.mxu0 %v2018
        %2090 = vmatprep.subr.mxu0 0.0
        %2091 = vmatpush1.xpose.msra.mxu0 %v2015
        %2092 = vmatprep.subr.mxu0 0.0
        %2093 = vmatpush1.xpose.msra.mxu0 %v2012
        %2094 = vmatprep.subr.mxu0 0.0
        %2095 = vmatpush1.xpose.msra.mxu0 %v2009
        %2096 = vmatprep.subr.mxu0 0.0
        %2097 = vmatpush1.xpose.msra.mxu0 %v2006
        %2098 = vmatprep.subr.mxu0 0.0
        %2099 = vmatpush1.xpose.msra.mxu0 %v2003
        %2100 = vmatprep.subr.mxu0 0.0
        %2101 = vmatpush1.xpose.msra.mxu0 %v2000
        %2102 = vmatprep.subr.mxu0 0.0
        %2103 = vmatpush1.xpose.msra.mxu0 %v1997
        %2104 = vmatprep.subr.mxu0 0.0
        %2105 = vmatpush1.xpose.msra.mxu0 %v1994
        %2106 = vmatprep.subr.mxu0 0.0
        %2107 = vmatpush1.xpose.msra.mxu0 %v1991
        %2108 = vmatprep.subr.mxu0 0.0
        %2109 = vmatpush1.xpose.msra.mxu0 %v1988
        %2110 = vmatprep.subr.mxu0 0.0
        %2111 = vmatpush1.xpose.msra.mxu0 %v1985
        %2112 = vmatprep.subr.mxu0 0.0
        %2113 = vmatpush2.xpose.msra.mxu0 %v2078
        %2114 = vmatprep.subr.mxu0 0.0
        %2115 = vmatpush2.xpose.msra.mxu0 %v2075
        %2116 = vmatprep.subr.mxu0 0.0
        %2117 = vmatpush2.xpose.msra.mxu0 %v2072
        %2118 = vmatprep.subr.mxu0 0.0
        %2119 = vmatpush2.xpose.msra.mxu0 %v2069
        %2120 = vmatprep.subr.mxu0 0.0
        %2121 = vmatpush2.xpose.msra.mxu0 %v2066
        %2122 = vmatprep.subr.mxu0 0.0
        %2123 = vmatpush2.xpose.msra.mxu0 %v2063
        %2124 = vmatprep.subr.mxu0 0.0
        %2125 = vmatpush2.xpose.msra.mxu0 %v2060
        %2126 = vmatprep.subr.mxu0 0.0
        %2127 = vmatpush2.xpose.msra.mxu0 %v2057
        %2128 = vmatprep.subr.mxu0 0.0
        %2129 = vmatpush2.xpose.msra.mxu0 %v2054
        %2130 = vmatprep.subr.mxu0 0.0
        %2131 = vmatpush2.xpose.msra.mxu0 %v2051
        %2132 = vmatprep.subr.mxu0 0.0
        %2133 = vmatpush2.xpose.msra.mxu0 %v2048
        %2134 = vmatprep.subr.mxu0 0.0
        %2135 = vmatpush2.xpose.msra.mxu0 %v2045
        %2136 = vmatprep.subr.mxu0 0.0
        %2137 = vmatpush2.xpose.msra.mxu0 %v2042
        %2138 = vmatprep.subr.mxu0 0.0
        %2139 = vmatpush2.xpose.msra.mxu0 %v2039
        %2140 = vmatprep.subr.mxu0 0.0
        %2141 = vmatpush2.xpose.msra.mxu0 %v2036
        %2142 = vmatprep.subr.mxu0 0.0
        %2143 = vmatpush2.xpose.msra.mxu0 %v2033
        %2144 = vmatprep.mubr.f32.mxu0 0.0
        %2145 = vmatmul.mubr.f32.gmra.mxu0 %v1982
        %v2146 = vpop.f32.mrf.mxu0
        %v2147 = vadd.f32 0.0, %v2146
        %v2148 = vpop.f32.mrf.mxu0
        %v2149 = vadd.f32 0.0, %v2148
        %2150 = vdwg.mxu0
        %v2151 = vadd.f32 %v1891, %v2147
        %v2152 = vadd.f32 %v1892, %v2149
        %v2169 = vrot.slane %v1893, 1
        %v2170 = vrot.slane %v1894, 1
        %v2171 = vsel %vm504, %v2169, %v2170
        %v2172 = vrot.slane %v1895, 1
        %v2173 = vsel %vm504, %v2170, %v2172
        %v2174 = vrot.slane %v1896, 1
        %v2175 = vrot.slane %v1897, 1
        %v2176 = vsel %vm504, %v2174, %v2175
        %v2177 = vrot.slane %v1898, 1
        %v2178 = vsel %vm504, %v2175, %v2177
        %v2179 = vrot.slane %v1899, 1
        %v2180 = vrot.slane %v1900, 1
        %v2181 = vsel %vm504, %v2179, %v2180
        %v2182 = vrot.slane %v1901, 1
        %v2183 = vsel %vm504, %v2180, %v2182
        %v2184 = vrot.slane %v1902, 1
        %v2185 = vrot.slane %v1903, 1
        %v2186 = vsel %vm504, %v2184, %v2185
        %v2187 = vrot.slane %v1904, 1
        %v2188 = vsel %vm504, %v2185, %v2187
        %v2189 = vrot.slane %v1905, 1
        %v2190 = vrot.slane %v1906, 1
        %v2191 = vsel %vm504, %v2189, %v2190
        %v2192 = vrot.slane %v1907, 1
        %v2193 = vsel %vm504, %v2190, %v2192
        %v2194 = vrot.slane %v1908, 1
        %v2195 = vrot.slane %v1909, 1
        %v2196 = vsel %vm504, %v2194, %v2195
        %v2197 = vrot.slane %v1910, 1
        %v2198 = vsel %vm504, %v2195, %v2197
        %v2199 = vrot.slane %v1911, 1
        %v2200 = vrot.slane %v1912, 1
        %v2201 = vsel %vm504, %v2199, %v2200
        %v2202 = vrot.slane %v1913, 1
        %v2203 = vsel %vm504, %v2200, %v2202
        %v2204 = vrot.slane %v1914, 1
        %v2205 = vrot.slane %v1915, 1
        %v2206 = vsel %vm504, %v2204, %v2205
        %v2207 = vrot.slane %v1916, 1
        %v2208 = vsel %vm504, %v2205, %v2207
        %v2209 = vrot.slane %v1917, 1
        %v2210 = vrot.slane %v1918, 1
        %v2211 = vsel %vm504, %v2209, %v2210
        %v2212 = vrot.slane %v1919, 1
        %v2213 = vsel %vm504, %v2210, %v2212
        %v2214 = vrot.slane %v1920, 1
        %v2215 = vrot.slane %v1921, 1
        %v2216 = vsel %vm504, %v2214, %v2215
        %v2217 = vrot.slane %v1922, 1
        %v2218 = vsel %vm504, %v2215, %v2217
        %v2219 = vrot.slane %v1923, 1
        %v2220 = vrot.slane %v1924, 1
        %v2221 = vsel %vm504, %v2219, %v2220
        %v2222 = vrot.slane %v1925, 1
        %v2223 = vsel %vm504, %v2220, %v2222
        %v2224 = vrot.slane %v1926, 1
        %v2225 = vrot.slane %v1927, 1
        %v2226 = vsel %vm504, %v2224, %v2225
        %v2227 = vrot.slane %v1928, 1
        %v2228 = vsel %vm504, %v2225, %v2227
        %v2229 = vrot.slane %v1929, 1
        %v2230 = vrot.slane %v1930, 1
        %v2231 = vsel %vm504, %v2229, %v2230
        %v2232 = vrot.slane %v1931, 1
        %v2233 = vsel %vm504, %v2230, %v2232
        %v2234 = vrot.slane %v1932, 1
        %v2235 = vrot.slane %v1933, 1
        %v2236 = vsel %vm504, %v2234, %v2235
        %v2237 = vrot.slane %v1934, 1
        %v2238 = vsel %vm504, %v2235, %v2237
        %v2239 = vrot.slane %v1935, 1
        %v2240 = vrot.slane %v1936, 1
        %v2241 = vsel %vm504, %v2239, %v2240
        %v2242 = vrot.slane %v1937, 1
        %v2243 = vsel %vm504, %v2240, %v2242
        %v2244 = vrot.slane %v1938, 1
        %v2245 = vrot.slane %v1939, 1
        %v2246 = vsel %vm504, %v2244, %v2245
        %v2247 = vrot.slane %v1940, 1
        %v2248 = vsel %vm504, %v2245, %v2247
        %s2249 = scalar_lea.vmem %s3, 40
        %v2250 = vld [vmem:[%s2249] sm:$0xf]
        %2251 = vxpose.xlu0.b32.start [1/16] %v2250, 128
        %2252 = vxpose.xlu0.b32.cont [2/16] 0.0, 128
        %2253 = vxpose.xlu0.b32.cont [3/16] 0.0, 128
        %2254 = vxpose.xlu0.b32.cont [4/16] 0.0, 128
        %2255 = vxpose.xlu0.b32.cont [5/16] 0.0, 128
        %2256 = vxpose.xlu0.b32.cont [6/16] 0.0, 128
        %2257 = vxpose.xlu0.b32.cont [7/16] 0.0, 128
        %2258 = vxpose.xlu0.b32.cont [8/16] 0.0, 128
        %2259 = vxpose.xlu0.b32.cont [9/16] 0.0, 128
        %2260 = vxpose.xlu0.b32.cont [10/16] 0.0, 128
        %2261 = vxpose.xlu0.b32.cont [11/16] 0.0, 128
        %2262 = vxpose.xlu0.b32.cont [12/16] 0.0, 128
        %2263 = vxpose.xlu0.b32.cont [13/16] 0.0, 128
        %2264 = vxpose.xlu0.b32.cont [14/16] 0.0, 128
        %2265 = vxpose.xlu0.b32.cont [15/16] 0.0, 128
        %2266 = vxpose.xlu0.b32.end [16/16] 0.0, 128
        %v2267 = vpop.trf.xlu0
        %v2268 = vpop.trf.xlu0
        %v2269 = vpop.trf.xlu0
        %v2270 = vpop.trf.xlu0
        %v2271 = vpop.trf.xlu0
        %v2272 = vpop.trf.xlu0
        %v2273 = vpop.trf.xlu0
        %v2274 = vpop.trf.xlu0
        %v2275 = vpop.trf.xlu0
        %v2276 = vpop.trf.xlu0
        %v2277 = vpop.trf.xlu0
        %v2278 = vpop.trf.xlu0
        %v2279 = vpop.trf.xlu0
        %v2280 = vpop.trf.xlu0
        %v2281 = vpop.trf.xlu0
        %v2282 = vpop.trf.xlu0
        %v2284 = vsel %vm619, %v2267, 0
        %v2286 = vsel %vm619, %v2171, 0
        %v2288 = vsel %vm619, %v2173, 0
        %v2290 = vsel %vm619, %v2176, 0
        %v2292 = vsel %vm619, %v2178, 0
        %v2294 = vsel %vm619, %v2181, 0
        %v2296 = vsel %vm619, %v2183, 0
        %v2298 = vsel %vm619, %v2186, 0
        %v2300 = vsel %vm619, %v2188, 0
        %v2302 = vsel %vm619, %v2191, 0
        %v2304 = vsel %vm619, %v2193, 0
        %v2306 = vsel %vm619, %v2196, 0
        %v2308 = vsel %vm619, %v2198, 0
        %v2310 = vsel %vm619, %v2201, 0
        %v2312 = vsel %vm619, %v2203, 0
        %v2314 = vsel %vm619, %v2206, 0
        %v2316 = vsel %vm619, %v2208, 0
        %v2318 = vsel %vm619, %v2211, 0
        %v2320 = vsel %vm619, %v2213, 0
        %v2322 = vsel %vm619, %v2216, 0
        %v2324 = vsel %vm619, %v2218, 0
        %v2326 = vsel %vm619, %v2221, 0
        %v2328 = vsel %vm619, %v2223, 0
        %v2330 = vsel %vm619, %v2226, 0
        %v2332 = vsel %vm619, %v2228, 0
        %v2334 = vsel %vm619, %v2231, 0
        %v2336 = vsel %vm619, %v2233, 0
        %v2338 = vsel %vm619, %v2236, 0
        %v2340 = vsel %vm619, %v2238, 0
        %v2342 = vsel %vm619, %v2241, 0
        %v2344 = vsel %vm619, %v2243, 0
        %v2346 = vsel %vm619, %v2246, 0
        %v2348 = vsel %vm619, %v2248, 0
        %2350 = vmatprep.subr.mxu0 0.0
        %2351 = vmatpush1.xpose.msra.mxu0 %v2316
        %2352 = vmatprep.subr.mxu0 0.0
        %2353 = vmatpush1.xpose.msra.mxu0 %v2314
        %2354 = vmatprep.subr.mxu0 0.0
        %2355 = vmatpush1.xpose.msra.mxu0 %v2312
        %2356 = vmatprep.subr.mxu0 0.0
        %2357 = vmatpush1.xpose.msra.mxu0 %v2310
        %2358 = vmatprep.subr.mxu0 0.0
        %2359 = vmatpush1.xpose.msra.mxu0 %v2308
        %2360 = vmatprep.subr.mxu0 0.0
        %2361 = vmatpush1.xpose.msra.mxu0 %v2306
        %2362 = vmatprep.subr.mxu0 0.0
        %2363 = vmatpush1.xpose.msra.mxu0 %v2304
        %2364 = vmatprep.subr.mxu0 0.0
        %2365 = vmatpush1.xpose.msra.mxu0 %v2302
        %2366 = vmatprep.subr.mxu0 0.0
        %2367 = vmatpush1.xpose.msra.mxu0 %v2300
        %2368 = vmatprep.subr.mxu0 0.0
        %2369 = vmatpush1.xpose.msra.mxu0 %v2298
        %2370 = vmatprep.subr.mxu0 0.0
        %2371 = vmatpush1.xpose.msra.mxu0 %v2296
        %2372 = vmatprep.subr.mxu0 0.0
        %2373 = vmatpush1.xpose.msra.mxu0 %v2294
        %2374 = vmatprep.subr.mxu0 0.0
        %2375 = vmatpush1.xpose.msra.mxu0 %v2292
        %2376 = vmatprep.subr.mxu0 0.0
        %2377 = vmatpush1.xpose.msra.mxu0 %v2290
        %2378 = vmatprep.subr.mxu0 0.0
        %2379 = vmatpush1.xpose.msra.mxu0 %v2288
        %2380 = vmatprep.subr.mxu0 0.0
        %2381 = vmatpush1.xpose.msra.mxu0 %v2286
        %2382 = vmatprep.subr.mxu0 0.0
        %2383 = vmatpush2.xpose.msra.mxu0 %v2348
        %2384 = vmatprep.subr.mxu0 0.0
        %2385 = vmatpush2.xpose.msra.mxu0 %v2346
        %2386 = vmatprep.subr.mxu0 0.0
        %2387 = vmatpush2.xpose.msra.mxu0 %v2344
        %2388 = vmatprep.subr.mxu0 0.0
        %2389 = vmatpush2.xpose.msra.mxu0 %v2342
        %2390 = vmatprep.subr.mxu0 0.0
        %2391 = vmatpush2.xpose.msra.mxu0 %v2340
        %2392 = vmatprep.subr.mxu0 0.0
        %2393 = vmatpush2.xpose.msra.mxu0 %v2338
        %2394 = vmatprep.subr.mxu0 0.0
        %2395 = vmatpush2.xpose.msra.mxu0 %v2336
        %2396 = vmatprep.subr.mxu0 0.0
        %2397 = vmatpush2.xpose.msra.mxu0 %v2334
        %2398 = vmatprep.subr.mxu0 0.0
        %2399 = vmatpush2.xpose.msra.mxu0 %v2332
        %2400 = vmatprep.subr.mxu0 0.0
        %2401 = vmatpush2.xpose.msra.mxu0 %v2330
        %2402 = vmatprep.subr.mxu0 0.0
        %2403 = vmatpush2.xpose.msra.mxu0 %v2328
        %2404 = vmatprep.subr.mxu0 0.0
        %2405 = vmatpush2.xpose.msra.mxu0 %v2326
        %2406 = vmatprep.subr.mxu0 0.0
        %2407 = vmatpush2.xpose.msra.mxu0 %v2324
        %2408 = vmatprep.subr.mxu0 0.0
        %2409 = vmatpush2.xpose.msra.mxu0 %v2322
        %2410 = vmatprep.subr.mxu0 0.0
        %2411 = vmatpush2.xpose.msra.mxu0 %v2320
        %2412 = vmatprep.subr.mxu0 0.0
        %2413 = vmatpush2.xpose.msra.mxu0 %v2318
        %2414 = vmatprep.mubr.f32.mxu0 0.0
        %2415 = vmatmul.mubr.f32.gmra.mxu0 %v2284
        %v2416 = vpop.f32.mrf.mxu0
        %v2417 = vadd.f32 0.0, %v2416
        %v2418 = vpop.f32.mrf.mxu0
        %v2419 = vadd.f32 0.0, %v2418
        %2420 = vdwg.mxu0
        %v2421 = vadd.f32 %v2151, %v2417
        %v2422 = vadd.f32 %v2152, %v2419
        %v2423 = vrot.slane %v1893, 2
        %v2424 = vrot.slane %v1894, 2
        %v2425 = vsel %vm928, %v2423, %v2424
        %v2426 = vrot.slane %v1895, 2
        %v2427 = vsel %vm928, %v2424, %v2426
        %v2428 = vrot.slane %v1896, 2
        %v2429 = vrot.slane %v1897, 2
        %v2430 = vsel %vm928, %v2428, %v2429
        %v2431 = vrot.slane %v1898, 2
        %v2432 = vsel %vm928, %v2429, %v2431
        %v2433 = vrot.slane %v1899, 2
        %v2434 = vrot.slane %v1900, 2
        %v2435 = vsel %vm928, %v2433, %v2434
        %v2436 = vrot.slane %v1901, 2
        %v2437 = vsel %vm928, %v2434, %v2436
        %v2438 = vrot.slane %v1902, 2
        %v2439 = vrot.slane %v1903, 2
        %v2440 = vsel %vm928, %v2438, %v2439
        %v2441 = vrot.slane %v1904, 2
        %v2442 = vsel %vm928, %v2439, %v2441
        %v2443 = vrot.slane %v1905, 2
        %v2444 = vrot.slane %v1906, 2
        %v2445 = vsel %vm928, %v2443, %v2444
        %v2446 = vrot.slane %v1907, 2
        %v2447 = vsel %vm928, %v2444, %v2446
        %v2448 = vrot.slane %v1908, 2
        %v2449 = vrot.slane %v1909, 2
        %v2450 = vsel %vm928, %v2448, %v2449
        %v2451 = vrot.slane %v1910, 2
        %v2452 = vsel %vm928, %v2449, %v2451
        %v2453 = vrot.slane %v1911, 2
        %v2454 = vrot.slane %v1912, 2
        %v2455 = vsel %vm928, %v2453, %v2454
        %v2456 = vrot.slane %v1913, 2
        %v2457 = vsel %vm928, %v2454, %v2456
        %v2458 = vrot.slane %v1914, 2
        %v2459 = vrot.slane %v1915, 2
        %v2460 = vsel %vm928, %v2458, %v2459
        %v2461 = vrot.slane %v1916, 2
        %v2462 = vsel %vm928, %v2459, %v2461
        %v2463 = vrot.slane %v1917, 2
        %v2464 = vrot.slane %v1918, 2
        %v2465 = vsel %vm928, %v2463, %v2464
        %v2466 = vrot.slane %v1919, 2
        %v2467 = vsel %vm928, %v2464, %v2466
        %v2468 = vrot.slane %v1920, 2
        %v2469 = vrot.slane %v1921, 2
        %v2470 = vsel %vm928, %v2468, %v2469
        %v2471 = vrot.slane %v1922, 2
        %v2472 = vsel %vm928, %v2469, %v2471
        %v2473 = vrot.slane %v1923, 2
        %v2474 = vrot.slane %v1924, 2
        %v2475 = vsel %vm928, %v2473, %v2474
        %v2476 = vrot.slane %v1925, 2
        %v2477 = vsel %vm928, %v2474, %v2476
        %v2478 = vrot.slane %v1926, 2
        %v2479 = vrot.slane %v1927, 2
        %v2480 = vsel %vm928, %v2478, %v2479
        %v2481 = vrot.slane %v1928, 2
        %v2482 = vsel %vm928, %v2479, %v2481
        %v2483 = vrot.slane %v1929, 2
        %v2484 = vrot.slane %v1930, 2
        %v2485 = vsel %vm928, %v2483, %v2484
        %v2486 = vrot.slane %v1931, 2
        %v2487 = vsel %vm928, %v2484, %v2486
        %v2488 = vrot.slane %v1932, 2
        %v2489 = vrot.slane %v1933, 2
        %v2490 = vsel %vm928, %v2488, %v2489
        %v2491 = vrot.slane %v1934, 2
        %v2492 = vsel %vm928, %v2489, %v2491
        %v2493 = vrot.slane %v1935, 2
        %v2494 = vrot.slane %v1936, 2
        %v2495 = vsel %vm928, %v2493, %v2494
        %v2496 = vrot.slane %v1937, 2
        %v2497 = vsel %vm928, %v2494, %v2496
        %v2498 = vrot.slane %v1938, 2
        %v2499 = vrot.slane %v1939, 2
        %v2500 = vsel %vm928, %v2498, %v2499
        %v2501 = vrot.slane %v1940, 2
        %v2502 = vsel %vm928, %v2499, %v2501
        %s2503 = scalar_lea.vmem %s3, 44
        %v2504 = vld [vmem:[%s2503] sm:$0xf]
        %2505 = vxpose.xlu0.b32.start [1/16] %v2504, 128
        %2506 = vxpose.xlu0.b32.cont [2/16] 0.0, 128
        %2507 = vxpose.xlu0.b32.cont [3/16] 0.0, 128
        %2508 = vxpose.xlu0.b32.cont [4/16] 0.0, 128
        %2509 = vxpose.xlu0.b32.cont [5/16] 0.0, 128
        %2510 = vxpose.xlu0.b32.cont [6/16] 0.0, 128
        %2511 = vxpose.xlu0.b32.cont [7/16] 0.0, 128
        %2512 = vxpose.xlu0.b32.cont [8/16] 0.0, 128
        %2513 = vxpose.xlu0.b32.cont [9/16] 0.0, 128
        %2514 = vxpose.xlu0.b32.cont [10/16] 0.0, 128
        %2515 = vxpose.xlu0.b32.cont [11/16] 0.0, 128
        %2516 = vxpose.xlu0.b32.cont [12/16] 0.0, 128
        %2517 = vxpose.xlu0.b32.cont [13/16] 0.0, 128
        %2518 = vxpose.xlu0.b32.cont [14/16] 0.0, 128
        %2519 = vxpose.xlu0.b32.cont [15/16] 0.0, 128
        %2520 = vxpose.xlu0.b32.end [16/16] 0.0, 128
        %v2521 = vpop.trf.xlu0
        %v2522 = vpop.trf.xlu0
        %v2523 = vpop.trf.xlu0
        %v2524 = vpop.trf.xlu0
        %v2525 = vpop.trf.xlu0
        %v2526 = vpop.trf.xlu0
        %v2527 = vpop.trf.xlu0
        %v2528 = vpop.trf.xlu0
        %v2529 = vpop.trf.xlu0
        %v2530 = vpop.trf.xlu0
        %v2531 = vpop.trf.xlu0
        %v2532 = vpop.trf.xlu0
        %v2533 = vpop.trf.xlu0
        %v2534 = vpop.trf.xlu0
        %v2535 = vpop.trf.xlu0
        %v2536 = vpop.trf.xlu0
        %v2538 = vsel %vm619, %v2521, 0
        %v2540 = vsel %vm619, %v2425, 0
        %v2542 = vsel %vm619, %v2427, 0
        %v2544 = vsel %vm619, %v2430, 0
        %v2546 = vsel %vm619, %v2432, 0
        %v2548 = vsel %vm619, %v2435, 0
        %v2550 = vsel %vm619, %v2437, 0
        %v2552 = vsel %vm619, %v2440, 0
        %v2554 = vsel %vm619, %v2442, 0
        %v2556 = vsel %vm619, %v2445, 0
        %v2558 = vsel %vm619, %v2447, 0
        %v2560 = vsel %vm619, %v2450, 0
        %v2562 = vsel %vm619, %v2452, 0
        %v2564 = vsel %vm619, %v2455, 0
        %v2566 = vsel %vm619, %v2457, 0
        %v2568 = vsel %vm619, %v2460, 0
        %v2570 = vsel %vm619, %v2462, 0
        %v2572 = vsel %vm619, %v2465, 0
        %v2574 = vsel %vm619, %v2467, 0
        %v2576 = vsel %vm619, %v2470, 0
        %v2578 = vsel %vm619, %v2472, 0
        %v2580 = vsel %vm619, %v2475, 0
        %v2582 = vsel %vm619, %v2477, 0
        %v2584 = vsel %vm619, %v2480, 0
        %v2586 = vsel %vm619, %v2482, 0
        %v2588 = vsel %vm619, %v2485, 0
        %v2590 = vsel %vm619, %v2487, 0
        %v2592 = vsel %vm619, %v2490, 0
        %v2594 = vsel %vm619, %v2492, 0
        %v2596 = vsel %vm619, %v2495, 0
        %v2598 = vsel %vm619, %v2497, 0
        %v2600 = vsel %vm619, %v2500, 0
        %v2602 = vsel %vm619, %v2502, 0
        %2604 = vmatprep.subr.mxu0 0.0
        %2605 = vmatpush1.xpose.msra.mxu0 %v2570
        %2606 = vmatprep.subr.mxu0 0.0
        %2607 = vmatpush1.xpose.msra.mxu0 %v2568
        %2608 = vmatprep.subr.mxu0 0.0
        %2609 = vmatpush1.xpose.msra.mxu0 %v2566
        %2610 = vmatprep.subr.mxu0 0.0
        %2611 = vmatpush1.xpose.msra.mxu0 %v2564
        %2612 = vmatprep.subr.mxu0 0.0
        %2613 = vmatpush1.xpose.msra.mxu0 %v2562
        %2614 = vmatprep.subr.mxu0 0.0
        %2615 = vmatpush1.xpose.msra.mxu0 %v2560
        %2616 = vmatprep.subr.mxu0 0.0
        %2617 = vmatpush1.xpose.msra.mxu0 %v2558
        %2618 = vmatprep.subr.mxu0 0.0
        %2619 = vmatpush1.xpose.msra.mxu0 %v2556
        %2620 = vmatprep.subr.mxu0 0.0
        %2621 = vmatpush1.xpose.msra.mxu0 %v2554
        %2622 = vmatprep.subr.mxu0 0.0
        %2623 = vmatpush1.xpose.msra.mxu0 %v2552
        %2624 = vmatprep.subr.mxu0 0.0
        %2625 = vmatpush1.xpose.msra.mxu0 %v2550
        %2626 = vmatprep.subr.mxu0 0.0
        %2627 = vmatpush1.xpose.msra.mxu0 %v2548
        %2628 = vmatprep.subr.mxu0 0.0
        %2629 = vmatpush1.xpose.msra.mxu0 %v2546
        %2630 = vmatprep.subr.mxu0 0.0
        %2631 = vmatpush1.xpose.msra.mxu0 %v2544
        %2632 = vmatprep.subr.mxu0 0.0
        %2633 = vmatpush1.xpose.msra.mxu0 %v2542
        %2634 = vmatprep.subr.mxu0 0.0
        %2635 = vmatpush1.xpose.msra.mxu0 %v2540
        %2636 = vmatprep.subr.mxu0 0.0
        %2637 = vmatpush2.xpose.msra.mxu0 %v2602
        %2638 = vmatprep.subr.mxu0 0.0
        %2639 = vmatpush2.xpose.msra.mxu0 %v2600
        %2640 = vmatprep.subr.mxu0 0.0
        %2641 = vmatpush2.xpose.msra.mxu0 %v2598
        %2642 = vmatprep.subr.mxu0 0.0
        %2643 = vmatpush2.xpose.msra.mxu0 %v2596
        %2644 = vmatprep.subr.mxu0 0.0
        %2645 = vmatpush2.xpose.msra.mxu0 %v2594
        %2646 = vmatprep.subr.mxu0 0.0
        %2647 = vmatpush2.xpose.msra.mxu0 %v2592
        %2648 = vmatprep.subr.mxu0 0.0
        %2649 = vmatpush2.xpose.msra.mxu0 %v2590
        %2650 = vmatprep.subr.mxu0 0.0
        %2651 = vmatpush2.xpose.msra.mxu0 %v2588
        %2652 = vmatprep.subr.mxu0 0.0
        %2653 = vmatpush2.xpose.msra.mxu0 %v2586
        %2654 = vmatprep.subr.mxu0 0.0
        %2655 = vmatpush2.xpose.msra.mxu0 %v2584
        %2656 = vmatprep.subr.mxu0 0.0
        %2657 = vmatpush2.xpose.msra.mxu0 %v2582
        %2658 = vmatprep.subr.mxu0 0.0
        %2659 = vmatpush2.xpose.msra.mxu0 %v2580
        %2660 = vmatprep.subr.mxu0 0.0
        %2661 = vmatpush2.xpose.msra.mxu0 %v2578
        %2662 = vmatprep.subr.mxu0 0.0
        %2663 = vmatpush2.xpose.msra.mxu0 %v2576
        %2664 = vmatprep.subr.mxu0 0.0
        %2665 = vmatpush2.xpose.msra.mxu0 %v2574
        %2666 = vmatprep.subr.mxu0 0.0
        %2667 = vmatpush2.xpose.msra.mxu0 %v2572
        %2668 = vmatprep.mubr.f32.mxu0 0.0
        %2669 = vmatmul.mubr.f32.gmra.mxu0 %v2538
        %v2670 = vpop.f32.mrf.mxu0
        %v2671 = vadd.f32 0.0, %v2670
        %v2672 = vpop.f32.mrf.mxu0
        %v2673 = vadd.f32 0.0, %v2672
        %2674 = vdwg.mxu0
        %v2675 = vadd.f32 %v2421, %v2671
        %v2676 = vadd.f32 %v2422, %v2673
        %s2677 = scalar_lea.vmem %s3, 48
        %v2678 = vld [vmem:[%s2677] sm:$0xf]
        %2679 = vxpose.xlu0.b32.start [1/16] %v2678, 128
        %2680 = vxpose.xlu0.b32.cont [2/16] 0.0, 128
        %2681 = vxpose.xlu0.b32.cont [3/16] 0.0, 128
        %2682 = vxpose.xlu0.b32.cont [4/16] 0.0, 128
        %2683 = vxpose.xlu0.b32.cont [5/16] 0.0, 128
        %2684 = vxpose.xlu0.b32.cont [6/16] 0.0, 128
        %2685 = vxpose.xlu0.b32.cont [7/16] 0.0, 128
        %2686 = vxpose.xlu0.b32.cont [8/16] 0.0, 128
        %2687 = vxpose.xlu0.b32.cont [9/16] 0.0, 128
        %2688 = vxpose.xlu0.b32.cont [10/16] 0.0, 128
        %2689 = vxpose.xlu0.b32.cont [11/16] 0.0, 128
        %2690 = vxpose.xlu0.b32.cont [12/16] 0.0, 128
        %2691 = vxpose.xlu0.b32.cont [13/16] 0.0, 128
        %2692 = vxpose.xlu0.b32.cont [14/16] 0.0, 128
        %2693 = vxpose.xlu0.b32.cont [15/16] 0.0, 128
        %2694 = vxpose.xlu0.b32.end [16/16] 0.0, 128
        %v2695 = vpop.trf.xlu0
        %v2696 = vpop.trf.xlu0
        %v2697 = vpop.trf.xlu0
        %v2698 = vpop.trf.xlu0
        %v2699 = vpop.trf.xlu0
        %v2700 = vpop.trf.xlu0
        %v2701 = vpop.trf.xlu0
        %v2702 = vpop.trf.xlu0
        %v2703 = vpop.trf.xlu0
        %v2704 = vpop.trf.xlu0
        %v2705 = vpop.trf.xlu0
        %v2706 = vpop.trf.xlu0
        %v2707 = vpop.trf.xlu0
        %v2708 = vpop.trf.xlu0
        %v2709 = vpop.trf.xlu0
        %v2710 = vpop.trf.xlu0
        %v2712 = vsel %vm619, %v2695, 0
        %v2715 = vsel %vm619, %v1941, 0
        %v2718 = vsel %vm619, %v1942, 0
        %2720 = vmatprep.subr.mxu0 0.0
        %2721 = vmatpush1.xpose.msra.mxu0 %v2036
        %2722 = vmatprep.subr.mxu0 0.0
        %2723 = vmatpush1.xpose.msra.mxu0 %v2033
        %2724 = vmatprep.subr.mxu0 0.0
        %2725 = vmatpush1.xpose.msra.mxu0 %v2030
        %2726 = vmatprep.subr.mxu0 0.0
        %2727 = vmatpush1.xpose.msra.mxu0 %v2027
        %2728 = vmatprep.subr.mxu0 0.0
        %2729 = vmatpush1.xpose.msra.mxu0 %v2024
        %2730 = vmatprep.subr.mxu0 0.0
        %2731 = vmatpush1.xpose.msra.mxu0 %v2021
        %2732 = vmatprep.subr.mxu0 0.0
        %2733 = vmatpush1.xpose.msra.mxu0 %v2018
        %2734 = vmatprep.subr.mxu0 0.0
        %2735 = vmatpush1.xpose.msra.mxu0 %v2015
        %2736 = vmatprep.subr.mxu0 0.0
        %2737 = vmatpush1.xpose.msra.mxu0 %v2012
        %2738 = vmatprep.subr.mxu0 0.0
        %2739 = vmatpush1.xpose.msra.mxu0 %v2009
        %2740 = vmatprep.subr.mxu0 0.0
        %2741 = vmatpush1.xpose.msra.mxu0 %v2006
        %2742 = vmatprep.subr.mxu0 0.0
        %2743 = vmatpush1.xpose.msra.mxu0 %v2003
        %2744 = vmatprep.subr.mxu0 0.0
        %2745 = vmatpush1.xpose.msra.mxu0 %v2000
        %2746 = vmatprep.subr.mxu0 0.0
        %2747 = vmatpush1.xpose.msra.mxu0 %v1997
        %2748 = vmatprep.subr.mxu0 0.0
        %2749 = vmatpush1.xpose.msra.mxu0 %v1994
        %2750 = vmatprep.subr.mxu0 0.0
        %2751 = vmatpush1.xpose.msra.mxu0 %v1991
        %2752 = vmatprep.subr.mxu0 0.0
        %2753 = vmatpush2.xpose.msra.mxu0 %v2718
        %2754 = vmatprep.subr.mxu0 0.0
        %2755 = vmatpush2.xpose.msra.mxu0 %v2715
        %2756 = vmatprep.subr.mxu0 0.0
        %2757 = vmatpush2.xpose.msra.mxu0 %v2078
        %2758 = vmatprep.subr.mxu0 0.0
        %2759 = vmatpush2.xpose.msra.mxu0 %v2075
        %2760 = vmatprep.subr.mxu0 0.0
        %2761 = vmatpush2.xpose.msra.mxu0 %v2072
        %2762 = vmatprep.subr.mxu0 0.0
        %2763 = vmatpush2.xpose.msra.mxu0 %v2069
        %2764 = vmatprep.subr.mxu0 0.0
        %2765 = vmatpush2.xpose.msra.mxu0 %v2066
        %2766 = vmatprep.subr.mxu0 0.0
        %2767 = vmatpush2.xpose.msra.mxu0 %v2063
        %2768 = vmatprep.subr.mxu0 0.0
        %2769 = vmatpush2.xpose.msra.mxu0 %v2060
        %2770 = vmatprep.subr.mxu0 0.0
        %2771 = vmatpush2.xpose.msra.mxu0 %v2057
        %2772 = vmatprep.subr.mxu0 0.0
        %2773 = vmatpush2.xpose.msra.mxu0 %v2054
        %2774 = vmatprep.subr.mxu0 0.0
        %2775 = vmatpush2.xpose.msra.mxu0 %v2051
        %2776 = vmatprep.subr.mxu0 0.0
        %2777 = vmatpush2.xpose.msra.mxu0 %v2048
        %2778 = vmatprep.subr.mxu0 0.0
        %2779 = vmatpush2.xpose.msra.mxu0 %v2045
        %2780 = vmatprep.subr.mxu0 0.0
        %2781 = vmatpush2.xpose.msra.mxu0 %v2042
        %2782 = vmatprep.subr.mxu0 0.0
        %2783 = vmatpush2.xpose.msra.mxu0 %v2039
        %2784 = vmatprep.mubr.f32.mxu0 0.0
        %2785 = vmatmul.mubr.f32.gmra.mxu0 %v2712
        %v2786 = vpop.f32.mrf.mxu0
        %v2787 = vadd.f32 0.0, %v2786
        %v2788 = vpop.f32.mrf.mxu0
        %v2789 = vadd.f32 0.0, %v2788
        %2790 = vdwg.mxu0
        %v2791 = vadd.f32 %v2675, %v2787
        %v2792 = vadd.f32 %v2676, %v2789
        %v2794 = vrot.slane %v1941, 1
        %v2795 = vrot.slane %v1942, 1
        %v2796 = vsel %vm504, %v2794, %v2795
        %v2797 = vrot.slane %v1943, 1
        %v2798 = vsel %vm504, %v2795, %v2797
        %s2799 = scalar_lea.vmem %s3, 52
        %v2800 = vld [vmem:[%s2799] sm:$0xf]
        %2801 = vxpose.xlu0.b32.start [1/16] %v2800, 128
        %2802 = vxpose.xlu0.b32.cont [2/16] 0.0, 128
        %2803 = vxpose.xlu0.b32.cont [3/16] 0.0, 128
        %2804 = vxpose.xlu0.b32.cont [4/16] 0.0, 128
        %2805 = vxpose.xlu0.b32.cont [5/16] 0.0, 128
        %2806 = vxpose.xlu0.b32.cont [6/16] 0.0, 128
        %2807 = vxpose.xlu0.b32.cont [7/16] 0.0, 128
        %2808 = vxpose.xlu0.b32.cont [8/16] 0.0, 128
        %2809 = vxpose.xlu0.b32.cont [9/16] 0.0, 128
        %2810 = vxpose.xlu0.b32.cont [10/16] 0.0, 128
        %2811 = vxpose.xlu0.b32.cont [11/16] 0.0, 128
        %2812 = vxpose.xlu0.b32.cont [12/16] 0.0, 128
        %2813 = vxpose.xlu0.b32.cont [13/16] 0.0, 128
        %2814 = vxpose.xlu0.b32.cont [14/16] 0.0, 128
        %2815 = vxpose.xlu0.b32.cont [15/16] 0.0, 128
        %2816 = vxpose.xlu0.b32.end [16/16] 0.0, 128
        %v2817 = vpop.trf.xlu0
        %v2818 = vpop.trf.xlu0
        %v2819 = vpop.trf.xlu0
        %v2820 = vpop.trf.xlu0
        %v2821 = vpop.trf.xlu0
        %v2822 = vpop.trf.xlu0
        %v2823 = vpop.trf.xlu0
        %v2824 = vpop.trf.xlu0
        %v2825 = vpop.trf.xlu0
        %v2826 = vpop.trf.xlu0
        %v2827 = vpop.trf.xlu0
        %v2828 = vpop.trf.xlu0
        %v2829 = vpop.trf.xlu0
        %v2830 = vpop.trf.xlu0
        %v2831 = vpop.trf.xlu0
        %v2832 = vpop.trf.xlu0
        %v2834 = vsel %vm619, %v2817, 0
        %v2836 = vsel %vm619, %v2796, 0
        %v2838 = vsel %vm619, %v2798, 0
        %2840 = vmatprep.subr.mxu0 0.0
        %2841 = vmatpush1.xpose.msra.mxu0 %v2320
        %2842 = vmatprep.subr.mxu0 0.0
        %2843 = vmatpush1.xpose.msra.mxu0 %v2318
        %2844 = vmatprep.subr.mxu0 0.0
        %2845 = vmatpush1.xpose.msra.mxu0 %v2316
        %2846 = vmatprep.subr.mxu0 0.0
        %2847 = vmatpush1.xpose.msra.mxu0 %v2314
        %2848 = vmatprep.subr.mxu0 0.0
        %2849 = vmatpush1.xpose.msra.mxu0 %v2312
        %2850 = vmatprep.subr.mxu0 0.0
        %2851 = vmatpush1.xpose.msra.mxu0 %v2310
        %2852 = vmatprep.subr.mxu0 0.0
        %2853 = vmatpush1.xpose.msra.mxu0 %v2308
        %2854 = vmatprep.subr.mxu0 0.0
        %2855 = vmatpush1.xpose.msra.mxu0 %v2306
        %2856 = vmatprep.subr.mxu0 0.0
        %2857 = vmatpush1.xpose.msra.mxu0 %v2304
        %2858 = vmatprep.subr.mxu0 0.0
        %2859 = vmatpush1.xpose.msra.mxu0 %v2302
        %2860 = vmatprep.subr.mxu0 0.0
        %2861 = vmatpush1.xpose.msra.mxu0 %v2300
        %2862 = vmatprep.subr.mxu0 0.0
        %2863 = vmatpush1.xpose.msra.mxu0 %v2298
        %2864 = vmatprep.subr.mxu0 0.0
        %2865 = vmatpush1.xpose.msra.mxu0 %v2296
        %2866 = vmatprep.subr.mxu0 0.0
        %2867 = vmatpush1.xpose.msra.mxu0 %v2294
        %2868 = vmatprep.subr.mxu0 0.0
        %2869 = vmatpush1.xpose.msra.mxu0 %v2292
        %2870 = vmatprep.subr.mxu0 0.0
        %2871 = vmatpush1.xpose.msra.mxu0 %v2290
        %2872 = vmatprep.subr.mxu0 0.0
        %2873 = vmatpush2.xpose.msra.mxu0 %v2838
        %2874 = vmatprep.subr.mxu0 0.0
        %2875 = vmatpush2.xpose.msra.mxu0 %v2836
        %2876 = vmatprep.subr.mxu0 0.0
        %2877 = vmatpush2.xpose.msra.mxu0 %v2348
        %2878 = vmatprep.subr.mxu0 0.0
        %2879 = vmatpush2.xpose.msra.mxu0 %v2346
        %2880 = vmatprep.subr.mxu0 0.0
        %2881 = vmatpush2.xpose.msra.mxu0 %v2344
        %2882 = vmatprep.subr.mxu0 0.0
        %2883 = vmatpush2.xpose.msra.mxu0 %v2342
        %2884 = vmatprep.subr.mxu0 0.0
        %2885 = vmatpush2.xpose.msra.mxu0 %v2340
        %2886 = vmatprep.subr.mxu0 0.0
        %2887 = vmatpush2.xpose.msra.mxu0 %v2338
        %2888 = vmatprep.subr.mxu0 0.0
        %2889 = vmatpush2.xpose.msra.mxu0 %v2336
        %2890 = vmatprep.subr.mxu0 0.0
        %2891 = vmatpush2.xpose.msra.mxu0 %v2334
        %2892 = vmatprep.subr.mxu0 0.0
        %2893 = vmatpush2.xpose.msra.mxu0 %v2332
        %2894 = vmatprep.subr.mxu0 0.0
        %2895 = vmatpush2.xpose.msra.mxu0 %v2330
        %2896 = vmatprep.subr.mxu0 0.0
        %2897 = vmatpush2.xpose.msra.mxu0 %v2328
        %2898 = vmatprep.subr.mxu0 0.0
        %2899 = vmatpush2.xpose.msra.mxu0 %v2326
        %2900 = vmatprep.subr.mxu0 0.0
        %2901 = vmatpush2.xpose.msra.mxu0 %v2324
        %2902 = vmatprep.subr.mxu0 0.0
        %2903 = vmatpush2.xpose.msra.mxu0 %v2322
        %2904 = vmatprep.mubr.f32.mxu0 0.0
        %2905 = vmatmul.mubr.f32.gmra.mxu0 %v2834
        %v2906 = vpop.f32.mrf.mxu0
        %v2907 = vadd.f32 0.0, %v2906
        %v2908 = vpop.f32.mrf.mxu0
        %v2909 = vadd.f32 0.0, %v2908
        %2910 = vdwg.mxu0
        %v2911 = vadd.f32 %v2791, %v2907
        %v2912 = vadd.f32 %v2792, %v2909
        %v2913 = vrot.slane %v1941, 2
        %v2914 = vrot.slane %v1942, 2
        %v2915 = vsel %vm928, %v2913, %v2914
        %v2916 = vrot.slane %v1943, 2
        %v2917 = vsel %vm928, %v2914, %v2916
        %s2918 = scalar_lea.vmem %s3, 56
        %v2919 = vld [vmem:[%s2918] sm:$0xf]
        %2920 = vxpose.xlu0.b32.start [1/16] %v2919, 128
        %2921 = vxpose.xlu0.b32.cont [2/16] 0.0, 128
        %2922 = vxpose.xlu0.b32.cont [3/16] 0.0, 128
        %2923 = vxpose.xlu0.b32.cont [4/16] 0.0, 128
        %2924 = vxpose.xlu0.b32.cont [5/16] 0.0, 128
        %2925 = vxpose.xlu0.b32.cont [6/16] 0.0, 128
        %2926 = vxpose.xlu0.b32.cont [7/16] 0.0, 128
        %2927 = vxpose.xlu0.b32.cont [8/16] 0.0, 128
        %2928 = vxpose.xlu0.b32.cont [9/16] 0.0, 128
        %2929 = vxpose.xlu0.b32.cont [10/16] 0.0, 128
        %2930 = vxpose.xlu0.b32.cont [11/16] 0.0, 128
        %2931 = vxpose.xlu0.b32.cont [12/16] 0.0, 128
        %2932 = vxpose.xlu0.b32.cont [13/16] 0.0, 128
        %2933 = vxpose.xlu0.b32.cont [14/16] 0.0, 128
        %2934 = vxpose.xlu0.b32.cont [15/16] 0.0, 128
        %2935 = vxpose.xlu0.b32.end [16/16] 0.0, 128
        %v2936 = vpop.trf.xlu0
        %v2937 = vpop.trf.xlu0
        %v2938 = vpop.trf.xlu0
        %v2939 = vpop.trf.xlu0
        %v2940 = vpop.trf.xlu0
        %v2941 = vpop.trf.xlu0
        %v2942 = vpop.trf.xlu0
        %v2943 = vpop.trf.xlu0
        %v2944 = vpop.trf.xlu0
        %v2945 = vpop.trf.xlu0
        %v2946 = vpop.trf.xlu0
        %v2947 = vpop.trf.xlu0
        %v2948 = vpop.trf.xlu0
        %v2949 = vpop.trf.xlu0
        %v2950 = vpop.trf.xlu0
        %v2951 = vpop.trf.xlu0
        %v2953 = vsel %vm619, %v2936, 0
        %v2955 = vsel %vm619, %v2915, 0
        %v2957 = vsel %vm619, %v2917, 0
        %2959 = vmatprep.subr.mxu0 0.0
        %2960 = vmatpush1.xpose.msra.mxu0 %v2574
        %2961 = vmatprep.subr.mxu0 0.0
        %2962 = vmatpush1.xpose.msra.mxu0 %v2572
        %2963 = vmatprep.subr.mxu0 0.0
        %2964 = vmatpush1.xpose.msra.mxu0 %v2570
        %2965 = vmatprep.subr.mxu0 0.0
        %2966 = vmatpush1.xpose.msra.mxu0 %v2568
        %2967 = vmatprep.subr.mxu0 0.0
        %2968 = vmatpush1.xpose.msra.mxu0 %v2566
        %2969 = vmatprep.subr.mxu0 0.0
        %2970 = vmatpush1.xpose.msra.mxu0 %v2564
        %2971 = vmatprep.subr.mxu0 0.0
        %2972 = vmatpush1.xpose.msra.mxu0 %v2562
        %2973 = vmatprep.subr.mxu0 0.0
        %2974 = vmatpush1.xpose.msra.mxu0 %v2560
        %2975 = vmatprep.subr.mxu0 0.0
        %2976 = vmatpush1.xpose.msra.mxu0 %v2558
        %2977 = vmatprep.subr.mxu0 0.0
        %2978 = vmatpush1.xpose.msra.mxu0 %v2556
        %2979 = vmatprep.subr.mxu0 0.0
        %2980 = vmatpush1.xpose.msra.mxu0 %v2554
        %2981 = vmatprep.subr.mxu0 0.0
        %2982 = vmatpush1.xpose.msra.mxu0 %v2552
        %2983 = vmatprep.subr.mxu0 0.0
        %2984 = vmatpush1.xpose.msra.mxu0 %v2550
        %2985 = vmatprep.subr.mxu0 0.0
        %2986 = vmatpush1.xpose.msra.mxu0 %v2548
        %2987 = vmatprep.subr.mxu0 0.0
        %2988 = vmatpush1.xpose.msra.mxu0 %v2546
        %2989 = vmatprep.subr.mxu0 0.0
        %2990 = vmatpush1.xpose.msra.mxu0 %v2544
        %2991 = vmatprep.subr.mxu0 0.0
        %2992 = vmatpush2.xpose.msra.mxu0 %v2957
        %2993 = vmatprep.subr.mxu0 0.0
        %2994 = vmatpush2.xpose.msra.mxu0 %v2955
        %2995 = vmatprep.subr.mxu0 0.0
        %2996 = vmatpush2.xpose.msra.mxu0 %v2602
        %2997 = vmatprep.subr.mxu0 0.0
        %2998 = vmatpush2.xpose.msra.mxu0 %v2600
        %2999 = vmatprep.subr.mxu0 0.0
        %3000 = vmatpush2.xpose.msra.mxu0 %v2598
        %3001 = vmatprep.subr.mxu0 0.0
        %3002 = vmatpush2.xpose.msra.mxu0 %v2596
        %3003 = vmatprep.subr.mxu0 0.0
        %3004 = vmatpush2.xpose.msra.mxu0 %v2594
        %3005 = vmatprep.subr.mxu0 0.0
        %3006 = vmatpush2.xpose.msra.mxu0 %v2592
        %3007 = vmatprep.subr.mxu0 0.0
        %3008 = vmatpush2.xpose.msra.mxu0 %v2590
        %3009 = vmatprep.subr.mxu0 0.0
        %3010 = vmatpush2.xpose.msra.mxu0 %v2588
        %3011 = vmatprep.subr.mxu0 0.0
        %3012 = vmatpush2.xpose.msra.mxu0 %v2586
        %3013 = vmatprep.subr.mxu0 0.0
        %3014 = vmatpush2.xpose.msra.mxu0 %v2584
        %3015 = vmatprep.subr.mxu0 0.0
        %3016 = vmatpush2.xpose.msra.mxu0 %v2582
        %3017 = vmatprep.subr.mxu0 0.0
        %3018 = vmatpush2.xpose.msra.mxu0 %v2580
        %3019 = vmatprep.subr.mxu0 0.0
        %3020 = vmatpush2.xpose.msra.mxu0 %v2578
        %3021 = vmatprep.subr.mxu0 0.0
        %3022 = vmatpush2.xpose.msra.mxu0 %v2576
        %3023 = vmatprep.mubr.f32.mxu0 0.0
        %3024 = vmatmul.mubr.f32.gmra.mxu0 %v2953
        %v3025 = vpop.f32.mrf.mxu0
        %v3026 = vadd.f32 0.0, %v3025
        %v3027 = vpop.f32.mrf.mxu0
        %v3028 = vadd.f32 0.0, %v3027
        %3029 = vdwg.mxu0
        %v3030 = vadd.f32 %v2911, %v3026
        %v3031 = vadd.f32 %v2912, %v3028
        %s3032 = scalar_lea.vmem %s3, 60
        %v3033 = vld [vmem:[%s3032] sm:$0xf]
        %3034 = vxpose.xlu0.b32.start [1/16] %v3033, 128
        %3035 = vxpose.xlu0.b32.cont [2/16] 0.0, 128
        %3036 = vxpose.xlu0.b32.cont [3/16] 0.0, 128
        %3037 = vxpose.xlu0.b32.cont [4/16] 0.0, 128
        %3038 = vxpose.xlu0.b32.cont [5/16] 0.0, 128
        %3039 = vxpose.xlu0.b32.cont [6/16] 0.0, 128
        %3040 = vxpose.xlu0.b32.cont [7/16] 0.0, 128
        %3041 = vxpose.xlu0.b32.cont [8/16] 0.0, 128
        %3042 = vxpose.xlu0.b32.cont [9/16] 0.0, 128
        %3043 = vxpose.xlu0.b32.cont [10/16] 0.0, 128
        %3044 = vxpose.xlu0.b32.cont [11/16] 0.0, 128
        %3045 = vxpose.xlu0.b32.cont [12/16] 0.0, 128
        %3046 = vxpose.xlu0.b32.cont [13/16] 0.0, 128
        %3047 = vxpose.xlu0.b32.cont [14/16] 0.0, 128
        %3048 = vxpose.xlu0.b32.cont [15/16] 0.0, 128
        %3049 = vxpose.xlu0.b32.end [16/16] 0.0, 128
        %v3050 = vpop.trf.xlu0
        %v3051 = vpop.trf.xlu0
        %v3052 = vpop.trf.xlu0
        %v3053 = vpop.trf.xlu0
        %v3054 = vpop.trf.xlu0
        %v3055 = vpop.trf.xlu0
        %v3056 = vpop.trf.xlu0
        %v3057 = vpop.trf.xlu0
        %v3058 = vpop.trf.xlu0
        %v3059 = vpop.trf.xlu0
        %v3060 = vpop.trf.xlu0
        %v3061 = vpop.trf.xlu0
        %v3062 = vpop.trf.xlu0
        %v3063 = vpop.trf.xlu0
        %v3064 = vpop.trf.xlu0
        %v3065 = vpop.trf.xlu0
        %v3067 = vsel %vm619, %v3050, 0
        %v3070 = vsel %vm619, %v1944, 0
        %v3073 = vsel %vm619, %v1945, 0
        %3075 = vmatprep.subr.mxu0 0.0
        %3076 = vmatpush1.xpose.msra.mxu0 %v2042
        %3077 = vmatprep.subr.mxu0 0.0
        %3078 = vmatpush1.xpose.msra.mxu0 %v2039
        %3079 = vmatprep.subr.mxu0 0.0
        %3080 = vmatpush1.xpose.msra.mxu0 %v2036
        %3081 = vmatprep.subr.mxu0 0.0
        %3082 = vmatpush1.xpose.msra.mxu0 %v2033
        %3083 = vmatprep.subr.mxu0 0.0
        %3084 = vmatpush1.xpose.msra.mxu0 %v2030
        %3085 = vmatprep.subr.mxu0 0.0
        %3086 = vmatpush1.xpose.msra.mxu0 %v2027
        %3087 = vmatprep.subr.mxu0 0.0
        %3088 = vmatpush1.xpose.msra.mxu0 %v2024
        %3089 = vmatprep.subr.mxu0 0.0
        %3090 = vmatpush1.xpose.msra.mxu0 %v2021
        %3091 = vmatprep.subr.mxu0 0.0
        %3092 = vmatpush1.xpose.msra.mxu0 %v2018
        %3093 = vmatprep.subr.mxu0 0.0
        %3094 = vmatpush1.xpose.msra.mxu0 %v2015
        %3095 = vmatprep.subr.mxu0 0.0
        %3096 = vmatpush1.xpose.msra.mxu0 %v2012
        %3097 = vmatprep.subr.mxu0 0.0
        %3098 = vmatpush1.xpose.msra.mxu0 %v2009
        %3099 = vmatprep.subr.mxu0 0.0
        %3100 = vmatpush1.xpose.msra.mxu0 %v2006
        %3101 = vmatprep.subr.mxu0 0.0
        %3102 = vmatpush1.xpose.msra.mxu0 %v2003
        %3103 = vmatprep.subr.mxu0 0.0
        %3104 = vmatpush1.xpose.msra.mxu0 %v2000
        %3105 = vmatprep.subr.mxu0 0.0
        %3106 = vmatpush1.xpose.msra.mxu0 %v1997
        %3107 = vmatprep.subr.mxu0 0.0
        %3108 = vmatpush2.xpose.msra.mxu0 %v3073
        %3109 = vmatprep.subr.mxu0 0.0
        %3110 = vmatpush2.xpose.msra.mxu0 %v3070
        %3111 = vmatprep.subr.mxu0 0.0
        %3112 = vmatpush2.xpose.msra.mxu0 %v2718
        %3113 = vmatprep.subr.mxu0 0.0
        %3114 = vmatpush2.xpose.msra.mxu0 %v2715
        %3115 = vmatprep.subr.mxu0 0.0
        %3116 = vmatpush2.xpose.msra.mxu0 %v2078
        %3117 = vmatprep.subr.mxu0 0.0
        %3118 = vmatpush2.xpose.msra.mxu0 %v2075
        %3119 = vmatprep.subr.mxu0 0.0
        %3120 = vmatpush2.xpose.msra.mxu0 %v2072
        %3121 = vmatprep.subr.mxu0 0.0
        %3122 = vmatpush2.xpose.msra.mxu0 %v2069
        %3123 = vmatprep.subr.mxu0 0.0
        %3124 = vmatpush2.xpose.msra.mxu0 %v2066
        %3125 = vmatprep.subr.mxu0 0.0
        %3126 = vmatpush2.xpose.msra.mxu0 %v2063
        %3127 = vmatprep.subr.mxu0 0.0
        %3128 = vmatpush2.xpose.msra.mxu0 %v2060
        %3129 = vmatprep.subr.mxu0 0.0
        %3130 = vmatpush2.xpose.msra.mxu0 %v2057
        %3131 = vmatprep.subr.mxu0 0.0
        %3132 = vmatpush2.xpose.msra.mxu0 %v2054
        %3133 = vmatprep.subr.mxu0 0.0
        %3134 = vmatpush2.xpose.msra.mxu0 %v2051
        %3135 = vmatprep.subr.mxu0 0.0
        %3136 = vmatpush2.xpose.msra.mxu0 %v2048
        %3137 = vmatprep.subr.mxu0 0.0
        %3138 = vmatpush2.xpose.msra.mxu0 %v2045
        %3139 = vmatprep.mubr.f32.mxu0 0.0
        %3140 = vmatmul.mubr.f32.gmra.mxu0 %v3067
        %v3141 = vpop.f32.mrf.mxu0
        %v3142 = vadd.f32 0.0, %v3141
        %v3143 = vpop.f32.mrf.mxu0
        %v3144 = vadd.f32 0.0, %v3143
        %3145 = vdwg.mxu0
        %v3146 = vadd.f32 %v3030, %v3142
        %v3147 = vadd.f32 %v3031, %v3144
        %v3149 = vrot.slane %v1944, 1
        %v3150 = vrot.slane %v1945, 1
        %v3151 = vsel %vm504, %v3149, %v3150
        %v3152 = vrot.slane %v1946, 1
        %v3153 = vsel %vm504, %v3150, %v3152
        %s3154 = scalar_lea.vmem %s3, 64
        %v3155 = vld [vmem:[%s3154] sm:$0xf]
        %3156 = vxpose.xlu0.b32.start [1/16] %v3155, 128
        %3157 = vxpose.xlu0.b32.cont [2/16] 0.0, 128
        %3158 = vxpose.xlu0.b32.cont [3/16] 0.0, 128
        %3159 = vxpose.xlu0.b32.cont [4/16] 0.0, 128
        %3160 = vxpose.xlu0.b32.cont [5/16] 0.0, 128
        %3161 = vxpose.xlu0.b32.cont [6/16] 0.0, 128
        %3162 = vxpose.xlu0.b32.cont [7/16] 0.0, 128
        %3163 = vxpose.xlu0.b32.cont [8/16] 0.0, 128
        %3164 = vxpose.xlu0.b32.cont [9/16] 0.0, 128
        %3165 = vxpose.xlu0.b32.cont [10/16] 0.0, 128
        %3166 = vxpose.xlu0.b32.cont [11/16] 0.0, 128
        %3167 = vxpose.xlu0.b32.cont [12/16] 0.0, 128
        %3168 = vxpose.xlu0.b32.cont [13/16] 0.0, 128
        %3169 = vxpose.xlu0.b32.cont [14/16] 0.0, 128
        %3170 = vxpose.xlu0.b32.cont [15/16] 0.0, 128
        %3171 = vxpose.xlu0.b32.end [16/16] 0.0, 128
        %v3172 = vpop.trf.xlu0
        %v3173 = vpop.trf.xlu0
        %v3174 = vpop.trf.xlu0
        %v3175 = vpop.trf.xlu0
        %v3176 = vpop.trf.xlu0
        %v3177 = vpop.trf.xlu0
        %v3178 = vpop.trf.xlu0
        %v3179 = vpop.trf.xlu0
        %v3180 = vpop.trf.xlu0
        %v3181 = vpop.trf.xlu0
        %v3182 = vpop.trf.xlu0
        %v3183 = vpop.trf.xlu0
        %v3184 = vpop.trf.xlu0
        %v3185 = vpop.trf.xlu0
        %v3186 = vpop.trf.xlu0
        %v3187 = vpop.trf.xlu0
        %v3189 = vsel %vm619, %v3172, 0
        %v3191 = vsel %vm619, %v3151, 0
        %v3193 = vsel %vm619, %v3153, 0
        %3195 = vmatprep.subr.mxu0 0.0
        %3196 = vmatpush1.xpose.msra.mxu0 %v2324
        %3197 = vmatprep.subr.mxu0 0.0
        %3198 = vmatpush1.xpose.msra.mxu0 %v2322
        %3199 = vmatprep.subr.mxu0 0.0
        %3200 = vmatpush1.xpose.msra.mxu0 %v2320
        %3201 = vmatprep.subr.mxu0 0.0
        %3202 = vmatpush1.xpose.msra.mxu0 %v2318
        %3203 = vmatprep.subr.mxu0 0.0
        %3204 = vmatpush1.xpose.msra.mxu0 %v2316
        %3205 = vmatprep.subr.mxu0 0.0
        %3206 = vmatpush1.xpose.msra.mxu0 %v2314
        %3207 = vmatprep.subr.mxu0 0.0
        %3208 = vmatpush1.xpose.msra.mxu0 %v2312
        %3209 = vmatprep.subr.mxu0 0.0
        %3210 = vmatpush1.xpose.msra.mxu0 %v2310
        %3211 = vmatprep.subr.mxu0 0.0
        %3212 = vmatpush1.xpose.msra.mxu0 %v2308
        %3213 = vmatprep.subr.mxu0 0.0
        %3214 = vmatpush1.xpose.msra.mxu0 %v2306
        %3215 = vmatprep.subr.mxu0 0.0
        %3216 = vmatpush1.xpose.msra.mxu0 %v2304
        %3217 = vmatprep.subr.mxu0 0.0
        %3218 = vmatpush1.xpose.msra.mxu0 %v2302
        %3219 = vmatprep.subr.mxu0 0.0
        %3220 = vmatpush1.xpose.msra.mxu0 %v2300
        %3221 = vmatprep.subr.mxu0 0.0
        %3222 = vmatpush1.xpose.msra.mxu0 %v2298
        %3223 = vmatprep.subr.mxu0 0.0
        %3224 = vmatpush1.xpose.msra.mxu0 %v2296
        %3225 = vmatprep.subr.mxu0 0.0
        %3226 = vmatpush1.xpose.msra.mxu0 %v2294
        %3227 = vmatprep.subr.mxu0 0.0
        %3228 = vmatpush2.xpose.msra.mxu0 %v3193
        %3229 = vmatprep.subr.mxu0 0.0
        %3230 = vmatpush2.xpose.msra.mxu0 %v3191
        %3231 = vmatprep.subr.mxu0 0.0
        %3232 = vmatpush2.xpose.msra.mxu0 %v2838
        %3233 = vmatprep.subr.mxu0 0.0
        %3234 = vmatpush2.xpose.msra.mxu0 %v2836
        %3235 = vmatprep.subr.mxu0 0.0
        %3236 = vmatpush2.xpose.msra.mxu0 %v2348
        %3237 = vmatprep.subr.mxu0 0.0
        %3238 = vmatpush2.xpose.msra.mxu0 %v2346
        %3239 = vmatprep.subr.mxu0 0.0
        %3240 = vmatpush2.xpose.msra.mxu0 %v2344
        %3241 = vmatprep.subr.mxu0 0.0
        %3242 = vmatpush2.xpose.msra.mxu0 %v2342
        %3243 = vmatprep.subr.mxu0 0.0
        %3244 = vmatpush2.xpose.msra.mxu0 %v2340
        %3245 = vmatprep.subr.mxu0 0.0
        %3246 = vmatpush2.xpose.msra.mxu0 %v2338
        %3247 = vmatprep.subr.mxu0 0.0
        %3248 = vmatpush2.xpose.msra.mxu0 %v2336
        %3249 = vmatprep.subr.mxu0 0.0
        %3250 = vmatpush2.xpose.msra.mxu0 %v2334
        %3251 = vmatprep.subr.mxu0 0.0
        %3252 = vmatpush2.xpose.msra.mxu0 %v2332
        %3253 = vmatprep.subr.mxu0 0.0
        %3254 = vmatpush2.xpose.msra.mxu0 %v2330
        %3255 = vmatprep.subr.mxu0 0.0
        %3256 = vmatpush2.xpose.msra.mxu0 %v2328
        %3257 = vmatprep.subr.mxu0 0.0
        %3258 = vmatpush2.xpose.msra.mxu0 %v2326
        %3259 = vmatprep.mubr.f32.mxu0 0.0
        %3260 = vmatmul.mubr.f32.gmra.mxu0 %v3189
        %v3261 = vpop.f32.mrf.mxu0
        %v3262 = vadd.f32 0.0, %v3261
        %v3263 = vpop.f32.mrf.mxu0
        %v3264 = vadd.f32 0.0, %v3263
        %3265 = vdwg.mxu0
        %v3266 = vadd.f32 %v3146, %v3262
        %v3267 = vadd.f32 %v3147, %v3264
        %v3268 = vrot.slane %v1944, 2
        %v3269 = vrot.slane %v1945, 2
        %v3270 = vsel %vm928, %v3268, %v3269
        %v3271 = vrot.slane %v1946, 2
        %v3272 = vsel %vm928, %v3269, %v3271
        %s3273 = scalar_lea.vmem %s3, 68
        %v3274 = vld [vmem:[%s3273] sm:$0xf]
        %3275 = vxpose.xlu0.b32.start [1/16] %v3274, 128
        %3276 = vxpose.xlu0.b32.cont [2/16] 0.0, 128
        %3277 = vxpose.xlu0.b32.cont [3/16] 0.0, 128
        %3278 = vxpose.xlu0.b32.cont [4/16] 0.0, 128
        %3279 = vxpose.xlu0.b32.cont [5/16] 0.0, 128
        %3280 = vxpose.xlu0.b32.cont [6/16] 0.0, 128
        %3281 = vxpose.xlu0.b32.cont [7/16] 0.0, 128
        %3282 = vxpose.xlu0.b32.cont [8/16] 0.0, 128
        %3283 = vxpose.xlu0.b32.cont [9/16] 0.0, 128
        %3284 = vxpose.xlu0.b32.cont [10/16] 0.0, 128
        %3285 = vxpose.xlu0.b32.cont [11/16] 0.0, 128
        %3286 = vxpose.xlu0.b32.cont [12/16] 0.0, 128
        %3287 = vxpose.xlu0.b32.cont [13/16] 0.0, 128
        %3288 = vxpose.xlu0.b32.cont [14/16] 0.0, 128
        %3289 = vxpose.xlu0.b32.cont [15/16] 0.0, 128
        %3290 = vxpose.xlu0.b32.end [16/16] 0.0, 128
        %v3291 = vpop.trf.xlu0
        %v3292 = vpop.trf.xlu0
        %v3293 = vpop.trf.xlu0
        %v3294 = vpop.trf.xlu0
        %v3295 = vpop.trf.xlu0
        %v3296 = vpop.trf.xlu0
        %v3297 = vpop.trf.xlu0
        %v3298 = vpop.trf.xlu0
        %v3299 = vpop.trf.xlu0
        %v3300 = vpop.trf.xlu0
        %v3301 = vpop.trf.xlu0
        %v3302 = vpop.trf.xlu0
        %v3303 = vpop.trf.xlu0
        %v3304 = vpop.trf.xlu0
        %v3305 = vpop.trf.xlu0
        %v3306 = vpop.trf.xlu0
        %v3308 = vsel %vm619, %v3291, 0
        %v3310 = vsel %vm619, %v3270, 0
        %v3312 = vsel %vm619, %v3272, 0
        %3314 = vmatprep.subr.mxu0 0.0
        %3315 = vmatpush1.xpose.msra.mxu0 %v2578
        %3316 = vmatprep.subr.mxu0 0.0
        %3317 = vmatpush1.xpose.msra.mxu0 %v2576
        %3318 = vmatprep.subr.mxu0 0.0
        %3319 = vmatpush1.xpose.msra.mxu0 %v2574
        %3320 = vmatprep.subr.mxu0 0.0
        %3321 = vmatpush1.xpose.msra.mxu0 %v2572
        %3322 = vmatprep.subr.mxu0 0.0
        %3323 = vmatpush1.xpose.msra.mxu0 %v2570
        %3324 = vmatprep.subr.mxu0 0.0
        %3325 = vmatpush1.xpose.msra.mxu0 %v2568
        %3326 = vmatprep.subr.mxu0 0.0
        %3327 = vmatpush1.xpose.msra.mxu0 %v2566
        %3328 = vmatprep.subr.mxu0 0.0
        %3329 = vmatpush1.xpose.msra.mxu0 %v2564
        %3330 = vmatprep.subr.mxu0 0.0
        %3331 = vmatpush1.xpose.msra.mxu0 %v2562
        %3332 = vmatprep.subr.mxu0 0.0
        %3333 = vmatpush1.xpose.msra.mxu0 %v2560
        %3334 = vmatprep.subr.mxu0 0.0
        %3335 = vmatpush1.xpose.msra.mxu0 %v2558
        %3336 = vmatprep.subr.mxu0 0.0
        %3337 = vmatpush1.xpose.msra.mxu0 %v2556
        %3338 = vmatprep.subr.mxu0 0.0
        %3339 = vmatpush1.xpose.msra.mxu0 %v2554
        %3340 = vmatprep.subr.mxu0 0.0
        %3341 = vmatpush1.xpose.msra.mxu0 %v2552
        %3342 = vmatprep.subr.mxu0 0.0
        %3343 = vmatpush1.xpose.msra.mxu0 %v2550
        %3344 = vmatprep.subr.mxu0 0.0
        %3345 = vmatpush1.xpose.msra.mxu0 %v2548
        %3346 = vmatprep.subr.mxu0 0.0
        %3347 = vmatpush2.xpose.msra.mxu0 %v3312
        %3348 = vmatprep.subr.mxu0 0.0
        %3349 = vmatpush2.xpose.msra.mxu0 %v3310
        %3350 = vmatprep.subr.mxu0 0.0
        %3351 = vmatpush2.xpose.msra.mxu0 %v2957
        %3352 = vmatprep.subr.mxu0 0.0
        %3353 = vmatpush2.xpose.msra.mxu0 %v2955
        %3354 = vmatprep.subr.mxu0 0.0
        %3355 = vmatpush2.xpose.msra.mxu0 %v2602
        %3356 = vmatprep.subr.mxu0 0.0
        %3357 = vmatpush2.xpose.msra.mxu0 %v2600
        %3358 = vmatprep.subr.mxu0 0.0
        %3359 = vmatpush2.xpose.msra.mxu0 %v2598
        %3360 = vmatprep.subr.mxu0 0.0
        %3361 = vmatpush2.xpose.msra.mxu0 %v2596
        %3362 = vmatprep.subr.mxu0 0.0
        %3363 = vmatpush2.xpose.msra.mxu0 %v2594
        %3364 = vmatprep.subr.mxu0 0.0
        %3365 = vmatpush2.xpose.msra.mxu0 %v2592
        %3366 = vmatprep.subr.mxu0 0.0
        %3367 = vmatpush2.xpose.msra.mxu0 %v2590
        %3368 = vmatprep.subr.mxu0 0.0
        %3369 = vmatpush2.xpose.msra.mxu0 %v2588
        %3370 = vmatprep.subr.mxu0 0.0
        %3371 = vmatpush2.xpose.msra.mxu0 %v2586
        %3372 = vmatprep.subr.mxu0 0.0
        %3373 = vmatpush2.xpose.msra.mxu0 %v2584
        %3374 = vmatprep.subr.mxu0 0.0
        %3375 = vmatpush2.xpose.msra.mxu0 %v2582
        %3376 = vmatprep.subr.mxu0 0.0
        %3377 = vmatpush2.xpose.msra.mxu0 %v2580
        %3378 = vmatprep.mubr.f32.mxu0 0.0
        %3379 = vmatmul.mubr.f32.gmra.mxu0 %v3308
        %v3380 = vpop.f32.mrf.mxu0
        %v3381 = vadd.f32 0.0, %v3380
        %v3382 = vpop.f32.mrf.mxu0
        %v3383 = vadd.f32 0.0, %v3382
        %3384 = vdwg.mxu0
        %v3385 = vadd.f32 %v3266, %v3381
        %v3386 = vadd.f32 %v3267, %v3383
        %v3387 = vld [vmem:[%s383] sm:$0xff]
        %v3388 = vld [vmem:[%s383 + $0x8] sm:$0xff]
        %v3389 = vld [vmem:[%s383 + $0x10] sm:$0x3]
        %v3390 = vld [vmem:[%s383 + $0x18] sm:$0xff]
        %v3391 = vld [vmem:[%s383 + $0x20] sm:$0xff]
        %v3392 = vld [vmem:[%s383 + $0x28] sm:$0x3]
        %v3393 = vld [vmem:[%s383 + $0x30] sm:$0xff]
        %v3394 = vld [vmem:[%s383 + $0x38] sm:$0xff]
        %v3395 = vld [vmem:[%s383 + $0x40] sm:$0x3]
        %v3396 = vld [vmem:[%s383 + $0x48] sm:$0xff]
        %v3397 = vld [vmem:[%s383 + $0x50] sm:$0xff]
        %v3398 = vld [vmem:[%s383 + $0x58] sm:$0x3]
        %v3399 = vld [vmem:[%s383 + $0x60] sm:$0xff]
        %v3400 = vld [vmem:[%s383 + $0x68] sm:$0xff]
        %v3401 = vld [vmem:[%s383 + $0x70] sm:$0x3]
        %v3402 = vld [vmem:[%s383 + $0x78] sm:$0xff]
        %v3403 = vld [vmem:[%s383 + $0x80] sm:$0xff]
        %v3404 = vld [vmem:[%s383 + $0x88] sm:$0x3]
        %v3405 = vld [vmem:[%s383 + $0x90] sm:$0xff]
        %v3406 = vld [vmem:[%s383 + $0x98] sm:$0xff]
        %v3407 = vld [vmem:[%s383 + $0xa0] sm:$0x3]
        %v3408 = vld [vmem:[%s383 + $0xa8] sm:$0xff]
        %v3409 = vld [vmem:[%s383 + $0xb0] sm:$0xff]
        %v3410 = vld [vmem:[%s383 + $0xb8] sm:$0x3]
        %v3411 = vld [vmem:[%s383 + $0xc0] sm:$0xff]
        %v3412 = vld [vmem:[%s383 + $0xc8] sm:$0xff]
        %v3413 = vld [vmem:[%s383 + $0xd0] sm:$0x3]
        %v3414 = vld [vmem:[%s383 + $0xd8] sm:$0xff]
        %v3415 = vld [vmem:[%s383 + $0xe0] sm:$0xff]
        %v3416 = vld [vmem:[%s383 + $0xe8] sm:$0x3]
        %v3417 = vld [vmem:[%s383 + $0xf0] sm:$0xff]
        %v3418 = vld [vmem:[%s383 + $0xf8] sm:$0xff]
        %v3419 = vld [vmem:[%s383 + $0x100] sm:$0x3]
        %v3420 = vld [vmem:[%s383 + $0x108] sm:$0xff]
        %v3421 = vld [vmem:[%s383 + $0x110] sm:$0xff]
        %v3422 = vld [vmem:[%s383 + $0x118] sm:$0x3]
        %v3423 = vld [vmem:[%s383 + $0x120] sm:$0xff]
        %v3424 = vld [vmem:[%s383 + $0x128] sm:$0xff]
        %v3425 = vld [vmem:[%s383 + $0x130] sm:$0x3]
        %v3426 = vld [vmem:[%s383 + $0x138] sm:$0xff]
        %v3427 = vld [vmem:[%s383 + $0x140] sm:$0xff]
        %v3428 = vld [vmem:[%s383 + $0x148] sm:$0x3]
        %v3429 = vld [vmem:[%s383 + $0x150] sm:$0xff]
        %v3430 = vld [vmem:[%s383 + $0x158] sm:$0xff]
        %v3431 = vld [vmem:[%s383 + $0x160] sm:$0x3]
        %v3432 = vld [vmem:[%s383 + $0x168] sm:$0xff]
        %v3433 = vld [vmem:[%s383 + $0x170] sm:$0xff]
        %v3434 = vld [vmem:[%s383 + $0x178] sm:$0x3]
        %v3435 = vld [vmem:[%s383 + $0x180] sm:$0xff]
        %v3436 = vld [vmem:[%s383 + $0x188] sm:$0xff]
        %v3437 = vld [vmem:[%s383 + $0x190] sm:$0x3]
        %v3438 = vld [vmem:[%s383 + $0x198] sm:$0xff]
        %v3439 = vld [vmem:[%s383 + $0x1a0] sm:$0xff]
        %v3440 = vld [vmem:[%s383 + $0x1a8] sm:$0x3]
        %s3441 = scalar_lea.vmem %s3, 72
        %v3442 = vld [vmem:[%s3441] sm:$0xf]
        %3443 = vxpose.xlu0.b32.start [1/16] %v3442, 128
        %3444 = vxpose.xlu0.b32.cont [2/16] 0.0, 128
        %3445 = vxpose.xlu0.b32.cont [3/16] 0.0, 128
        %3446 = vxpose.xlu0.b32.cont [4/16] 0.0, 128
        %3447 = vxpose.xlu0.b32.cont [5/16] 0.0, 128
        %3448 = vxpose.xlu0.b32.cont [6/16] 0.0, 128
        %3449 = vxpose.xlu0.b32.cont [7/16] 0.0, 128
        %3450 = vxpose.xlu0.b32.cont [8/16] 0.0, 128
        %3451 = vxpose.xlu0.b32.cont [9/16] 0.0, 128
        %3452 = vxpose.xlu0.b32.cont [10/16] 0.0, 128
        %3453 = vxpose.xlu0.b32.cont [11/16] 0.0, 128
        %3454 = vxpose.xlu0.b32.cont [12/16] 0.0, 128
        %3455 = vxpose.xlu0.b32.cont [13/16] 0.0, 128
        %3456 = vxpose.xlu0.b32.cont [14/16] 0.0, 128
        %3457 = vxpose.xlu0.b32.cont [15/16] 0.0, 128
        %3458 = vxpose.xlu0.b32.end [16/16] 0.0, 128
        %v3459 = vpop.trf.xlu0
        %v3460 = vpop.trf.xlu0
        %v3461 = vpop.trf.xlu0
        %v3462 = vpop.trf.xlu0
        %v3463 = vpop.trf.xlu0
        %v3464 = vpop.trf.xlu0
        %v3465 = vpop.trf.xlu0
        %v3466 = vpop.trf.xlu0
        %v3467 = vpop.trf.xlu0
        %v3468 = vpop.trf.xlu0
        %v3469 = vpop.trf.xlu0
        %v3470 = vpop.trf.xlu0
        %v3471 = vpop.trf.xlu0
        %v3472 = vpop.trf.xlu0
        %v3473 = vpop.trf.xlu0
        %v3474 = vpop.trf.xlu0
        %v3476 = vsel %vm619, %v3459, 0
        %v3479 = vsel %vm619, %v3387, 0
        %v3482 = vsel %vm619, %v3388, 0
        %v3485 = vsel %vm619, %v3390, 0
        %v3488 = vsel %vm619, %v3391, 0
        %v3491 = vsel %vm619, %v3393, 0
        %v3494 = vsel %vm619, %v3394, 0
        %v3497 = vsel %vm619, %v3396, 0
        %v3500 = vsel %vm619, %v3397, 0
        %v3503 = vsel %vm619, %v3399, 0
        %v3506 = vsel %vm619, %v3400, 0
        %v3509 = vsel %vm619, %v3402, 0
        %v3512 = vsel %vm619, %v3403, 0
        %v3515 = vsel %vm619, %v3405, 0
        %v3518 = vsel %vm619, %v3406, 0
        %v3521 = vsel %vm619, %v3408, 0
        %v3524 = vsel %vm619, %v3409, 0
        %v3527 = vsel %vm619, %v3411, 0
        %v3530 = vsel %vm619, %v3412, 0
        %v3533 = vsel %vm619, %v3414, 0
        %v3536 = vsel %vm619, %v3415, 0
        %v3539 = vsel %vm619, %v3417, 0
        %v3542 = vsel %vm619, %v3418, 0
        %v3545 = vsel %vm619, %v3420, 0
        %v3548 = vsel %vm619, %v3421, 0
        %v3551 = vsel %vm619, %v3423, 0
        %v3554 = vsel %vm619, %v3424, 0
        %v3557 = vsel %vm619, %v3426, 0
        %v3560 = vsel %vm619, %v3427, 0
        %v3563 = vsel %vm619, %v3429, 0
        %v3566 = vsel %vm619, %v3430, 0
        %v3569 = vsel %vm619, %v3432, 0
        %v3572 = vsel %vm619, %v3433, 0
        %3574 = vmatprep.subr.mxu0 0.0
        %3575 = vmatpush1.xpose.msra.mxu0 %v3524
        %3576 = vmatprep.subr.mxu0 0.0
        %3577 = vmatpush1.xpose.msra.mxu0 %v3521
        %3578 = vmatprep.subr.mxu0 0.0
        %3579 = vmatpush1.xpose.msra.mxu0 %v3518
        %3580 = vmatprep.subr.mxu0 0.0
        %3581 = vmatpush1.xpose.msra.mxu0 %v3515
        %3582 = vmatprep.subr.mxu0 0.0
        %3583 = vmatpush1.xpose.msra.mxu0 %v3512
        %3584 = vmatprep.subr.mxu0 0.0
        %3585 = vmatpush1.xpose.msra.mxu0 %v3509
        %3586 = vmatprep.subr.mxu0 0.0
        %3587 = vmatpush1.xpose.msra.mxu0 %v3506
        %3588 = vmatprep.subr.mxu0 0.0
        %3589 = vmatpush1.xpose.msra.mxu0 %v3503
        %3590 = vmatprep.subr.mxu0 0.0
        %3591 = vmatpush1.xpose.msra.mxu0 %v3500
        %3592 = vmatprep.subr.mxu0 0.0
        %3593 = vmatpush1.xpose.msra.mxu0 %v3497
        %3594 = vmatprep.subr.mxu0 0.0
        %3595 = vmatpush1.xpose.msra.mxu0 %v3494
        %3596 = vmatprep.subr.mxu0 0.0
        %3597 = vmatpush1.xpose.msra.mxu0 %v3491
        %3598 = vmatprep.subr.mxu0 0.0
        %3599 = vmatpush1.xpose.msra.mxu0 %v3488
        %3600 = vmatprep.subr.mxu0 0.0
        %3601 = vmatpush1.xpose.msra.mxu0 %v3485
        %3602 = vmatprep.subr.mxu0 0.0
        %3603 = vmatpush1.xpose.msra.mxu0 %v3482
        %3604 = vmatprep.subr.mxu0 0.0
        %3605 = vmatpush1.xpose.msra.mxu0 %v3479
        %3606 = vmatprep.subr.mxu0 0.0
        %3607 = vmatpush2.xpose.msra.mxu0 %v3572
        %3608 = vmatprep.subr.mxu0 0.0
        %3609 = vmatpush2.xpose.msra.mxu0 %v3569
        %3610 = vmatprep.subr.mxu0 0.0
        %3611 = vmatpush2.xpose.msra.mxu0 %v3566
        %3612 = vmatprep.subr.mxu0 0.0
        %3613 = vmatpush2.xpose.msra.mxu0 %v3563
        %3614 = vmatprep.subr.mxu0 0.0
        %3615 = vmatpush2.xpose.msra.mxu0 %v3560
        %3616 = vmatprep.subr.mxu0 0.0
        %3617 = vmatpush2.xpose.msra.mxu0 %v3557
        %3618 = vmatprep.subr.mxu0 0.0
        %3619 = vmatpush2.xpose.msra.mxu0 %v3554
        %3620 = vmatprep.subr.mxu0 0.0
        %3621 = vmatpush2.xpose.msra.mxu0 %v3551
        %3622 = vmatprep.subr.mxu0 0.0
        %3623 = vmatpush2.xpose.msra.mxu0 %v3548
        %3624 = vmatprep.subr.mxu0 0.0
        %3625 = vmatpush2.xpose.msra.mxu0 %v3545
        %3626 = vmatprep.subr.mxu0 0.0
        %3627 = vmatpush2.xpose.msra.mxu0 %v3542
        %3628 = vmatprep.subr.mxu0 0.0
        %3629 = vmatpush2.xpose.msra.mxu0 %v3539
        %3630 = vmatprep.subr.mxu0 0.0
        %3631 = vmatpush2.xpose.msra.mxu0 %v3536
        %3632 = vmatprep.subr.mxu0 0.0
        %3633 = vmatpush2.xpose.msra.mxu0 %v3533
        %3634 = vmatprep.subr.mxu0 0.0
        %3635 = vmatpush2.xpose.msra.mxu0 %v3530
        %3636 = vmatprep.subr.mxu0 0.0
        %3637 = vmatpush2.xpose.msra.mxu0 %v3527
        %3638 = vmatprep.mubr.f32.mxu0 0.0
        %3639 = vmatmul.mubr.f32.gmra.mxu0 %v3476
        %v3640 = vpop.f32.mrf.mxu0
        %v3641 = vadd.f32 0.0, %v3640
        %v3642 = vpop.f32.mrf.mxu0
        %v3643 = vadd.f32 0.0, %v3642
        %3644 = vdwg.mxu0
        %v3645 = vadd.f32 %v3385, %v3641
        %v3646 = vadd.f32 %v3386, %v3643
        %v3663 = vrot.slane %v3387, 1
        %v3664 = vrot.slane %v3388, 1
        %v3665 = vsel %vm504, %v3663, %v3664
        %v3666 = vrot.slane %v3389, 1
        %v3667 = vsel %vm504, %v3664, %v3666
        %v3668 = vrot.slane %v3390, 1
        %v3669 = vrot.slane %v3391, 1
        %v3670 = vsel %vm504, %v3668, %v3669
        %v3671 = vrot.slane %v3392, 1
        %v3672 = vsel %vm504, %v3669, %v3671
        %v3673 = vrot.slane %v3393, 1
        %v3674 = vrot.slane %v3394, 1
        %v3675 = vsel %vm504, %v3673, %v3674
        %v3676 = vrot.slane %v3395, 1
        %v3677 = vsel %vm504, %v3674, %v3676
        %v3678 = vrot.slane %v3396, 1
        %v3679 = vrot.slane %v3397, 1
        %v3680 = vsel %vm504, %v3678, %v3679
        %v3681 = vrot.slane %v3398, 1
        %v3682 = vsel %vm504, %v3679, %v3681
        %v3683 = vrot.slane %v3399, 1
        %v3684 = vrot.slane %v3400, 1
        %v3685 = vsel %vm504, %v3683, %v3684
        %v3686 = vrot.slane %v3401, 1
        %v3687 = vsel %vm504, %v3684, %v3686
        %v3688 = vrot.slane %v3402, 1
        %v3689 = vrot.slane %v3403, 1
        %v3690 = vsel %vm504, %v3688, %v3689
        %v3691 = vrot.slane %v3404, 1
        %v3692 = vsel %vm504, %v3689, %v3691
        %v3693 = vrot.slane %v3405, 1
        %v3694 = vrot.slane %v3406, 1
        %v3695 = vsel %vm504, %v3693, %v3694
        %v3696 = vrot.slane %v3407, 1
        %v3697 = vsel %vm504, %v3694, %v3696
        %v3698 = vrot.slane %v3408, 1
        %v3699 = vrot.slane %v3409, 1
        %v3700 = vsel %vm504, %v3698, %v3699
        %v3701 = vrot.slane %v3410, 1
        %v3702 = vsel %vm504, %v3699, %v3701
        %v3703 = vrot.slane %v3411, 1
        %v3704 = vrot.slane %v3412, 1
        %v3705 = vsel %vm504, %v3703, %v3704
        %v3706 = vrot.slane %v3413, 1
        %v3707 = vsel %vm504, %v3704, %v3706
        %v3708 = vrot.slane %v3414, 1
        %v3709 = vrot.slane %v3415, 1
        %v3710 = vsel %vm504, %v3708, %v3709
        %v3711 = vrot.slane %v3416, 1
        %v3712 = vsel %vm504, %v3709, %v3711
        %v3713 = vrot.slane %v3417, 1
        %v3714 = vrot.slane %v3418, 1
        %v3715 = vsel %vm504, %v3713, %v3714
        %v3716 = vrot.slane %v3419, 1
        %v3717 = vsel %vm504, %v3714, %v3716
        %v3718 = vrot.slane %v3420, 1
        %v3719 = vrot.slane %v3421, 1
        %v3720 = vsel %vm504, %v3718, %v3719
        %v3721 = vrot.slane %v3422, 1
        %v3722 = vsel %vm504, %v3719, %v3721
        %v3723 = vrot.slane %v3423, 1
        %v3724 = vrot.slane %v3424, 1
        %v3725 = vsel %vm504, %v3723, %v3724
        %v3726 = vrot.slane %v3425, 1
        %v3727 = vsel %vm504, %v3724, %v3726
        %v3728 = vrot.slane %v3426, 1
        %v3729 = vrot.slane %v3427, 1
        %v3730 = vsel %vm504, %v3728, %v3729
        %v3731 = vrot.slane %v3428, 1
        %v3732 = vsel %vm504, %v3729, %v3731
        %v3733 = vrot.slane %v3429, 1
        %v3734 = vrot.slane %v3430, 1
        %v3735 = vsel %vm504, %v3733, %v3734
        %v3736 = vrot.slane %v3431, 1
        %v3737 = vsel %vm504, %v3734, %v3736
        %v3738 = vrot.slane %v3432, 1
        %v3739 = vrot.slane %v3433, 1
        %v3740 = vsel %vm504, %v3738, %v3739
        %v3741 = vrot.slane %v3434, 1
        %v3742 = vsel %vm504, %v3739, %v3741
        %s3743 = scalar_lea.vmem %s3, 76
        %v3744 = vld [vmem:[%s3743] sm:$0xf]
        %3745 = vxpose.xlu0.b32.start [1/16] %v3744, 128
        %3746 = vxpose.xlu0.b32.cont [2/16] 0.0, 128
        %3747 = vxpose.xlu0.b32.cont [3/16] 0.0, 128
        %3748 = vxpose.xlu0.b32.cont [4/16] 0.0, 128
        %3749 = vxpose.xlu0.b32.cont [5/16] 0.0, 128
        %3750 = vxpose.xlu0.b32.cont [6/16] 0.0, 128
        %3751 = vxpose.xlu0.b32.cont [7/16] 0.0, 128
        %3752 = vxpose.xlu0.b32.cont [8/16] 0.0, 128
        %3753 = vxpose.xlu0.b32.cont [9/16] 0.0, 128
        %3754 = vxpose.xlu0.b32.cont [10/16] 0.0, 128
        %3755 = vxpose.xlu0.b32.cont [11/16] 0.0, 128
        %3756 = vxpose.xlu0.b32.cont [12/16] 0.0, 128
        %3757 = vxpose.xlu0.b32.cont [13/16] 0.0, 128
        %3758 = vxpose.xlu0.b32.cont [14/16] 0.0, 128
        %3759 = vxpose.xlu0.b32.cont [15/16] 0.0, 128
        %3760 = vxpose.xlu0.b32.end [16/16] 0.0, 128
        %v3761 = vpop.trf.xlu0
        %v3762 = vpop.trf.xlu0
        %v3763 = vpop.trf.xlu0
        %v3764 = vpop.trf.xlu0
        %v3765 = vpop.trf.xlu0
        %v3766 = vpop.trf.xlu0
        %v3767 = vpop.trf.xlu0
        %v3768 = vpop.trf.xlu0
        %v3769 = vpop.trf.xlu0
        %v3770 = vpop.trf.xlu0
        %v3771 = vpop.trf.xlu0
        %v3772 = vpop.trf.xlu0
        %v3773 = vpop.trf.xlu0
        %v3774 = vpop.trf.xlu0
        %v3775 = vpop.trf.xlu0
        %v3776 = vpop.trf.xlu0
        %v3778 = vsel %vm619, %v3761, 0
        %v3780 = vsel %vm619, %v3665, 0
        %v3782 = vsel %vm619, %v3667, 0
        %v3784 = vsel %vm619, %v3670, 0
        %v3786 = vsel %vm619, %v3672, 0
        %v3788 = vsel %vm619, %v3675, 0
        %v3790 = vsel %vm619, %v3677, 0
        %v3792 = vsel %vm619, %v3680, 0
        %v3794 = vsel %vm619, %v3682, 0
        %v3796 = vsel %vm619, %v3685, 0
        %v3798 = vsel %vm619, %v3687, 0
        %v3800 = vsel %vm619, %v3690, 0
        %v3802 = vsel %vm619, %v3692, 0
        %v3804 = vsel %vm619, %v3695, 0
        %v3806 = vsel %vm619, %v3697, 0
        %v3808 = vsel %vm619, %v3700, 0
        %v3810 = vsel %vm619, %v3702, 0
        %v3812 = vsel %vm619, %v3705, 0
        %v3814 = vsel %vm619, %v3707, 0
        %v3816 = vsel %vm619, %v3710, 0
        %v3818 = vsel %vm619, %v3712, 0
        %v3820 = vsel %vm619, %v3715, 0
        %v3822 = vsel %vm619, %v3717, 0
        %v3824 = vsel %vm619, %v3720, 0
        %v3826 = vsel %vm619, %v3722, 0
        %v3828 = vsel %vm619, %v3725, 0
        %v3830 = vsel %vm619, %v3727, 0
        %v3832 = vsel %vm619, %v3730, 0
        %v3834 = vsel %vm619, %v3732, 0
        %v3836 = vsel %vm619, %v3735, 0
        %v3838 = vsel %vm619, %v3737, 0
        %v3840 = vsel %vm619, %v3740, 0
        %v3842 = vsel %vm619, %v3742, 0
        %3844 = vmatprep.subr.mxu0 0.0
        %3845 = vmatpush1.xpose.msra.mxu0 %v3810
        %3846 = vmatprep.subr.mxu0 0.0
        %3847 = vmatpush1.xpose.msra.mxu0 %v3808
        %3848 = vmatprep.subr.mxu0 0.0
        %3849 = vmatpush1.xpose.msra.mxu0 %v3806
        %3850 = vmatprep.subr.mxu0 0.0
        %3851 = vmatpush1.xpose.msra.mxu0 %v3804
        %3852 = vmatprep.subr.mxu0 0.0
        %3853 = vmatpush1.xpose.msra.mxu0 %v3802
        %3854 = vmatprep.subr.mxu0 0.0
        %3855 = vmatpush1.xpose.msra.mxu0 %v3800
        %3856 = vmatprep.subr.mxu0 0.0
        %3857 = vmatpush1.xpose.msra.mxu0 %v3798
        %3858 = vmatprep.subr.mxu0 0.0
        %3859 = vmatpush1.xpose.msra.mxu0 %v3796
        %3860 = vmatprep.subr.mxu0 0.0
        %3861 = vmatpush1.xpose.msra.mxu0 %v3794
        %3862 = vmatprep.subr.mxu0 0.0
        %3863 = vmatpush1.xpose.msra.mxu0 %v3792
        %3864 = vmatprep.subr.mxu0 0.0
        %3865 = vmatpush1.xpose.msra.mxu0 %v3790
        %3866 = vmatprep.subr.mxu0 0.0
        %3867 = vmatpush1.xpose.msra.mxu0 %v3788
        %3868 = vmatprep.subr.mxu0 0.0
        %3869 = vmatpush1.xpose.msra.mxu0 %v3786
        %3870 = vmatprep.subr.mxu0 0.0
        %3871 = vmatpush1.xpose.msra.mxu0 %v3784
        %3872 = vmatprep.subr.mxu0 0.0
        %3873 = vmatpush1.xpose.msra.mxu0 %v3782
        %3874 = vmatprep.subr.mxu0 0.0
        %3875 = vmatpush1.xpose.msra.mxu0 %v3780
        %3876 = vmatprep.subr.mxu0 0.0
        %3877 = vmatpush2.xpose.msra.mxu0 %v3842
        %3878 = vmatprep.subr.mxu0 0.0
        %3879 = vmatpush2.xpose.msra.mxu0 %v3840
        %3880 = vmatprep.subr.mxu0 0.0
        %3881 = vmatpush2.xpose.msra.mxu0 %v3838
        %3882 = vmatprep.subr.mxu0 0.0
        %3883 = vmatpush2.xpose.msra.mxu0 %v3836
        %3884 = vmatprep.subr.mxu0 0.0
        %3885 = vmatpush2.xpose.msra.mxu0 %v3834
        %3886 = vmatprep.subr.mxu0 0.0
        %3887 = vmatpush2.xpose.msra.mxu0 %v3832
        %3888 = vmatprep.subr.mxu0 0.0
        %3889 = vmatpush2.xpose.msra.mxu0 %v3830
        %3890 = vmatprep.subr.mxu0 0.0
        %3891 = vmatpush2.xpose.msra.mxu0 %v3828
        %3892 = vmatprep.subr.mxu0 0.0
        %3893 = vmatpush2.xpose.msra.mxu0 %v3826
        %3894 = vmatprep.subr.mxu0 0.0
        %3895 = vmatpush2.xpose.msra.mxu0 %v3824
        %3896 = vmatprep.subr.mxu0 0.0
        %3897 = vmatpush2.xpose.msra.mxu0 %v3822
        %3898 = vmatprep.subr.mxu0 0.0
        %3899 = vmatpush2.xpose.msra.mxu0 %v3820
        %3900 = vmatprep.subr.mxu0 0.0
        %3901 = vmatpush2.xpose.msra.mxu0 %v3818
        %3902 = vmatprep.subr.mxu0 0.0
        %3903 = vmatpush2.xpose.msra.mxu0 %v3816
        %3904 = vmatprep.subr.mxu0 0.0
        %3905 = vmatpush2.xpose.msra.mxu0 %v3814
        %3906 = vmatprep.subr.mxu0 0.0
        %3907 = vmatpush2.xpose.msra.mxu0 %v3812
        %3908 = vmatprep.mubr.f32.mxu0 0.0
        %3909 = vmatmul.mubr.f32.gmra.mxu0 %v3778
        %v3910 = vpop.f32.mrf.mxu0
        %v3911 = vadd.f32 0.0, %v3910
        %v3912 = vpop.f32.mrf.mxu0
        %v3913 = vadd.f32 0.0, %v3912
        %3914 = vdwg.mxu0
        %v3915 = vadd.f32 %v3645, %v3911
        %v3916 = vadd.f32 %v3646, %v3913
        %v3917 = vrot.slane %v3387, 2
        %v3918 = vrot.slane %v3388, 2
        %v3919 = vsel %vm928, %v3917, %v3918
        %v3920 = vrot.slane %v3389, 2
        %v3921 = vsel %vm928, %v3918, %v3920
        %v3922 = vrot.slane %v3390, 2
        %v3923 = vrot.slane %v3391, 2
        %v3924 = vsel %vm928, %v3922, %v3923
        %v3925 = vrot.slane %v3392, 2
        %v3926 = vsel %vm928, %v3923, %v3925
        %v3927 = vrot.slane %v3393, 2
        %v3928 = vrot.slane %v3394, 2
        %v3929 = vsel %vm928, %v3927, %v3928
        %v3930 = vrot.slane %v3395, 2
        %v3931 = vsel %vm928, %v3928, %v3930
        %v3932 = vrot.slane %v3396, 2
        %v3933 = vrot.slane %v3397, 2
        %v3934 = vsel %vm928, %v3932, %v3933
        %v3935 = vrot.slane %v3398, 2
        %v3936 = vsel %vm928, %v3933, %v3935
        %v3937 = vrot.slane %v3399, 2
        %v3938 = vrot.slane %v3400, 2
        %v3939 = vsel %vm928, %v3937, %v3938
        %v3940 = vrot.slane %v3401, 2
        %v3941 = vsel %vm928, %v3938, %v3940
        %v3942 = vrot.slane %v3402, 2
        %v3943 = vrot.slane %v3403, 2
        %v3944 = vsel %vm928, %v3942, %v3943
        %v3945 = vrot.slane %v3404, 2
        %v3946 = vsel %vm928, %v3943, %v3945
        %v3947 = vrot.slane %v3405, 2
        %v3948 = vrot.slane %v3406, 2
        %v3949 = vsel %vm928, %v3947, %v3948
        %v3950 = vrot.slane %v3407, 2
        %v3951 = vsel %vm928, %v3948, %v3950
        %v3952 = vrot.slane %v3408, 2
        %v3953 = vrot.slane %v3409, 2
        %v3954 = vsel %vm928, %v3952, %v3953
        %v3955 = vrot.slane %v3410, 2
        %v3956 = vsel %vm928, %v3953, %v3955
        %v3957 = vrot.slane %v3411, 2
        %v3958 = vrot.slane %v3412, 2
        %v3959 = vsel %vm928, %v3957, %v3958
        %v3960 = vrot.slane %v3413, 2
        %v3961 = vsel %vm928, %v3958, %v3960
        %v3962 = vrot.slane %v3414, 2
        %v3963 = vrot.slane %v3415, 2
        %v3964 = vsel %vm928, %v3962, %v3963
        %v3965 = vrot.slane %v3416, 2
        %v3966 = vsel %vm928, %v3963, %v3965
        %v3967 = vrot.slane %v3417, 2
        %v3968 = vrot.slane %v3418, 2
        %v3969 = vsel %vm928, %v3967, %v3968
        %v3970 = vrot.slane %v3419, 2
        %v3971 = vsel %vm928, %v3968, %v3970
        %v3972 = vrot.slane %v3420, 2
        %v3973 = vrot.slane %v3421, 2
        %v3974 = vsel %vm928, %v3972, %v3973
        %v3975 = vrot.slane %v3422, 2
        %v3976 = vsel %vm928, %v3973, %v3975
        %v3977 = vrot.slane %v3423, 2
        %v3978 = vrot.slane %v3424, 2
        %v3979 = vsel %vm928, %v3977, %v3978
        %v3980 = vrot.slane %v3425, 2
        %v3981 = vsel %vm928, %v3978, %v3980
        %v3982 = vrot.slane %v3426, 2
        %v3983 = vrot.slane %v3427, 2
        %v3984 = vsel %vm928, %v3982, %v3983
        %v3985 = vrot.slane %v3428, 2
        %v3986 = vsel %vm928, %v3983, %v3985
        %v3987 = vrot.slane %v3429, 2
        %v3988 = vrot.slane %v3430, 2
        %v3989 = vsel %vm928, %v3987, %v3988
        %v3990 = vrot.slane %v3431, 2
        %v3991 = vsel %vm928, %v3988, %v3990
        %v3992 = vrot.slane %v3432, 2
        %v3993 = vrot.slane %v3433, 2
        %v3994 = vsel %vm928, %v3992, %v3993
        %v3995 = vrot.slane %v3434, 2
        %v3996 = vsel %vm928, %v3993, %v3995
        %s3997 = scalar_lea.vmem %s3, 80
        %v3998 = vld [vmem:[%s3997] sm:$0xf]
        %3999 = vxpose.xlu0.b32.start [1/16] %v3998, 128
        %4000 = vxpose.xlu0.b32.cont [2/16] 0.0, 128
        %4001 = vxpose.xlu0.b32.cont [3/16] 0.0, 128
        %4002 = vxpose.xlu0.b32.cont [4/16] 0.0, 128
        %4003 = vxpose.xlu0.b32.cont [5/16] 0.0, 128
        %4004 = vxpose.xlu0.b32.cont [6/16] 0.0, 128
        %4005 = vxpose.xlu0.b32.cont [7/16] 0.0, 128
        %4006 = vxpose.xlu0.b32.cont [8/16] 0.0, 128
        %4007 = vxpose.xlu0.b32.cont [9/16] 0.0, 128
        %4008 = vxpose.xlu0.b32.cont [10/16] 0.0, 128
        %4009 = vxpose.xlu0.b32.cont [11/16] 0.0, 128
        %4010 = vxpose.xlu0.b32.cont [12/16] 0.0, 128
        %4011 = vxpose.xlu0.b32.cont [13/16] 0.0, 128
        %4012 = vxpose.xlu0.b32.cont [14/16] 0.0, 128
        %4013 = vxpose.xlu0.b32.cont [15/16] 0.0, 128
        %4014 = vxpose.xlu0.b32.end [16/16] 0.0, 128
        %v4015 = vpop.trf.xlu0
        %v4016 = vpop.trf.xlu0
        %v4017 = vpop.trf.xlu0
        %v4018 = vpop.trf.xlu0
        %v4019 = vpop.trf.xlu0
        %v4020 = vpop.trf.xlu0
        %v4021 = vpop.trf.xlu0
        %v4022 = vpop.trf.xlu0
        %v4023 = vpop.trf.xlu0
        %v4024 = vpop.trf.xlu0
        %v4025 = vpop.trf.xlu0
        %v4026 = vpop.trf.xlu0
        %v4027 = vpop.trf.xlu0
        %v4028 = vpop.trf.xlu0
        %v4029 = vpop.trf.xlu0
        %v4030 = vpop.trf.xlu0
        %v4032 = vsel %vm619, %v4015, 0
        %v4034 = vsel %vm619, %v3919, 0
        %v4036 = vsel %vm619, %v3921, 0
        %v4038 = vsel %vm619, %v3924, 0
        %v4040 = vsel %vm619, %v3926, 0
        %v4042 = vsel %vm619, %v3929, 0
        %v4044 = vsel %vm619, %v3931, 0
        %v4046 = vsel %vm619, %v3934, 0
        %v4048 = vsel %vm619, %v3936, 0
        %v4050 = vsel %vm619, %v3939, 0
        %v4052 = vsel %vm619, %v3941, 0
        %v4054 = vsel %vm619, %v3944, 0
        %v4056 = vsel %vm619, %v3946, 0
        %v4058 = vsel %vm619, %v3949, 0
        %v4060 = vsel %vm619, %v3951, 0
        %v4062 = vsel %vm619, %v3954, 0
        %v4064 = vsel %vm619, %v3956, 0
        %v4066 = vsel %vm619, %v3959, 0
        %v4068 = vsel %vm619, %v3961, 0
        %v4070 = vsel %vm619, %v3964, 0
        %v4072 = vsel %vm619, %v3966, 0
        %v4074 = vsel %vm619, %v3969, 0
        %v4076 = vsel %vm619, %v3971, 0
        %v4078 = vsel %vm619, %v3974, 0
        %v4080 = vsel %vm619, %v3976, 0
        %v4082 = vsel %vm619, %v3979, 0
        %v4084 = vsel %vm619, %v3981, 0
        %v4086 = vsel %vm619, %v3984, 0
        %v4088 = vsel %vm619, %v3986, 0
        %v4090 = vsel %vm619, %v3989, 0
        %v4092 = vsel %vm619, %v3991, 0
        %v4094 = vsel %vm619, %v3994, 0
        %v4096 = vsel %vm619, %v3996, 0
        %4098 = vmatprep.subr.mxu0 0.0
        %4099 = vmatpush1.xpose.msra.mxu0 %v4064
        %4100 = vmatprep.subr.mxu0 0.0
        %4101 = vmatpush1.xpose.msra.mxu0 %v4062
        %4102 = vmatprep.subr.mxu0 0.0
        %4103 = vmatpush1.xpose.msra.mxu0 %v4060
        %4104 = vmatprep.subr.mxu0 0.0
        %4105 = vmatpush1.xpose.msra.mxu0 %v4058
        %4106 = vmatprep.subr.mxu0 0.0
        %4107 = vmatpush1.xpose.msra.mxu0 %v4056
        %4108 = vmatprep.subr.mxu0 0.0
        %4109 = vmatpush1.xpose.msra.mxu0 %v4054
        %4110 = vmatprep.subr.mxu0 0.0
        %4111 = vmatpush1.xpose.msra.mxu0 %v4052
        %4112 = vmatprep.subr.mxu0 0.0
        %4113 = vmatpush1.xpose.msra.mxu0 %v4050
        %4114 = vmatprep.subr.mxu0 0.0
        %4115 = vmatpush1.xpose.msra.mxu0 %v4048
        %4116 = vmatprep.subr.mxu0 0.0
        %4117 = vmatpush1.xpose.msra.mxu0 %v4046
        %4118 = vmatprep.subr.mxu0 0.0
        %4119 = vmatpush1.xpose.msra.mxu0 %v4044
        %4120 = vmatprep.subr.mxu0 0.0
        %4121 = vmatpush1.xpose.msra.mxu0 %v4042
        %4122 = vmatprep.subr.mxu0 0.0
        %4123 = vmatpush1.xpose.msra.mxu0 %v4040
        %4124 = vmatprep.subr.mxu0 0.0
        %4125 = vmatpush1.xpose.msra.mxu0 %v4038
        %4126 = vmatprep.subr.mxu0 0.0
        %4127 = vmatpush1.xpose.msra.mxu0 %v4036
        %4128 = vmatprep.subr.mxu0 0.0
        %4129 = vmatpush1.xpose.msra.mxu0 %v4034
        %4130 = vmatprep.subr.mxu0 0.0
        %4131 = vmatpush2.xpose.msra.mxu0 %v4096
        %4132 = vmatprep.subr.mxu0 0.0
        %4133 = vmatpush2.xpose.msra.mxu0 %v4094
        %4134 = vmatprep.subr.mxu0 0.0
        %4135 = vmatpush2.xpose.msra.mxu0 %v4092
        %4136 = vmatprep.subr.mxu0 0.0
        %4137 = vmatpush2.xpose.msra.mxu0 %v4090
        %4138 = vmatprep.subr.mxu0 0.0
        %4139 = vmatpush2.xpose.msra.mxu0 %v4088
        %4140 = vmatprep.subr.mxu0 0.0
        %4141 = vmatpush2.xpose.msra.mxu0 %v4086
        %4142 = vmatprep.subr.mxu0 0.0
        %4143 = vmatpush2.xpose.msra.mxu0 %v4084
        %4144 = vmatprep.subr.mxu0 0.0
        %4145 = vmatpush2.xpose.msra.mxu0 %v4082
        %4146 = vmatprep.subr.mxu0 0.0
        %4147 = vmatpush2.xpose.msra.mxu0 %v4080
        %4148 = vmatprep.subr.mxu0 0.0
        %4149 = vmatpush2.xpose.msra.mxu0 %v4078
        %4150 = vmatprep.subr.mxu0 0.0
        %4151 = vmatpush2.xpose.msra.mxu0 %v4076
        %4152 = vmatprep.subr.mxu0 0.0
        %4153 = vmatpush2.xpose.msra.mxu0 %v4074
        %4154 = vmatprep.subr.mxu0 0.0
        %4155 = vmatpush2.xpose.msra.mxu0 %v4072
        %4156 = vmatprep.subr.mxu0 0.0
        %4157 = vmatpush2.xpose.msra.mxu0 %v4070
        %4158 = vmatprep.subr.mxu0 0.0
        %4159 = vmatpush2.xpose.msra.mxu0 %v4068
        %4160 = vmatprep.subr.mxu0 0.0
        %4161 = vmatpush2.xpose.msra.mxu0 %v4066
        %4162 = vmatprep.mubr.f32.mxu0 0.0
        %4163 = vmatmul.mubr.f32.gmra.mxu0 %v4032
        %v4164 = vpop.f32.mrf.mxu0
        %v4165 = vadd.f32 0.0, %v4164
        %v4166 = vpop.f32.mrf.mxu0
        %v4167 = vadd.f32 0.0, %v4166
        %4168 = vdwg.mxu0
        %v4169 = vadd.f32 %v3915, %v4165
        %v4170 = vadd.f32 %v3916, %v4167
        %s4171 = scalar_lea.vmem %s3, 84
        %v4172 = vld [vmem:[%s4171] sm:$0xf]
        %4173 = vxpose.xlu0.b32.start [1/16] %v4172, 128
        %4174 = vxpose.xlu0.b32.cont [2/16] 0.0, 128
        %4175 = vxpose.xlu0.b32.cont [3/16] 0.0, 128
        %4176 = vxpose.xlu0.b32.cont [4/16] 0.0, 128
        %4177 = vxpose.xlu0.b32.cont [5/16] 0.0, 128
        %4178 = vxpose.xlu0.b32.cont [6/16] 0.0, 128
        %4179 = vxpose.xlu0.b32.cont [7/16] 0.0, 128
        %4180 = vxpose.xlu0.b32.cont [8/16] 0.0, 128
        %4181 = vxpose.xlu0.b32.cont [9/16] 0.0, 128
        %4182 = vxpose.xlu0.b32.cont [10/16] 0.0, 128
        %4183 = vxpose.xlu0.b32.cont [11/16] 0.0, 128
        %4184 = vxpose.xlu0.b32.cont [12/16] 0.0, 128
        %4185 = vxpose.xlu0.b32.cont [13/16] 0.0, 128
        %4186 = vxpose.xlu0.b32.cont [14/16] 0.0, 128
        %4187 = vxpose.xlu0.b32.cont [15/16] 0.0, 128
        %4188 = vxpose.xlu0.b32.end [16/16] 0.0, 128
        %v4189 = vpop.trf.xlu0
        %v4190 = vpop.trf.xlu0
        %v4191 = vpop.trf.xlu0
        %v4192 = vpop.trf.xlu0
        %v4193 = vpop.trf.xlu0
        %v4194 = vpop.trf.xlu0
        %v4195 = vpop.trf.xlu0
        %v4196 = vpop.trf.xlu0
        %v4197 = vpop.trf.xlu0
        %v4198 = vpop.trf.xlu0
        %v4199 = vpop.trf.xlu0
        %v4200 = vpop.trf.xlu0
        %v4201 = vpop.trf.xlu0
        %v4202 = vpop.trf.xlu0
        %v4203 = vpop.trf.xlu0
        %v4204 = vpop.trf.xlu0
        %v4206 = vsel %vm619, %v4189, 0
        %v4209 = vsel %vm619, %v3435, 0
        %v4212 = vsel %vm619, %v3436, 0
        %4214 = vmatprep.subr.mxu0 0.0
        %4215 = vmatpush1.xpose.msra.mxu0 %v3530
        %4216 = vmatprep.subr.mxu0 0.0
        %4217 = vmatpush1.xpose.msra.mxu0 %v3527
        %4218 = vmatprep.subr.mxu0 0.0
        %4219 = vmatpush1.xpose.msra.mxu0 %v3524
        %4220 = vmatprep.subr.mxu0 0.0
        %4221 = vmatpush1.xpose.msra.mxu0 %v3521
        %4222 = vmatprep.subr.mxu0 0.0
        %4223 = vmatpush1.xpose.msra.mxu0 %v3518
        %4224 = vmatprep.subr.mxu0 0.0
        %4225 = vmatpush1.xpose.msra.mxu0 %v3515
        %4226 = vmatprep.subr.mxu0 0.0
        %4227 = vmatpush1.xpose.msra.mxu0 %v3512
        %4228 = vmatprep.subr.mxu0 0.0
        %4229 = vmatpush1.xpose.msra.mxu0 %v3509
        %4230 = vmatprep.subr.mxu0 0.0
        %4231 = vmatpush1.xpose.msra.mxu0 %v3506
        %4232 = vmatprep.subr.mxu0 0.0
        %4233 = vmatpush1.xpose.msra.mxu0 %v3503
        %4234 = vmatprep.subr.mxu0 0.0
        %4235 = vmatpush1.xpose.msra.mxu0 %v3500
        %4236 = vmatprep.subr.mxu0 0.0
        %4237 = vmatpush1.xpose.msra.mxu0 %v3497
        %4238 = vmatprep.subr.mxu0 0.0
        %4239 = vmatpush1.xpose.msra.mxu0 %v3494
        %4240 = vmatprep.subr.mxu0 0.0
        %4241 = vmatpush1.xpose.msra.mxu0 %v3491
        %4242 = vmatprep.subr.mxu0 0.0
        %4243 = vmatpush1.xpose.msra.mxu0 %v3488
        %4244 = vmatprep.subr.mxu0 0.0
        %4245 = vmatpush1.xpose.msra.mxu0 %v3485
        %4246 = vmatprep.subr.mxu0 0.0
        %4247 = vmatpush2.xpose.msra.mxu0 %v4212
        %4248 = vmatprep.subr.mxu0 0.0
        %4249 = vmatpush2.xpose.msra.mxu0 %v4209
        %4250 = vmatprep.subr.mxu0 0.0
        %4251 = vmatpush2.xpose.msra.mxu0 %v3572
        %4252 = vmatprep.subr.mxu0 0.0
        %4253 = vmatpush2.xpose.msra.mxu0 %v3569
        %4254 = vmatprep.subr.mxu0 0.0
        %4255 = vmatpush2.xpose.msra.mxu0 %v3566
        %4256 = vmatprep.subr.mxu0 0.0
        %4257 = vmatpush2.xpose.msra.mxu0 %v3563
        %4258 = vmatprep.subr.mxu0 0.0
        %4259 = vmatpush2.xpose.msra.mxu0 %v3560
        %4260 = vmatprep.subr.mxu0 0.0
        %4261 = vmatpush2.xpose.msra.mxu0 %v3557
        %4262 = vmatprep.subr.mxu0 0.0
        %4263 = vmatpush2.xpose.msra.mxu0 %v3554
        %4264 = vmatprep.subr.mxu0 0.0
        %4265 = vmatpush2.xpose.msra.mxu0 %v3551
        %4266 = vmatprep.subr.mxu0 0.0
        %4267 = vmatpush2.xpose.msra.mxu0 %v3548
        %4268 = vmatprep.subr.mxu0 0.0
        %4269 = vmatpush2.xpose.msra.mxu0 %v3545
        %4270 = vmatprep.subr.mxu0 0.0
        %4271 = vmatpush2.xpose.msra.mxu0 %v3542
        %4272 = vmatprep.subr.mxu0 0.0
        %4273 = vmatpush2.xpose.msra.mxu0 %v3539
        %4274 = vmatprep.subr.mxu0 0.0
        %4275 = vmatpush2.xpose.msra.mxu0 %v3536
        %4276 = vmatprep.subr.mxu0 0.0
        %4277 = vmatpush2.xpose.msra.mxu0 %v3533
        %4278 = vmatprep.mubr.f32.mxu0 0.0
        %4279 = vmatmul.mubr.f32.gmra.mxu0 %v4206
        %v4280 = vpop.f32.mrf.mxu0
        %v4281 = vadd.f32 0.0, %v4280
        %v4282 = vpop.f32.mrf.mxu0
        %v4283 = vadd.f32 0.0, %v4282
        %4284 = vdwg.mxu0
        %v4285 = vadd.f32 %v4169, %v4281
        %v4286 = vadd.f32 %v4170, %v4283
        %v4288 = vrot.slane %v3435, 1
        %v4289 = vrot.slane %v3436, 1
        %v4290 = vsel %vm504, %v4288, %v4289
        %v4291 = vrot.slane %v3437, 1
        %v4292 = vsel %vm504, %v4289, %v4291
        %s4293 = scalar_lea.vmem %s3, 88
        %v4294 = vld [vmem:[%s4293] sm:$0xf]
        %4295 = vxpose.xlu0.b32.start [1/16] %v4294, 128
        %4296 = vxpose.xlu0.b32.cont [2/16] 0.0, 128
        %4297 = vxpose.xlu0.b32.cont [3/16] 0.0, 128
        %4298 = vxpose.xlu0.b32.cont [4/16] 0.0, 128
        %4299 = vxpose.xlu0.b32.cont [5/16] 0.0, 128
        %4300 = vxpose.xlu0.b32.cont [6/16] 0.0, 128
        %4301 = vxpose.xlu0.b32.cont [7/16] 0.0, 128
        %4302 = vxpose.xlu0.b32.cont [8/16] 0.0, 128
        %4303 = vxpose.xlu0.b32.cont [9/16] 0.0, 128
        %4304 = vxpose.xlu0.b32.cont [10/16] 0.0, 128
        %4305 = vxpose.xlu0.b32.cont [11/16] 0.0, 128
        %4306 = vxpose.xlu0.b32.cont [12/16] 0.0, 128
        %4307 = vxpose.xlu0.b32.cont [13/16] 0.0, 128
        %4308 = vxpose.xlu0.b32.cont [14/16] 0.0, 128
        %4309 = vxpose.xlu0.b32.cont [15/16] 0.0, 128
        %4310 = vxpose.xlu0.b32.end [16/16] 0.0, 128
        %v4311 = vpop.trf.xlu0
        %v4312 = vpop.trf.xlu0
        %v4313 = vpop.trf.xlu0
        %v4314 = vpop.trf.xlu0
        %v4315 = vpop.trf.xlu0
        %v4316 = vpop.trf.xlu0
        %v4317 = vpop.trf.xlu0
        %v4318 = vpop.trf.xlu0
        %v4319 = vpop.trf.xlu0
        %v4320 = vpop.trf.xlu0
        %v4321 = vpop.trf.xlu0
        %v4322 = vpop.trf.xlu0
        %v4323 = vpop.trf.xlu0
        %v4324 = vpop.trf.xlu0
        %v4325 = vpop.trf.xlu0
        %v4326 = vpop.trf.xlu0
        %v4328 = vsel %vm619, %v4311, 0
        %v4330 = vsel %vm619, %v4290, 0
        %v4332 = vsel %vm619, %v4292, 0
        %4334 = vmatprep.subr.mxu0 0.0
        %4335 = vmatpush1.xpose.msra.mxu0 %v3814
        %4336 = vmatprep.subr.mxu0 0.0
        %4337 = vmatpush1.xpose.msra.mxu0 %v3812
        %4338 = vmatprep.subr.mxu0 0.0
        %4339 = vmatpush1.xpose.msra.mxu0 %v3810
        %4340 = vmatprep.subr.mxu0 0.0
        %4341 = vmatpush1.xpose.msra.mxu0 %v3808
        %4342 = vmatprep.subr.mxu0 0.0
        %4343 = vmatpush1.xpose.msra.mxu0 %v3806
        %4344 = vmatprep.subr.mxu0 0.0
        %4345 = vmatpush1.xpose.msra.mxu0 %v3804
        %4346 = vmatprep.subr.mxu0 0.0
        %4347 = vmatpush1.xpose.msra.mxu0 %v3802
        %4348 = vmatprep.subr.mxu0 0.0
        %4349 = vmatpush1.xpose.msra.mxu0 %v3800
        %4350 = vmatprep.subr.mxu0 0.0
        %4351 = vmatpush1.xpose.msra.mxu0 %v3798
        %4352 = vmatprep.subr.mxu0 0.0
        %4353 = vmatpush1.xpose.msra.mxu0 %v3796
        %4354 = vmatprep.subr.mxu0 0.0
        %4355 = vmatpush1.xpose.msra.mxu0 %v3794
        %4356 = vmatprep.subr.mxu0 0.0
        %4357 = vmatpush1.xpose.msra.mxu0 %v3792
        %4358 = vmatprep.subr.mxu0 0.0
        %4359 = vmatpush1.xpose.msra.mxu0 %v3790
        %4360 = vmatprep.subr.mxu0 0.0
        %4361 = vmatpush1.xpose.msra.mxu0 %v3788
        %4362 = vmatprep.subr.mxu0 0.0
        %4363 = vmatpush1.xpose.msra.mxu0 %v3786
        %4364 = vmatprep.subr.mxu0 0.0
        %4365 = vmatpush1.xpose.msra.mxu0 %v3784
        %4366 = vmatprep.subr.mxu0 0.0
        %4367 = vmatpush2.xpose.msra.mxu0 %v4332
        %4368 = vmatprep.subr.mxu0 0.0
        %4369 = vmatpush2.xpose.msra.mxu0 %v4330
        %4370 = vmatprep.subr.mxu0 0.0
        %4371 = vmatpush2.xpose.msra.mxu0 %v3842
        %4372 = vmatprep.subr.mxu0 0.0
        %4373 = vmatpush2.xpose.msra.mxu0 %v3840
        %4374 = vmatprep.subr.mxu0 0.0
        %4375 = vmatpush2.xpose.msra.mxu0 %v3838
        %4376 = vmatprep.subr.mxu0 0.0
        %4377 = vmatpush2.xpose.msra.mxu0 %v3836
        %4378 = vmatprep.subr.mxu0 0.0
        %4379 = vmatpush2.xpose.msra.mxu0 %v3834
        %4380 = vmatprep.subr.mxu0 0.0
        %4381 = vmatpush2.xpose.msra.mxu0 %v3832
        %4382 = vmatprep.subr.mxu0 0.0
        %4383 = vmatpush2.xpose.msra.mxu0 %v3830
        %4384 = vmatprep.subr.mxu0 0.0
        %4385 = vmatpush2.xpose.msra.mxu0 %v3828
        %4386 = vmatprep.subr.mxu0 0.0
        %4387 = vmatpush2.xpose.msra.mxu0 %v3826
        %4388 = vmatprep.subr.mxu0 0.0
        %4389 = vmatpush2.xpose.msra.mxu0 %v3824
        %4390 = vmatprep.subr.mxu0 0.0
        %4391 = vmatpush2.xpose.msra.mxu0 %v3822
        %4392 = vmatprep.subr.mxu0 0.0
        %4393 = vmatpush2.xpose.msra.mxu0 %v3820
        %4394 = vmatprep.subr.mxu0 0.0
        %4395 = vmatpush2.xpose.msra.mxu0 %v3818
        %4396 = vmatprep.subr.mxu0 0.0
        %4397 = vmatpush2.xpose.msra.mxu0 %v3816
        %4398 = vmatprep.mubr.f32.mxu0 0.0
        %4399 = vmatmul.mubr.f32.gmra.mxu0 %v4328
        %v4400 = vpop.f32.mrf.mxu0
        %v4401 = vadd.f32 0.0, %v4400
        %v4402 = vpop.f32.mrf.mxu0
        %v4403 = vadd.f32 0.0, %v4402
        %4404 = vdwg.mxu0
        %v4405 = vadd.f32 %v4285, %v4401
        %v4406 = vadd.f32 %v4286, %v4403
        %v4407 = vrot.slane %v3435, 2
        %v4408 = vrot.slane %v3436, 2
        %v4409 = vsel %vm928, %v4407, %v4408
        %v4410 = vrot.slane %v3437, 2
        %v4411 = vsel %vm928, %v4408, %v4410
        %s4412 = scalar_lea.vmem %s3, 92
        %v4413 = vld [vmem:[%s4412] sm:$0xf]
        %4414 = vxpose.xlu0.b32.start [1/16] %v4413, 128
        %4415 = vxpose.xlu0.b32.cont [2/16] 0.0, 128
        %4416 = vxpose.xlu0.b32.cont [3/16] 0.0, 128
        %4417 = vxpose.xlu0.b32.cont [4/16] 0.0, 128
        %4418 = vxpose.xlu0.b32.cont [5/16] 0.0, 128
        %4419 = vxpose.xlu0.b32.cont [6/16] 0.0, 128
        %4420 = vxpose.xlu0.b32.cont [7/16] 0.0, 128
        %4421 = vxpose.xlu0.b32.cont [8/16] 0.0, 128
        %4422 = vxpose.xlu0.b32.cont [9/16] 0.0, 128
        %4423 = vxpose.xlu0.b32.cont [10/16] 0.0, 128
        %4424 = vxpose.xlu0.b32.cont [11/16] 0.0, 128
        %4425 = vxpose.xlu0.b32.cont [12/16] 0.0, 128
        %4426 = vxpose.xlu0.b32.cont [13/16] 0.0, 128
        %4427 = vxpose.xlu0.b32.cont [14/16] 0.0, 128
        %4428 = vxpose.xlu0.b32.cont [15/16] 0.0, 128
        %4429 = vxpose.xlu0.b32.end [16/16] 0.0, 128
        %v4430 = vpop.trf.xlu0
        %v4431 = vpop.trf.xlu0
        %v4432 = vpop.trf.xlu0
        %v4433 = vpop.trf.xlu0
        %v4434 = vpop.trf.xlu0
        %v4435 = vpop.trf.xlu0
        %v4436 = vpop.trf.xlu0
        %v4437 = vpop.trf.xlu0
        %v4438 = vpop.trf.xlu0
        %v4439 = vpop.trf.xlu0
        %v4440 = vpop.trf.xlu0
        %v4441 = vpop.trf.xlu0
        %v4442 = vpop.trf.xlu0
        %v4443 = vpop.trf.xlu0
        %v4444 = vpop.trf.xlu0
        %v4445 = vpop.trf.xlu0
        %v4447 = vsel %vm619, %v4430, 0
        %v4449 = vsel %vm619, %v4409, 0
        %v4451 = vsel %vm619, %v4411, 0
        %4453 = vmatprep.subr.mxu0 0.0
        %4454 = vmatpush1.xpose.msra.mxu0 %v4068
        %4455 = vmatprep.subr.mxu0 0.0
        %4456 = vmatpush1.xpose.msra.mxu0 %v4066
        %4457 = vmatprep.subr.mxu0 0.0
        %4458 = vmatpush1.xpose.msra.mxu0 %v4064
        %4459 = vmatprep.subr.mxu0 0.0
        %4460 = vmatpush1.xpose.msra.mxu0 %v4062
        %4461 = vmatprep.subr.mxu0 0.0
        %4462 = vmatpush1.xpose.msra.mxu0 %v4060
        %4463 = vmatprep.subr.mxu0 0.0
        %4464 = vmatpush1.xpose.msra.mxu0 %v4058
        %4465 = vmatprep.subr.mxu0 0.0
        %4466 = vmatpush1.xpose.msra.mxu0 %v4056
        %4467 = vmatprep.subr.mxu0 0.0
        %4468 = vmatpush1.xpose.msra.mxu0 %v4054
        %4469 = vmatprep.subr.mxu0 0.0
        %4470 = vmatpush1.xpose.msra.mxu0 %v4052
        %4471 = vmatprep.subr.mxu0 0.0
        %4472 = vmatpush1.xpose.msra.mxu0 %v4050
        %4473 = vmatprep.subr.mxu0 0.0
        %4474 = vmatpush1.xpose.msra.mxu0 %v4048
        %4475 = vmatprep.subr.mxu0 0.0
        %4476 = vmatpush1.xpose.msra.mxu0 %v4046
        %4477 = vmatprep.subr.mxu0 0.0
        %4478 = vmatpush1.xpose.msra.mxu0 %v4044
        %4479 = vmatprep.subr.mxu0 0.0
        %4480 = vmatpush1.xpose.msra.mxu0 %v4042
        %4481 = vmatprep.subr.mxu0 0.0
        %4482 = vmatpush1.xpose.msra.mxu0 %v4040
        %4483 = vmatprep.subr.mxu0 0.0
        %4484 = vmatpush1.xpose.msra.mxu0 %v4038
        %4485 = vmatprep.subr.mxu0 0.0
        %4486 = vmatpush2.xpose.msra.mxu0 %v4451
        %4487 = vmatprep.subr.mxu0 0.0
        %4488 = vmatpush2.xpose.msra.mxu0 %v4449
        %4489 = vmatprep.subr.mxu0 0.0
        %4490 = vmatpush2.xpose.msra.mxu0 %v4096
        %4491 = vmatprep.subr.mxu0 0.0
        %4492 = vmatpush2.xpose.msra.mxu0 %v4094
        %4493 = vmatprep.subr.mxu0 0.0
        %4494 = vmatpush2.xpose.msra.mxu0 %v4092
        %4495 = vmatprep.subr.mxu0 0.0
        %4496 = vmatpush2.xpose.msra.mxu0 %v4090
        %4497 = vmatprep.subr.mxu0 0.0
        %4498 = vmatpush2.xpose.msra.mxu0 %v4088
        %4499 = vmatprep.subr.mxu0 0.0
        %4500 = vmatpush2.xpose.msra.mxu0 %v4086
        %4501 = vmatprep.subr.mxu0 0.0
        %4502 = vmatpush2.xpose.msra.mxu0 %v4084
        %4503 = vmatprep.subr.mxu0 0.0
        %4504 = vmatpush2.xpose.msra.mxu0 %v4082
        %4505 = vmatprep.subr.mxu0 0.0
        %4506 = vmatpush2.xpose.msra.mxu0 %v4080
        %4507 = vmatprep.subr.mxu0 0.0
        %4508 = vmatpush2.xpose.msra.mxu0 %v4078
        %4509 = vmatprep.subr.mxu0 0.0
        %4510 = vmatpush2.xpose.msra.mxu0 %v4076
        %4511 = vmatprep.subr.mxu0 0.0
        %4512 = vmatpush2.xpose.msra.mxu0 %v4074
        %4513 = vmatprep.subr.mxu0 0.0
        %4514 = vmatpush2.xpose.msra.mxu0 %v4072
        %4515 = vmatprep.subr.mxu0 0.0
        %4516 = vmatpush2.xpose.msra.mxu0 %v4070
        %4517 = vmatprep.mubr.f32.mxu0 0.0
        %4518 = vmatmul.mubr.f32.gmra.mxu0 %v4447
        %v4519 = vpop.f32.mrf.mxu0
        %v4520 = vadd.f32 0.0, %v4519
        %v4521 = vpop.f32.mrf.mxu0
        %v4522 = vadd.f32 0.0, %v4521
        %4523 = vdwg.mxu0
        %v4524 = vadd.f32 %v4405, %v4520
        %v4525 = vadd.f32 %v4406, %v4522
        %s4526 = scalar_lea.vmem %s3, 96
        %v4527 = vld [vmem:[%s4526] sm:$0xf]
        %4528 = vxpose.xlu0.b32.start [1/16] %v4527, 128
        %4529 = vxpose.xlu0.b32.cont [2/16] 0.0, 128
        %4530 = vxpose.xlu0.b32.cont [3/16] 0.0, 128
        %4531 = vxpose.xlu0.b32.cont [4/16] 0.0, 128
        %4532 = vxpose.xlu0.b32.cont [5/16] 0.0, 128
        %4533 = vxpose.xlu0.b32.cont [6/16] 0.0, 128
        %4534 = vxpose.xlu0.b32.cont [7/16] 0.0, 128
        %4535 = vxpose.xlu0.b32.cont [8/16] 0.0, 128
        %4536 = vxpose.xlu0.b32.cont [9/16] 0.0, 128
        %4537 = vxpose.xlu0.b32.cont [10/16] 0.0, 128
        %4538 = vxpose.xlu0.b32.cont [11/16] 0.0, 128
        %4539 = vxpose.xlu0.b32.cont [12/16] 0.0, 128
        %4540 = vxpose.xlu0.b32.cont [13/16] 0.0, 128
        %4541 = vxpose.xlu0.b32.cont [14/16] 0.0, 128
        %4542 = vxpose.xlu0.b32.cont [15/16] 0.0, 128
        %4543 = vxpose.xlu0.b32.end [16/16] 0.0, 128
        %v4544 = vpop.trf.xlu0
        %v4545 = vpop.trf.xlu0
        %v4546 = vpop.trf.xlu0
        %v4547 = vpop.trf.xlu0
        %v4548 = vpop.trf.xlu0
        %v4549 = vpop.trf.xlu0
        %v4550 = vpop.trf.xlu0
        %v4551 = vpop.trf.xlu0
        %v4552 = vpop.trf.xlu0
        %v4553 = vpop.trf.xlu0
        %v4554 = vpop.trf.xlu0
        %v4555 = vpop.trf.xlu0
        %v4556 = vpop.trf.xlu0
        %v4557 = vpop.trf.xlu0
        %v4558 = vpop.trf.xlu0
        %v4559 = vpop.trf.xlu0
        %v4561 = vsel %vm619, %v4544, 0
        %v4564 = vsel %vm619, %v3438, 0
        %v4567 = vsel %vm619, %v3439, 0
        %4569 = vmatprep.subr.mxu0 0.0
        %4570 = vmatpush1.xpose.msra.mxu0 %v3536
        %4571 = vmatprep.subr.mxu0 0.0
        %4572 = vmatpush1.xpose.msra.mxu0 %v3533
        %4573 = vmatprep.subr.mxu0 0.0
        %4574 = vmatpush1.xpose.msra.mxu0 %v3530
        %4575 = vmatprep.subr.mxu0 0.0
        %4576 = vmatpush1.xpose.msra.mxu0 %v3527
        %4577 = vmatprep.subr.mxu0 0.0
        %4578 = vmatpush1.xpose.msra.mxu0 %v3524
        %4579 = vmatprep.subr.mxu0 0.0
        %4580 = vmatpush1.xpose.msra.mxu0 %v3521
        %4581 = vmatprep.subr.mxu0 0.0
        %4582 = vmatpush1.xpose.msra.mxu0 %v3518
        %4583 = vmatprep.subr.mxu0 0.0
        %4584 = vmatpush1.xpose.msra.mxu0 %v3515
        %4585 = vmatprep.subr.mxu0 0.0
        %4586 = vmatpush1.xpose.msra.mxu0 %v3512
        %4587 = vmatprep.subr.mxu0 0.0
        %4588 = vmatpush1.xpose.msra.mxu0 %v3509
        %4589 = vmatprep.subr.mxu0 0.0
        %4590 = vmatpush1.xpose.msra.mxu0 %v3506
        %4591 = vmatprep.subr.mxu0 0.0
        %4592 = vmatpush1.xpose.msra.mxu0 %v3503
        %4593 = vmatprep.subr.mxu0 0.0
        %4594 = vmatpush1.xpose.msra.mxu0 %v3500
        %4595 = vmatprep.subr.mxu0 0.0
        %4596 = vmatpush1.xpose.msra.mxu0 %v3497
        %4597 = vmatprep.subr.mxu0 0.0
        %4598 = vmatpush1.xpose.msra.mxu0 %v3494
        %4599 = vmatprep.subr.mxu0 0.0
        %4600 = vmatpush1.xpose.msra.mxu0 %v3491
        %4601 = vmatprep.subr.mxu0 0.0
        %4602 = vmatpush2.xpose.msra.mxu0 %v4567
        %4603 = vmatprep.subr.mxu0 0.0
        %4604 = vmatpush2.xpose.msra.mxu0 %v4564
        %4605 = vmatprep.subr.mxu0 0.0
        %4606 = vmatpush2.xpose.msra.mxu0 %v4212
        %4607 = vmatprep.subr.mxu0 0.0
        %4608 = vmatpush2.xpose.msra.mxu0 %v4209
        %4609 = vmatprep.subr.mxu0 0.0
        %4610 = vmatpush2.xpose.msra.mxu0 %v3572
        %4611 = vmatprep.subr.mxu0 0.0
        %4612 = vmatpush2.xpose.msra.mxu0 %v3569
        %4613 = vmatprep.subr.mxu0 0.0
        %4614 = vmatpush2.xpose.msra.mxu0 %v3566
        %4615 = vmatprep.subr.mxu0 0.0
        %4616 = vmatpush2.xpose.msra.mxu0 %v3563
        %4617 = vmatprep.subr.mxu0 0.0
        %4618 = vmatpush2.xpose.msra.mxu0 %v3560
        %4619 = vmatprep.subr.mxu0 0.0
        %4620 = vmatpush2.xpose.msra.mxu0 %v3557
        %4621 = vmatprep.subr.mxu0 0.0
        %4622 = vmatpush2.xpose.msra.mxu0 %v3554
        %4623 = vmatprep.subr.mxu0 0.0
        %4624 = vmatpush2.xpose.msra.mxu0 %v3551
        %4625 = vmatprep.subr.mxu0 0.0
        %4626 = vmatpush2.xpose.msra.mxu0 %v3548
        %4627 = vmatprep.subr.mxu0 0.0
        %4628 = vmatpush2.xpose.msra.mxu0 %v3545
        %4629 = vmatprep.subr.mxu0 0.0
        %4630 = vmatpush2.xpose.msra.mxu0 %v3542
        %4631 = vmatprep.subr.mxu0 0.0
        %4632 = vmatpush2.xpose.msra.mxu0 %v3539
        %4633 = vmatprep.mubr.f32.mxu0 0.0
        %4634 = vmatmul.mubr.f32.gmra.mxu0 %v4561
        %v4635 = vpop.f32.mrf.mxu0
        %v4636 = vadd.f32 0.0, %v4635
        %v4637 = vpop.f32.mrf.mxu0
        %v4638 = vadd.f32 0.0, %v4637
        %4639 = vdwg.mxu0
        %v4640 = vadd.f32 %v4524, %v4636
        %v4641 = vadd.f32 %v4525, %v4638
        %v4643 = vrot.slane %v3438, 1
        %v4644 = vrot.slane %v3439, 1
        %v4645 = vsel %vm504, %v4643, %v4644
        %v4646 = vrot.slane %v3440, 1
        %v4647 = vsel %vm504, %v4644, %v4646
        %s4648 = scalar_lea.vmem %s3, 100
        %v4649 = vld [vmem:[%s4648] sm:$0xf]
        %4650 = vxpose.xlu0.b32.start [1/16] %v4649, 128
        %4651 = vxpose.xlu0.b32.cont [2/16] 0.0, 128
        %4652 = vxpose.xlu0.b32.cont [3/16] 0.0, 128
        %4653 = vxpose.xlu0.b32.cont [4/16] 0.0, 128
        %4654 = vxpose.xlu0.b32.cont [5/16] 0.0, 128
        %4655 = vxpose.xlu0.b32.cont [6/16] 0.0, 128
        %4656 = vxpose.xlu0.b32.cont [7/16] 0.0, 128
        %4657 = vxpose.xlu0.b32.cont [8/16] 0.0, 128
        %4658 = vxpose.xlu0.b32.cont [9/16] 0.0, 128
        %4659 = vxpose.xlu0.b32.cont [10/16] 0.0, 128
        %4660 = vxpose.xlu0.b32.cont [11/16] 0.0, 128
        %4661 = vxpose.xlu0.b32.cont [12/16] 0.0, 128
        %4662 = vxpose.xlu0.b32.cont [13/16] 0.0, 128
        %4663 = vxpose.xlu0.b32.cont [14/16] 0.0, 128
        %4664 = vxpose.xlu0.b32.cont [15/16] 0.0, 128
        %4665 = vxpose.xlu0.b32.end [16/16] 0.0, 128
        %v4666 = vpop.trf.xlu0
        %v4667 = vpop.trf.xlu0
        %v4668 = vpop.trf.xlu0
        %v4669 = vpop.trf.xlu0
        %v4670 = vpop.trf.xlu0
        %v4671 = vpop.trf.xlu0
        %v4672 = vpop.trf.xlu0
        %v4673 = vpop.trf.xlu0
        %v4674 = vpop.trf.xlu0
        %v4675 = vpop.trf.xlu0
        %v4676 = vpop.trf.xlu0
        %v4677 = vpop.trf.xlu0
        %v4678 = vpop.trf.xlu0
        %v4679 = vpop.trf.xlu0
        %v4680 = vpop.trf.xlu0
        %v4681 = vpop.trf.xlu0
        %v4683 = vsel %vm619, %v4666, 0
        %v4685 = vsel %vm619, %v4645, 0
        %v4687 = vsel %vm619, %v4647, 0
        %4689 = vmatprep.subr.mxu0 0.0
        %4690 = vmatpush1.xpose.msra.mxu0 %v3818
        %4691 = vmatprep.subr.mxu0 0.0
        %4692 = vmatpush1.xpose.msra.mxu0 %v3816
        %4693 = vmatprep.subr.mxu0 0.0
        %4694 = vmatpush1.xpose.msra.mxu0 %v3814
        %4695 = vmatprep.subr.mxu0 0.0
        %4696 = vmatpush1.xpose.msra.mxu0 %v3812
        %4697 = vmatprep.subr.mxu0 0.0
        %4698 = vmatpush1.xpose.msra.mxu0 %v3810
        %4699 = vmatprep.subr.mxu0 0.0
        %4700 = vmatpush1.xpose.msra.mxu0 %v3808
        %4701 = vmatprep.subr.mxu0 0.0
        %4702 = vmatpush1.xpose.msra.mxu0 %v3806
        %4703 = vmatprep.subr.mxu0 0.0
        %4704 = vmatpush1.xpose.msra.mxu0 %v3804
        %4705 = vmatprep.subr.mxu0 0.0
        %4706 = vmatpush1.xpose.msra.mxu0 %v3802
        %4707 = vmatprep.subr.mxu0 0.0
        %4708 = vmatpush1.xpose.msra.mxu0 %v3800
        %4709 = vmatprep.subr.mxu0 0.0
        %4710 = vmatpush1.xpose.msra.mxu0 %v3798
        %4711 = vmatprep.subr.mxu0 0.0
        %4712 = vmatpush1.xpose.msra.mxu0 %v3796
        %4713 = vmatprep.subr.mxu0 0.0
        %4714 = vmatpush1.xpose.msra.mxu0 %v3794
        %4715 = vmatprep.subr.mxu0 0.0
        %4716 = vmatpush1.xpose.msra.mxu0 %v3792
        %4717 = vmatprep.subr.mxu0 0.0
        %4718 = vmatpush1.xpose.msra.mxu0 %v3790
        %4719 = vmatprep.subr.mxu0 0.0
        %4720 = vmatpush1.xpose.msra.mxu0 %v3788
        %4721 = vmatprep.subr.mxu0 0.0
        %4722 = vmatpush2.xpose.msra.mxu0 %v4687
        %4723 = vmatprep.subr.mxu0 0.0
        %4724 = vmatpush2.xpose.msra.mxu0 %v4685
        %4725 = vmatprep.subr.mxu0 0.0
        %4726 = vmatpush2.xpose.msra.mxu0 %v4332
        %4727 = vmatprep.subr.mxu0 0.0
        %4728 = vmatpush2.xpose.msra.mxu0 %v4330
        %4729 = vmatprep.subr.mxu0 0.0
        %4730 = vmatpush2.xpose.msra.mxu0 %v3842
        %4731 = vmatprep.subr.mxu0 0.0
        %4732 = vmatpush2.xpose.msra.mxu0 %v3840
        %4733 = vmatprep.subr.mxu0 0.0
        %4734 = vmatpush2.xpose.msra.mxu0 %v3838
        %4735 = vmatprep.subr.mxu0 0.0
        %4736 = vmatpush2.xpose.msra.mxu0 %v3836
        %4737 = vmatprep.subr.mxu0 0.0
        %4738 = vmatpush2.xpose.msra.mxu0 %v3834
        %4739 = vmatprep.subr.mxu0 0.0
        %4740 = vmatpush2.xpose.msra.mxu0 %v3832
        %4741 = vmatprep.subr.mxu0 0.0
        %4742 = vmatpush2.xpose.msra.mxu0 %v3830
        %4743 = vmatprep.subr.mxu0 0.0
        %4744 = vmatpush2.xpose.msra.mxu0 %v3828
        %4745 = vmatprep.subr.mxu0 0.0
        %4746 = vmatpush2.xpose.msra.mxu0 %v3826
        %4747 = vmatprep.subr.mxu0 0.0
        %4748 = vmatpush2.xpose.msra.mxu0 %v3824
        %4749 = vmatprep.subr.mxu0 0.0
        %4750 = vmatpush2.xpose.msra.mxu0 %v3822
        %4751 = vmatprep.subr.mxu0 0.0
        %4752 = vmatpush2.xpose.msra.mxu0 %v3820
        %4753 = vmatprep.mubr.f32.mxu0 0.0
        %4754 = vmatmul.mubr.f32.gmra.mxu0 %v4683
        %v4755 = vpop.f32.mrf.mxu0
        %v4756 = vadd.f32 0.0, %v4755
        %v4757 = vpop.f32.mrf.mxu0
        %v4758 = vadd.f32 0.0, %v4757
        %4759 = vdwg.mxu0
        %v4760 = vadd.f32 %v4640, %v4756
        %v4761 = vadd.f32 %v4641, %v4758
        %v4762 = vrot.slane %v3438, 2
        %v4763 = vrot.slane %v3439, 2
        %v4764 = vsel %vm928, %v4762, %v4763
        %v4765 = vrot.slane %v3440, 2
        %v4766 = vsel %vm928, %v4763, %v4765
        %s4767 = scalar_lea.vmem %s3, 104
        %v4768 = vld [vmem:[%s4767] sm:$0xf]
        %4769 = vxpose.xlu0.b32.start [1/16] %v4768, 128
        %4770 = vxpose.xlu0.b32.cont [2/16] 0.0, 128
        %4771 = vxpose.xlu0.b32.cont [3/16] 0.0, 128
        %4772 = vxpose.xlu0.b32.cont [4/16] 0.0, 128
        %4773 = vxpose.xlu0.b32.cont [5/16] 0.0, 128
        %4774 = vxpose.xlu0.b32.cont [6/16] 0.0, 128
        %4775 = vxpose.xlu0.b32.cont [7/16] 0.0, 128
        %4776 = vxpose.xlu0.b32.cont [8/16] 0.0, 128
        %4777 = vxpose.xlu0.b32.cont [9/16] 0.0, 128
        %4778 = vxpose.xlu0.b32.cont [10/16] 0.0, 128
        %4779 = vxpose.xlu0.b32.cont [11/16] 0.0, 128
        %4780 = vxpose.xlu0.b32.cont [12/16] 0.0, 128
        %4781 = vxpose.xlu0.b32.cont [13/16] 0.0, 128
        %4782 = vxpose.xlu0.b32.cont [14/16] 0.0, 128
        %4783 = vxpose.xlu0.b32.cont [15/16] 0.0, 128
        %4784 = vxpose.xlu0.b32.end [16/16] 0.0, 128
        %v4785 = vpop.trf.xlu0
        %v4786 = vpop.trf.xlu0
        %v4787 = vpop.trf.xlu0
        %v4788 = vpop.trf.xlu0
        %v4789 = vpop.trf.xlu0
        %v4790 = vpop.trf.xlu0
        %v4791 = vpop.trf.xlu0
        %v4792 = vpop.trf.xlu0
        %v4793 = vpop.trf.xlu0
        %v4794 = vpop.trf.xlu0
        %v4795 = vpop.trf.xlu0
        %v4796 = vpop.trf.xlu0
        %v4797 = vpop.trf.xlu0
        %v4798 = vpop.trf.xlu0
        %v4799 = vpop.trf.xlu0
        %v4800 = vpop.trf.xlu0
        %v4802 = vsel %vm619, %v4785, 0
        %v4804 = vsel %vm619, %v4764, 0
        %v4806 = vsel %vm619, %v4766, 0
        %4808 = vmatprep.subr.mxu0 0.0
        %4809 = vmatpush1.xpose.msra.mxu0 %v4072
        %4810 = vmatprep.subr.mxu0 0.0
        %4811 = vmatpush1.xpose.msra.mxu0 %v4070
        %4812 = vmatprep.subr.mxu0 0.0
        %4813 = vmatpush1.xpose.msra.mxu0 %v4068
        %4814 = vmatprep.subr.mxu0 0.0
        %4815 = vmatpush1.xpose.msra.mxu0 %v4066
        %4816 = vmatprep.subr.mxu0 0.0
        %4817 = vmatpush1.xpose.msra.mxu0 %v4064
        %4818 = vmatprep.subr.mxu0 0.0
        %4819 = vmatpush1.xpose.msra.mxu0 %v4062
        %4820 = vmatprep.subr.mxu0 0.0
        %4821 = vmatpush1.xpose.msra.mxu0 %v4060
        %4822 = vmatprep.subr.mxu0 0.0
        %4823 = vmatpush1.xpose.msra.mxu0 %v4058
        %4824 = vmatprep.subr.mxu0 0.0
        %4825 = vmatpush1.xpose.msra.mxu0 %v4056
        %4826 = vmatprep.subr.mxu0 0.0
        %4827 = vmatpush1.xpose.msra.mxu0 %v4054
        %4828 = vmatprep.subr.mxu0 0.0
        %4829 = vmatpush1.xpose.msra.mxu0 %v4052
        %4830 = vmatprep.subr.mxu0 0.0
        %4831 = vmatpush1.xpose.msra.mxu0 %v4050
        %4832 = vmatprep.subr.mxu0 0.0
        %4833 = vmatpush1.xpose.msra.mxu0 %v4048
        %4834 = vmatprep.subr.mxu0 0.0
        %4835 = vmatpush1.xpose.msra.mxu0 %v4046
        %4836 = vmatprep.subr.mxu0 0.0
        %4837 = vmatpush1.xpose.msra.mxu0 %v4044
        %4838 = vmatprep.subr.mxu0 0.0
        %4839 = vmatpush1.xpose.msra.mxu0 %v4042
        %4840 = vmatprep.subr.mxu0 0.0
        %4841 = vmatpush2.xpose.msra.mxu0 %v4806
        %4842 = vmatprep.subr.mxu0 0.0
        %4843 = vmatpush2.xpose.msra.mxu0 %v4804
        %4844 = vmatprep.subr.mxu0 0.0
        %4845 = vmatpush2.xpose.msra.mxu0 %v4451
        %4846 = vmatprep.subr.mxu0 0.0
        %4847 = vmatpush2.xpose.msra.mxu0 %v4449
        %4848 = vmatprep.subr.mxu0 0.0
        %4849 = vmatpush2.xpose.msra.mxu0 %v4096
        %4850 = vmatprep.subr.mxu0 0.0
        %4851 = vmatpush2.xpose.msra.mxu0 %v4094
        %4852 = vmatprep.subr.mxu0 0.0
        %4853 = vmatpush2.xpose.msra.mxu0 %v4092
        %4854 = vmatprep.subr.mxu0 0.0
        %4855 = vmatpush2.xpose.msra.mxu0 %v4090
        %4856 = vmatprep.subr.mxu0 0.0
        %4857 = vmatpush2.xpose.msra.mxu0 %v4088
        %4858 = vmatprep.subr.mxu0 0.0
        %4859 = vmatpush2.xpose.msra.mxu0 %v4086
        %4860 = vmatprep.subr.mxu0 0.0
        %4861 = vmatpush2.xpose.msra.mxu0 %v4084
        %4862 = vmatprep.subr.mxu0 0.0
        %4863 = vmatpush2.xpose.msra.mxu0 %v4082
        %4864 = vmatprep.subr.mxu0 0.0
        %4865 = vmatpush2.xpose.msra.mxu0 %v4080
        %4866 = vmatprep.subr.mxu0 0.0
        %4867 = vmatpush2.xpose.msra.mxu0 %v4078
        %4868 = vmatprep.subr.mxu0 0.0
        %4869 = vmatpush2.xpose.msra.mxu0 %v4076
        %4870 = vmatprep.subr.mxu0 0.0
        %4871 = vmatpush2.xpose.msra.mxu0 %v4074
        %4872 = vmatprep.mubr.f32.mxu0 0.0
        %4873 = vmatmul.mubr.f32.gmra.mxu0 %v4802
        %v4874 = vpop.f32.mrf.mxu0
        %v4875 = vadd.f32 0.0, %v4874
        %v4876 = vpop.f32.mrf.mxu0
        %v4877 = vadd.f32 0.0, %v4876
        %4878 = vdwg.mxu0
        %v4879 = vadd.f32 %v4760, %v4875
        %v4880 = vadd.f32 %v4761, %v4877
        %4881 = vst [vmem:[%s333] sm:$0xff] %v4879
        %4882 = vst [vmem:[%s333 + $0x8] sm:$0xff] %v4880
        %v4883 = vadd.f32 %v4879, %v4880
        %4884 = vadd.xlane.f32.xlu0 %v4883
        %v4885 = vpop.xlane.xlu0 %4884
        %vm4886 = vcmask 7168
        %4887 = vst.msk [vmem:[%s392] sm:$0xff] %vm4886, %v4885
        %v4888 = vmul.f32 %v4879, %v4879
        %v4889 = vmul.f32 %v4880, %v4880
        %v4890 = vadd.f32 %v4888, %v4889
        %4891 = vadd.xlane.f32.xlu0 %v4890
        %v4892 = vpop.xlane.xlu0 %4891
        %4893 = vst.msk [vmem:[%s400] sm:$0xff] %vm4886, %v4892
        %s4894 = sand.u32 %s152, 1
        %s4895 = scalar_lea.sflag [#allocation3], %s4894
        %s4896 = sand.u32 %s152, 1
        %s4897 = smul.addr %s4896, 16
        %s4898 = scalar_lea.vmem [#allocation2], %s4897
        %p4899 = scmp.lt.s32.totalorder %s25, 1
        %s4900 = scalar_select %p4899, %s25, 1
        %p4901 = scmp.lt.s32.totalorder %s26, 7
        %s4902 = scalar_select %p4901, %s26, 7
        %s4903 = smul.addr %s4900, 8
        %s4904 = sadd.s32 %s4902, %s4903
        %s4905 = smul.addr %s4904, 8
        %s4906 = scalar_lea.vmem %s5, %s4905
        %p4907 = scmp.lt.s32.totalorder %s25, 1
        %s4908 = scalar_select %p4907, %s25, 1
        %p4909 = scmp.lt.s32.totalorder %s26, 7
        %s4910 = scalar_select %p4909, %s26, 7
        %s4911 = smul.addr %s4908, 8
        %s4912 = sadd.s32 %s4910, %s4911
        %s4913 = smul.addr %s4912, 8
        %s4914 = scalar_lea.vmem %s6, %s4913
        // Predicated region
        $region37: #{tpu_custom_call.1} parent=35 // pred_check
          %p4915 = pneg %p162
        $region38: #{tpu_custom_call.1} parent=35 // pred_check_branch
          %4917 = sbr.rel (%p4915) target = $region40
        $region39: #{tpu_custom_call.1} parent=35 // pred_region
          %s4919 = ssub.s32 256, 256
          %4920 = vsyncadd %s4895, %s4919
          %s4921 = smul.addr %s26, 2
          %s4922 = smul.addr %s25, 16
          %s4923 = sadd.s32 %s4921, %s4922
          %s4924 = smul.addr %s4923, 128
          %s4925 = scalar_lea.hbm %s4, %s4924
          %s4927 = sshll.u32 %s4898, 4
          %s4928 = int_to_ptr.vmem [resolvable:$true] %s4927
          %4930 = dma.vmem_to_hbm [thread:$0]  %s4928, 256, %s4925, %s4895
        $region40: #{tpu_custom_call.1} parent=35 // pred_fallthru
          _
        // Predicated region
        $region41: #{tpu_custom_call.1} parent=35 // pred_check
          %p4931 = pneg %p190
        $region42: #{tpu_custom_call.1} parent=35 // pred_check_branch
          %4933 = sbr.rel (%p4931) target = $region44
        $region43: #{tpu_custom_call.1} parent=35 // pred_region
          _
        $region44: #{tpu_custom_call.1} parent=35 // pred_fallthru
          _
        // Predicated region
        $region45: #{tpu_custom_call.1} parent=35 // pred_check
          %p4934 = pneg %p218
        $region46: #{tpu_custom_call.1} parent=35 // pred_check_branch
          %4936 = sbr.rel (%p4934) target = $region48
        $region47: #{tpu_custom_call.1} parent=35 // pred_region
          _
        $region48: #{tpu_custom_call.1} parent=35 // pred_fallthru
          _
      $region36: #{tpu_custom_call.1} parent=5 // pred_fallthru
        _
      %p4937 = scmp.le.s32.totalorder 2, %s16
      // Predicated region
      $region49: #{tpu_custom_call.1} parent=5 // pred_check
        %p4938 = pneg %p4937
      $region50: #{tpu_custom_call.1} parent=5 // pred_check_branch
        %4940 = sbr.rel (%p4938) target = $region52
      $region51: #{tpu_custom_call.1} parent=5 // pred_region
        %s4941 = ssub.s32 %s16, 2
        // Predicated region
        $region53: #{tpu_custom_call.1} parent=51 // pred_check
          %p4942 = pneg %p168
        $region54: #{tpu_custom_call.1} parent=51 // pred_check_branch
          %4944 = sbr.rel (%p4942) target = $region56
        $region55: #{tpu_custom_call.1} parent=51 // pred_region
          %s4945 = sand.u32 %s153, 1
          %s4946 = scalar_lea.sflag [#allocation3], %s4945
          %s4947 = sand.u32 %s153, 1
          %s4948 = smul.addr %s4947, 16
          %s4949 = scalar_lea.vmem [#allocation2], %s4948
          %4950 = dma.done %s4946, 256
        $region56: #{tpu_custom_call.1} parent=51 // pred_fallthru
          _
        // Predicated region
        $region57: #{tpu_custom_call.1} parent=51 // pred_check
          %p4951 = pneg %p196
        $region58: #{tpu_custom_call.1} parent=51 // pred_check_branch
          %4953 = sbr.rel (%p4951) target = $region60
        $region59: #{tpu_custom_call.1} parent=51 // pred_region
          %p4954 = scmp.lt.s32.totalorder %s27, 1
          %s4955 = scalar_select %p4954, %s27, 1
          %p4956 = scmp.lt.s32.totalorder %s28, 7
          %s4957 = scalar_select %p4956, %s28, 7
          %s4958 = smul.addr %s4955, 8
          %s4959 = sadd.s32 %s4957, %s4958
          %s4960 = smul.addr %s4959, 8
          %s4961 = scalar_lea.vmem %s5, %s4960
        $region60: #{tpu_custom_call.1} parent=51 // pred_fallthru
          _
        // Predicated region
        $region61: #{tpu_custom_call.1} parent=51 // pred_check
          %p4962 = pneg %p224
        $region62: #{tpu_custom_call.1} parent=51 // pred_check_branch
          %4964 = sbr.rel (%p4962) target = $region64
        $region63: #{tpu_custom_call.1} parent=51 // pred_region
          %p4965 = scmp.lt.s32.totalorder %s27, 1
          %s4966 = scalar_select %p4965, %s27, 1
          %p4967 = scmp.lt.s32.totalorder %s28, 7
          %s4968 = scalar_select %p4967, %s28, 7
          %s4969 = smul.addr %s4966, 8
          %s4970 = sadd.s32 %s4968, %s4969
          %s4971 = smul.addr %s4970, 8
          %s4972 = scalar_lea.vmem %s6, %s4971
        $region64: #{tpu_custom_call.1} parent=51 // pred_fallthru
          _
      $region52: #{tpu_custom_call.1} parent=5 // pred_fallthru
        _
    $region6: #{tpu_custom_call.1} parent=1 // loop_footer
      %s20 = sadd.s32 1, %s16
    $region7: #{tpu_custom_call.1} parent=1 // loop_footer_branch
      %15 = sbr.rel target = $region3
    $region8: #{tpu_custom_call.1} parent=1 // loop_exit
      _
    %4973 = vsyncpa [#allocation3], 1
    %s4974 = scalar_lea.sflag [#allocation3], 1
    %4975 = vsyncpa %s4974, 1

</llo_original>
